<compile_context>
chip_gen: v6e
topology: v6e:2x2x1
jax: 0.10.0
libtpu: 0.0.40
codegen_flags: <defaults>
</compile_context>

<pallas_src>
import functools

import jax
import jax.numpy as jnp
from jax.experimental import pallas as pl
from jax.experimental.pallas import tpu as pltpu

LN_EPS = 1e-5   # torch.nn.LayerNorm default eps
LANE = 128      # TPU lane width

# Row layout of the packed small-parameter array (P, H):
_ROW_FC1_B = 0
_ROW_LN1_G = 1
_ROW_LN1_B = 2
_ROW_B_IR = 3
_ROW_B_IZ = 4
_ROW_B_IN = 5
_ROW_B_HR = 6
_ROW_B_HZ = 7
_ROW_B_HN = 8
_ROW_NORM_G = 9
_ROW_NORM_B = 10
_ROW_HID0 = 11  # then [fch_b, lnh_g, lnh_b] per hidden layer


def _round_up(x, m):
    return ((x + m - 1) // m) * m


def _layer_norm(x, g, b):
    mean = jnp.mean(x, axis=-1, keepdims=True)
    var = jnp.mean((x - mean) ** 2, axis=-1, keepdims=True)
    return (x - mean) * jax.lax.rsqrt(var + LN_EPS) * g + b


# --------------------------------------------------------------------------
# Kernel
# --------------------------------------------------------------------------
def rnn_agent_kernel(layer_N, compute_dtype,
                     x_ref, h_ref,
                     fc1_w_ref, fch_w_ref, gate_w_ref, fc2_w_ref,
                     pvec_ref, fc2_b_ref,
                     q_ref, h_out_ref):
    p = pvec_ref[...]                       # (P, H) f32, single load

    def row(r):                             # (1, H) f32
        return p[r:r + 1, :]

    def mm(a_c, w):                         # a_c already compute_dtype; w stored compute_dtype
        return jnp.dot(a_c, w, preferred_element_type=jnp.float32)

    # ---- MLP fc1: Linear -> ReLU -> LayerNorm ----
    x_c = x_ref[...].astype(compute_dtype)
    y = mm(x_c, fc1_w_ref[...]) + row(_ROW_FC1_B)
    y = jnp.maximum(y, 0.0)                 # use_ReLU=True
    y = _layer_norm(y, row(_ROW_LN1_G), row(_ROW_LN1_B))

    # ---- MLP hidden layers (static unroll over layer_N) ----
    for i in range(layer_N):
        base = _ROW_HID0 + 3 * i
        y = mm(y.astype(compute_dtype), fch_w_ref[i]) + row(base)
        y = jnp.maximum(y, 0.0)
        y = _layer_norm(y, row(base + 1), row(base + 2))

    # ---- GRUCell (torch gate order r, z, n), lane-aligned per-gate dots ----
    h_in = h_ref[...]
    y_c = y.astype(compute_dtype)
    h_c = h_in.astype(compute_dtype)
    gi_r = mm(y_c, gate_w_ref[0]) + row(_ROW_B_IR)
    gi_z = mm(y_c, gate_w_ref[1]) + row(_ROW_B_IZ)
    gi_n = mm(y_c, gate_w_ref[2]) + row(_ROW_B_IN)
    gh_r = mm(h_c, gate_w_ref[3]) + row(_ROW_B_HR)
    gh_z = mm(h_c, gate_w_ref[4]) + row(_ROW_B_HZ)
    gh_n = mm(h_c, gate_w_ref[5]) + row(_ROW_B_HN)

    r = jax.nn.sigmoid(gi_r + gh_r)
    z = jax.nn.sigmoid(gi_z + gh_z)
    n = jnp.tanh(gi_n + r * gh_n)
    h_new = (1.0 - z) * n + z * h_in

    # ---- output head: LayerNorm -> Linear (lane-dense padded q) ----
    h1 = _layer_norm(h_new, row(_ROW_NORM_G), row(_ROW_NORM_B))
    q = mm(h1.astype(compute_dtype), fc2_w_ref[...]) + fc2_b_ref[...]

    q_ref[...] = q
    h_out_ref[...] = h_new


# --------------------------------------------------------------------------
# Parameter packing (natural torch-like params -> kernel layout)
# --------------------------------------------------------------------------
def pack_params(params, layer_N, compute_dtype=jnp.float32):
    H = params["fc1_w"].shape[1]
    A = params["fc2_w"].shape[1]
    A_pad = _round_up(A, LANE)
    cdt = compute_dtype

    fc1_w = params["fc1_w"].astype(cdt)

    fch_w = params["fch_w"]
    if layer_N == 0:                        # keep a valid (non-empty) operand
        fch_w = jnp.zeros((1, H, H), jnp.float32)
    fch_w = fch_w.astype(cdt)

    w_ih, w_hh = params["w_ih"], params["w_hh"]
    gate_w = jnp.stack(
        [w_ih[:, 0:H], w_ih[:, H:2 * H], w_ih[:, 2 * H:3 * H],
         w_hh[:, 0:H], w_hh[:, H:2 * H], w_hh[:, 2 * H:3 * H]],
        axis=0).astype(cdt)                 # (6, H, H)

    fc2_w = jnp.zeros((H, A_pad), jnp.float32).at[:, :A].set(params["fc2_w"]).astype(cdt)
    fc2_b = jnp.zeros((1, A_pad), jnp.float32).at[0, :A].set(params["fc2_b"])

    b_ih, b_hh = params["b_ih"], params["b_hh"]
    rows = [params["fc1_b"], params["ln1_g"], params["ln1_b"],
            b_ih[0:H], b_ih[H:2 * H], b_ih[2 * H:3 * H],
            b_hh[0:H], b_hh[H:2 * H], b_hh[2 * H:3 * H],
            params["norm_g"], params["norm_b"]]
    for i in range(layer_N):
        rows += [params["fch_b"][i], params["lnh_g"][i], params["lnh_b"][i]]
    pvec = jnp.stack(rows, axis=0).astype(jnp.float32)      # (11 + 3*layer_N, H)

    return dict(fc1_w=fc1_w, fch_w=fch_w, gate_w=gate_w,
                fc2_w=fc2_w, fc2_b=fc2_b, pvec=pvec,
                n_actions=A, a_pad=A_pad)


# --------------------------------------------------------------------------
# Wrapper
# --------------------------------------------------------------------------
def rnn_agent_forward(packed, inputs, hidden_state, layer_N, *,
                      block_b=128, compute_dtype=jnp.float32):
    B, IN = inputs.shape
    H = hidden_state.shape[-1]
    A = packed["n_actions"]
    A_pad = packed["a_pad"]

    # Batch tile: multiple of 8 sublanes, capped at block_b; pad B up to it.
    TB = min(block_b, _round_up(B, 8))
    B_pad = _round_up(B, TB)
    if B_pad != B:
        pad = B_pad - B
        inputs = jnp.pad(inputs, ((0, pad), (0, 0)))
        hidden_state = jnp.pad(hidden_state, ((0, pad), (0, 0)))

    args = (inputs, hidden_state,
            packed["fc1_w"], packed["fch_w"], packed["gate_w"],
            packed["fc2_w"], packed["pvec"], packed["fc2_b"])

    def batch_spec(ncols):
        return pl.BlockSpec((TB, ncols), lambda i: (i, 0))

    def const_spec(a):                      # weights: fetched once, VMEM-resident
        nd = a.ndim
        return pl.BlockSpec(a.shape, lambda i, _nd=nd: (0,) * _nd)

    in_specs = [batch_spec(IN), batch_spec(H)] + [const_spec(a) for a in args[2:]]
    out_specs = (batch_spec(A_pad), batch_spec(H))
    out_shape = (jax.ShapeDtypeStruct((B_pad, A_pad), jnp.float32),
                 jax.ShapeDtypeStruct((B_pad, H), jnp.float32))

    q_pad, h_pad = pl.pallas_call(
        functools.partial(rnn_agent_kernel, layer_N, compute_dtype),
        grid=(B_pad // TB,),
        in_specs=in_specs,
        out_specs=out_specs,
        out_shape=out_shape,
        input_output_aliases={1: 1},        # hidden state updated in place
        compiler_params=pltpu.CompilerParams(
            dimension_semantics=("parallel",)),
    )(*args)

    return q_pad[:B, :A], h_pad[:B]


# --------------------------------------------------------------------------
# Pure-JAX reference (torch semantics) for correctness checking
# --------------------------------------------------------------------------
def reference_forward(params, inputs, hidden_state, layer_N,
                      compute_dtype=jnp.float32):
    H = hidden_state.shape[-1]

    def mm(a, w):
        return jnp.dot(a.astype(compute_dtype), w.astype(compute_dtype),
                       preferred_element_type=jnp.float32)

    y = jnp.maximum(mm(inputs, params["fc1_w"]) + params["fc1_b"], 0.0)
    y = _layer_norm(y, params["ln1_g"], params["ln1_b"])
    for i in range(layer_N):
        y = jnp.maximum(mm(y, params["fch_w"][i]) + params["fch_b"][i], 0.0)
        y = _layer_norm(y, params["lnh_g"][i], params["lnh_b"][i])
    gi = mm(y, params["w_ih"]) + params["b_ih"]
    gh = mm(hidden_state, params["w_hh"]) + params["b_hh"]
    r = jax.nn.sigmoid(gi[:, :H] + gh[:, :H])
    z = jax.nn.sigmoid(gi[:, H:2 * H] + gh[:, H:2 * H])
    n = jnp.tanh(gi[:, 2 * H:] + r * gh[:, 2 * H:])
    h_new = (1.0 - z) * n + z * hidden_state
    h1 = _layer_norm(h_new, params["norm_g"], params["norm_b"])
    q = mm(h1, params["fc2_w"]) + params["fc2_b"]
    return q, h_new


def init_params(key, input_dim, hidden_dim, n_actions, layer_N):
    """Synthetic deterministic init mirroring the module's __init__ shapes.
    Linear weights stored transposed (in, out); orthogonal init, zero biases,
    LayerNorm gamma=1 / beta=0."""
    ks = jax.random.split(key, 6)
    relu_gain = jnp.sqrt(2.0)
    ortho = jax.nn.initializers.orthogonal

    fc1_w = ortho(relu_gain)(ks[0], (input_dim, hidden_dim), jnp.float32)
    fch_w_single = ortho(relu_gain)(ks[1], (hidden_dim, hidden_dim), jnp.float32)
    # get_clones deep-copies fc_h, so every clone starts from the same weights.
    fch_w = jnp.tile(fch_w_single[None], (max(layer_N, 1), 1, 1))[:layer_N]
    w_ih = ortho(1.0)(ks[2], (hidden_dim, 3 * hidden_dim), jnp.float32)
    w_hh = ortho(1.0)(ks[3], (hidden_dim, 3 * hidden_dim), jnp.float32)
    fc2_w = ortho(1.0)(ks[4], (hidden_dim, n_actions), jnp.float32)

    return {
        "fc1_w": fc1_w,
        "fc1_b": jnp.zeros((hidden_dim,), jnp.float32),
        "ln1_g": jnp.ones((hidden_dim,), jnp.float32),
        "ln1_b": jnp.zeros((hidden_dim,), jnp.float32),
        "fch_w": fch_w,
        "fch_b": jnp.zeros((layer_N, hidden_dim), jnp.float32),
        "lnh_g": jnp.ones((layer_N, hidden_dim), jnp.float32),
        "lnh_b": jnp.zeros((layer_N, hidden_dim), jnp.float32),
        "w_ih": w_ih,
        "b_ih": jnp.zeros((3 * hidden_dim,), jnp.float32),
        "w_hh": w_hh,
        "b_hh": jnp.zeros((3 * hidden_dim,), jnp.float32),
        "norm_g": jnp.ones((hidden_dim,), jnp.float32),
        "norm_b": jnp.zeros((hidden_dim,), jnp.float32),
        "fc2_w": fc2_w,
        "fc2_b": jnp.zeros((n_actions,), jnp.float32),
    }


if __name__ == "__main__":
    # Batched agent step: B = n_agents * n_envs rows (tiled over the grid),
    # rnn_hidden_dim=64, layer_N=2, n_actions=14.
    B, INPUT_DIM, HIDDEN, N_ACTIONS, LAYER_N = 256, 80, 64, 14, 2

    key = jax.random.PRNGKey(0)
    k_in, k_h, k_p = jax.random.split(key, 3)

    inputs = jax.random.normal(k_in, (B, INPUT_DIM), jnp.float32)
    hidden_state = jax.random.normal(k_h, (B, HIDDEN), jnp.float32)
    params = init_params(k_p, INPUT_DIM, HIDDEN, N_ACTIONS, LAYER_N)

    # ---- f32 path: exact check against the torch-semantics reference ----
    q_ref32, h_ref32 = reference_forward(params, inputs, hidden_state, LAYER_N)
    packed32 = pack_params(params, LAYER_N, jnp.float32)
    q, h = rnn_agent_forward(packed32, inputs, hidden_state, LAYER_N,
                             block_b=128, compute_dtype=jnp.float32)
    q = jax.block_until_ready(q)
    h = jax.block_until_ready(h)
    assert q.shape == (B, N_ACTIONS) and h.shape == (B, HIDDEN)
    assert jnp.allclose(q, q_ref32, rtol=1e-4, atol=1e-4)
    assert jnp.allclose(h, h_ref32, rtol=1e-4, atol=1e-4)

    # ---- bf16-matmul path (recommended on v6e/v7x): check vs bf16 reference ----
    q_ref16, h_ref16 = reference_forward(params, inputs, hidden_state, LAYER_N,
                                         compute_dtype=jnp.bfloat16)
    packed16 = pack_params(params, LAYER_N, jnp.bfloat16)
    q16, h16 = rnn_agent_forward(packed16, inputs, hidden_state, LAYER_N,
                                 block_b=128, compute_dtype=jnp.bfloat16)
    q16 = jax.block_until_ready(q16)
    h16 = jax.block_until_ready(h16)
    assert jnp.allclose(q16, q_ref16, rtol=1e-2, atol=1e-2)
    assert jnp.allclose(h16, h_ref16, rtol=1e-2, atol=1e-2)

    print("KERNEL_OK")
</pallas_src>

<mosaic_0001>
module attributes {stable_mosaic.version = 11 : i64} {
  func.func @rnn_agent_kernel(%arg0: i32, %arg1: memref<128x80xf32, #tpu.memory_space<vmem>>, %arg2: memref<128x64xf32, #tpu.memory_space<vmem>>, %arg3: memref<80x64xf32, #tpu.memory_space<vmem>>, %arg4: memref<2x64x64xf32, #tpu.memory_space<vmem>>, %arg5: memref<6x64x64xf32, #tpu.memory_space<vmem>>, %arg6: memref<64x128xf32, #tpu.memory_space<vmem>>, %arg7: memref<17x64xf32, #tpu.memory_space<vmem>>, %arg8: memref<1x128xf32, #tpu.memory_space<vmem>>, %arg9: memref<128x128xf32, #tpu.memory_space<vmem>>, %arg10: memref<128x64xf32, #tpu.memory_space<vmem>>) attributes {dimension_semantics = [#tpu.dimension_semantics<parallel>], iteration_bounds = array<i64: 2>, scalar_prefetch = 0 : i64, scratch_operands = 0 : i64, tpu.core_type = #tpu.core_type<tc>, window_params = [{transform_indices = @transform_0, window_bounds = array<i64: 128, 80>}, {transform_indices = @transform_1, window_bounds = array<i64: 128, 64>}, {pipeline_mode = #tpu.pipeline_mode<synchronous>, transform_indices = @transform_2, window_bounds = array<i64: 80, 64>}, {pipeline_mode = #tpu.pipeline_mode<synchronous>, transform_indices = @transform_3, window_bounds = array<i64: 2, 64, 64>}, {pipeline_mode = #tpu.pipeline_mode<synchronous>, transform_indices = @transform_4, window_bounds = array<i64: 6, 64, 64>}, {pipeline_mode = #tpu.pipeline_mode<synchronous>, transform_indices = @transform_5, window_bounds = array<i64: 64, 128>}, {pipeline_mode = #tpu.pipeline_mode<synchronous>, transform_indices = @transform_6, window_bounds = array<i64: 17, 64>}, {pipeline_mode = #tpu.pipeline_mode<synchronous>, transform_indices = @transform_7, window_bounds = array<i64: 1, 128>}, {transform_indices = @transform_8, window_bounds = array<i64: 128, 128>}, {transform_indices = @transform_9, window_bounds = array<i64: 128, 64>}]} {
    %c0 = arith.constant 0 : index
    %c0_0 = arith.constant 0 : index
    %0 = vector.load %arg7[%c0, %c0_0] : memref<17x64xf32, #tpu.memory_space<vmem>>, vector<17x64xf32>
    %c0_1 = arith.constant 0 : index
    %c0_2 = arith.constant 0 : index
    %1 = vector.load %arg1[%c0_1, %c0_2] : memref<128x80xf32, #tpu.memory_space<vmem>>, vector<128x80xf32>
    %c0_3 = arith.constant 0 : index
    %c0_4 = arith.constant 0 : index
    %2 = vector.load %arg3[%c0_3, %c0_4] : memref<80x64xf32, #tpu.memory_space<vmem>>, vector<80x64xf32>
    %cst = arith.constant dense<0.000000e+00> : vector<128x64xf32>
    %3 = tpu.matmul %1, %2, %cst {dimension_numbers = #tpu.dot_dimension_numbers<[1], [0], [0], [1], [0, 0, 1, 1], [], []>} : vector<128x80xf32>, vector<80x64xf32>, vector<128x64xf32> -> vector<128x64xf32>
    %4 = vector.extract_strided_slice %0 {offsets = [0, 0], sizes = [1, 64], strides = [1, 1]} : vector<17x64xf32> to vector<1x64xf32>
    %5 = vector.broadcast %4 : vector<1x64xf32> to vector<128x64xf32>
    %6 = arith.addf %3, %5 : vector<128x64xf32>
    %cst_5 = arith.constant 0.000000e+00 : f32
    %7 = vector.broadcast %cst_5 : f32 to vector<128x64xf32>
    %8 = arith.maximumf %6, %7 : vector<128x64xf32>
    %9 = vector.extract_strided_slice %0 {offsets = [1, 0], sizes = [1, 64], strides = [1, 1]} : vector<17x64xf32> to vector<1x64xf32>
    %10 = vector.extract_strided_slice %0 {offsets = [2, 0], sizes = [1, 64], strides = [1, 1]} : vector<17x64xf32> to vector<1x64xf32>
    %cst_6 = arith.constant dense<0.000000e+00> : vector<128xf32>
    %11 = vector.multi_reduction <add>, %8, %cst_6 [1] : vector<128x64xf32> to vector<128xf32>
    %12 = vector.shape_cast %11 : vector<128xf32> to vector<128x1xf32>
    %cst_7 = arith.constant 6.400000e+01 : f32
    %13 = vector.broadcast %cst_7 : f32 to vector<128x1xf32>
    %14 = arith.divf %12, %13 : vector<128x1xf32>
    %15 = vector.broadcast %14 : vector<128x1xf32> to vector<128x64xf32>
    %16 = arith.subf %8, %15 : vector<128x64xf32>
    %17 = arith.mulf %16, %16 : vector<128x64xf32>
    %cst_8 = arith.constant dense<0.000000e+00> : vector<128xf32>
    %18 = vector.multi_reduction <add>, %17, %cst_8 [1] : vector<128x64xf32> to vector<128xf32>
    %19 = vector.shape_cast %18 : vector<128xf32> to vector<128x1xf32>
    %cst_9 = arith.constant 6.400000e+01 : f32
    %20 = vector.broadcast %cst_9 : f32 to vector<128x1xf32>
    %21 = arith.divf %19, %20 : vector<128x1xf32>
    %22 = vector.broadcast %14 : vector<128x1xf32> to vector<128x64xf32>
    %23 = arith.subf %8, %22 : vector<128x64xf32>
    %cst_10 = arith.constant 9.99999974E-6 : f32
    %24 = vector.broadcast %cst_10 : f32 to vector<128x1xf32>
    %25 = arith.addf %21, %24 : vector<128x1xf32>
    %26 = math.rsqrt %25 : vector<128x1xf32>
    %27 = vector.broadcast %26 : vector<128x1xf32> to vector<128x64xf32>
    %28 = arith.mulf %23, %27 : vector<128x64xf32>
    %29 = vector.broadcast %9 : vector<1x64xf32> to vector<128x64xf32>
    %30 = arith.mulf %28, %29 : vector<128x64xf32>
    %31 = vector.broadcast %10 : vector<1x64xf32> to vector<128x64xf32>
    %32 = arith.addf %30, %31 : vector<128x64xf32>
    %c0_11 = arith.constant 0 : index
    %c0_12 = arith.constant 0 : index
    %c0_13 = arith.constant 0 : index
    %33 = vector.load %arg4[%c0_11, %c0_12, %c0_13] : memref<2x64x64xf32, #tpu.memory_space<vmem>>, vector<1x64x64xf32>
    %34 = vector.shape_cast %33 : vector<1x64x64xf32> to vector<64x64xf32>
    %cst_14 = arith.constant dense<0.000000e+00> : vector<128x64xf32>
    %35 = tpu.matmul %32, %34, %cst_14 {dimension_numbers = #tpu.dot_dimension_numbers<[1], [0], [0], [1], [0, 0, 1, 1], [], []>} : vector<128x64xf32>, vector<64x64xf32>, vector<128x64xf32> -> vector<128x64xf32>
    %36 = vector.extract_strided_slice %0 {offsets = [11, 0], sizes = [1, 64], strides = [1, 1]} : vector<17x64xf32> to vector<1x64xf32>
    %37 = vector.broadcast %36 : vector<1x64xf32> to vector<128x64xf32>
    %38 = arith.addf %35, %37 : vector<128x64xf32>
    %cst_15 = arith.constant 0.000000e+00 : f32
    %39 = vector.broadcast %cst_15 : f32 to vector<128x64xf32>
    %40 = arith.maximumf %38, %39 : vector<128x64xf32>
    %41 = vector.extract_strided_slice %0 {offsets = [12, 0], sizes = [1, 64], strides = [1, 1]} : vector<17x64xf32> to vector<1x64xf32>
    %42 = vector.extract_strided_slice %0 {offsets = [13, 0], sizes = [1, 64], strides = [1, 1]} : vector<17x64xf32> to vector<1x64xf32>
    %cst_16 = arith.constant dense<0.000000e+00> : vector<128xf32>
    %43 = vector.multi_reduction <add>, %40, %cst_16 [1] : vector<128x64xf32> to vector<128xf32>
    %44 = vector.shape_cast %43 : vector<128xf32> to vector<128x1xf32>
    %cst_17 = arith.constant 6.400000e+01 : f32
    %45 = vector.broadcast %cst_17 : f32 to vector<128x1xf32>
    %46 = arith.divf %44, %45 : vector<128x1xf32>
    %47 = vector.broadcast %46 : vector<128x1xf32> to vector<128x64xf32>
    %48 = arith.subf %40, %47 : vector<128x64xf32>
    %49 = arith.mulf %48, %48 : vector<128x64xf32>
    %cst_18 = arith.constant dense<0.000000e+00> : vector<128xf32>
    %50 = vector.multi_reduction <add>, %49, %cst_18 [1] : vector<128x64xf32> to vector<128xf32>
    %51 = vector.shape_cast %50 : vector<128xf32> to vector<128x1xf32>
    %cst_19 = arith.constant 6.400000e+01 : f32
    %52 = vector.broadcast %cst_19 : f32 to vector<128x1xf32>
    %53 = arith.divf %51, %52 : vector<128x1xf32>
    %54 = vector.broadcast %46 : vector<128x1xf32> to vector<128x64xf32>
    %55 = arith.subf %40, %54 : vector<128x64xf32>
    %cst_20 = arith.constant 9.99999974E-6 : f32
    %56 = vector.broadcast %cst_20 : f32 to vector<128x1xf32>
    %57 = arith.addf %53, %56 : vector<128x1xf32>
    %58 = math.rsqrt %57 : vector<128x1xf32>
    %59 = vector.broadcast %58 : vector<128x1xf32> to vector<128x64xf32>
    %60 = arith.mulf %55, %59 : vector<128x64xf32>
    %61 = vector.broadcast %41 : vector<1x64xf32> to vector<128x64xf32>
    %62 = arith.mulf %60, %61 : vector<128x64xf32>
    %63 = vector.broadcast %42 : vector<1x64xf32> to vector<128x64xf32>
    %64 = arith.addf %62, %63 : vector<128x64xf32>
    %c1 = arith.constant 1 : index
    %c0_21 = arith.constant 0 : index
    %c0_22 = arith.constant 0 : index
    %65 = vector.load %arg4[%c1, %c0_21, %c0_22] : memref<2x64x64xf32, #tpu.memory_space<vmem>>, vector<1x64x64xf32>
    %66 = vector.shape_cast %65 : vector<1x64x64xf32> to vector<64x64xf32>
    %cst_23 = arith.constant dense<0.000000e+00> : vector<128x64xf32>
    %67 = tpu.matmul %64, %66, %cst_23 {dimension_numbers = #tpu.dot_dimension_numbers<[1], [0], [0], [1], [0, 0, 1, 1], [], []>} : vector<128x64xf32>, vector<64x64xf32>, vector<128x64xf32> -> vector<128x64xf32>
    %68 = vector.extract_strided_slice %0 {offsets = [14, 0], sizes = [1, 64], strides = [1, 1]} : vector<17x64xf32> to vector<1x64xf32>
    %69 = vector.broadcast %68 : vector<1x64xf32> to vector<128x64xf32>
    %70 = arith.addf %67, %69 : vector<128x64xf32>
    %cst_24 = arith.constant 0.000000e+00 : f32
    %71 = vector.broadcast %cst_24 : f32 to vector<128x64xf32>
    %72 = arith.maximumf %70, %71 : vector<128x64xf32>
    %73 = vector.extract_strided_slice %0 {offsets = [15, 0], sizes = [1, 64], strides = [1, 1]} : vector<17x64xf32> to vector<1x64xf32>
    %74 = vector.extract_strided_slice %0 {offsets = [16, 0], sizes = [1, 64], strides = [1, 1]} : vector<17x64xf32> to vector<1x64xf32>
    %cst_25 = arith.constant dense<0.000000e+00> : vector<128xf32>
    %75 = vector.multi_reduction <add>, %72, %cst_25 [1] : vector<128x64xf32> to vector<128xf32>
    %76 = vector.shape_cast %75 : vector<128xf32> to vector<128x1xf32>
    %cst_26 = arith.constant 6.400000e+01 : f32
    %77 = vector.broadcast %cst_26 : f32 to vector<128x1xf32>
    %78 = arith.divf %76, %77 : vector<128x1xf32>
    %79 = vector.broadcast %78 : vector<128x1xf32> to vector<128x64xf32>
    %80 = arith.subf %72, %79 : vector<128x64xf32>
    %81 = arith.mulf %80, %80 : vector<128x64xf32>
    %cst_27 = arith.constant dense<0.000000e+00> : vector<128xf32>
    %82 = vector.multi_reduction <add>, %81, %cst_27 [1] : vector<128x64xf32> to vector<128xf32>
    %83 = vector.shape_cast %82 : vector<128xf32> to vector<128x1xf32>
    %cst_28 = arith.constant 6.400000e+01 : f32
    %84 = vector.broadcast %cst_28 : f32 to vector<128x1xf32>
    %85 = arith.divf %83, %84 : vector<128x1xf32>
    %86 = vector.broadcast %78 : vector<128x1xf32> to vector<128x64xf32>
    %87 = arith.subf %72, %86 : vector<128x64xf32>
    %cst_29 = arith.constant 9.99999974E-6 : f32
    %88 = vector.broadcast %cst_29 : f32 to vector<128x1xf32>
    %89 = arith.addf %85, %88 : vector<128x1xf32>
    %90 = math.rsqrt %89 : vector<128x1xf32>
    %91 = vector.broadcast %90 : vector<128x1xf32> to vector<128x64xf32>
    %92 = arith.mulf %87, %91 : vector<128x64xf32>
    %93 = vector.broadcast %73 : vector<1x64xf32> to vector<128x64xf32>
    %94 = arith.mulf %92, %93 : vector<128x64xf32>
    %95 = vector.broadcast %74 : vector<1x64xf32> to vector<128x64xf32>
    %96 = arith.addf %94, %95 : vector<128x64xf32>
    %c0_30 = arith.constant 0 : index
    %c0_31 = arith.constant 0 : index
    %97 = vector.load %arg2[%c0_30, %c0_31] : memref<128x64xf32, #tpu.memory_space<vmem>>, vector<128x64xf32>
    %c0_32 = arith.constant 0 : index
    %c0_33 = arith.constant 0 : index
    %c0_34 = arith.constant 0 : index
    %98 = vector.load %arg5[%c0_32, %c0_33, %c0_34] : memref<6x64x64xf32, #tpu.memory_space<vmem>>, vector<1x64x64xf32>
    %99 = vector.shape_cast %98 : vector<1x64x64xf32> to vector<64x64xf32>
    %cst_35 = arith.constant dense<0.000000e+00> : vector<128x64xf32>
    %100 = tpu.matmul %96, %99, %cst_35 {dimension_numbers = #tpu.dot_dimension_numbers<[1], [0], [0], [1], [0, 0, 1, 1], [], []>} : vector<128x64xf32>, vector<64x64xf32>, vector<128x64xf32> -> vector<128x64xf32>
    %101 = vector.extract_strided_slice %0 {offsets = [3, 0], sizes = [1, 64], strides = [1, 1]} : vector<17x64xf32> to vector<1x64xf32>
    %102 = vector.broadcast %101 : vector<1x64xf32> to vector<128x64xf32>
    %103 = arith.addf %100, %102 : vector<128x64xf32>
    %c1_36 = arith.constant 1 : index
    %c0_37 = arith.constant 0 : index
    %c0_38 = arith.constant 0 : index
    %104 = vector.load %arg5[%c1_36, %c0_37, %c0_38] : memref<6x64x64xf32, #tpu.memory_space<vmem>>, vector<1x64x64xf32>
    %105 = vector.shape_cast %104 : vector<1x64x64xf32> to vector<64x64xf32>
    %cst_39 = arith.constant dense<0.000000e+00> : vector<128x64xf32>
    %106 = tpu.matmul %96, %105, %cst_39 {dimension_numbers = #tpu.dot_dimension_numbers<[1], [0], [0], [1], [0, 0, 1, 1], [], []>} : vector<128x64xf32>, vector<64x64xf32>, vector<128x64xf32> -> vector<128x64xf32>
    %107 = vector.extract_strided_slice %0 {offsets = [4, 0], sizes = [1, 64], strides = [1, 1]} : vector<17x64xf32> to vector<1x64xf32>
    %108 = vector.broadcast %107 : vector<1x64xf32> to vector<128x64xf32>
    %109 = arith.addf %106, %108 : vector<128x64xf32>
    %c2 = arith.constant 2 : index
    %c0_40 = arith.constant 0 : index
    %c0_41 = arith.constant 0 : index
    %110 = vector.load %arg5[%c2, %c0_40, %c0_41] : memref<6x64x64xf32, #tpu.memory_space<vmem>>, vector<1x64x64xf32>
    %111 = vector.shape_cast %110 : vector<1x64x64xf32> to vector<64x64xf32>
    %cst_42 = arith.constant dense<0.000000e+00> : vector<128x64xf32>
    %112 = tpu.matmul %96, %111, %cst_42 {dimension_numbers = #tpu.dot_dimension_numbers<[1], [0], [0], [1], [0, 0, 1, 1], [], []>} : vector<128x64xf32>, vector<64x64xf32>, vector<128x64xf32> -> vector<128x64xf32>
    %113 = vector.extract_strided_slice %0 {offsets = [5, 0], sizes = [1, 64], strides = [1, 1]} : vector<17x64xf32> to vector<1x64xf32>
    %114 = vector.broadcast %113 : vector<1x64xf32> to vector<128x64xf32>
    %115 = arith.addf %112, %114 : vector<128x64xf32>
    %c3 = arith.constant 3 : index
    %c0_43 = arith.constant 0 : index
    %c0_44 = arith.constant 0 : index
    %116 = vector.load %arg5[%c3, %c0_43, %c0_44] : memref<6x64x64xf32, #tpu.memory_space<vmem>>, vector<1x64x64xf32>
    %117 = vector.shape_cast %116 : vector<1x64x64xf32> to vector<64x64xf32>
    %cst_45 = arith.constant dense<0.000000e+00> : vector<128x64xf32>
    %118 = tpu.matmul %97, %117, %cst_45 {dimension_numbers = #tpu.dot_dimension_numbers<[1], [0], [0], [1], [0, 0, 1, 1], [], []>} : vector<128x64xf32>, vector<64x64xf32>, vector<128x64xf32> -> vector<128x64xf32>
    %119 = vector.extract_strided_slice %0 {offsets = [6, 0], sizes = [1, 64], strides = [1, 1]} : vector<17x64xf32> to vector<1x64xf32>
    %120 = vector.broadcast %119 : vector<1x64xf32> to vector<128x64xf32>
    %121 = arith.addf %118, %120 : vector<128x64xf32>
    %c4 = arith.constant 4 : index
    %c0_46 = arith.constant 0 : index
    %c0_47 = arith.constant 0 : index
    %122 = vector.load %arg5[%c4, %c0_46, %c0_47] : memref<6x64x64xf32, #tpu.memory_space<vmem>>, vector<1x64x64xf32>
    %123 = vector.shape_cast %122 : vector<1x64x64xf32> to vector<64x64xf32>
    %cst_48 = arith.constant dense<0.000000e+00> : vector<128x64xf32>
    %124 = tpu.matmul %97, %123, %cst_48 {dimension_numbers = #tpu.dot_dimension_numbers<[1], [0], [0], [1], [0, 0, 1, 1], [], []>} : vector<128x64xf32>, vector<64x64xf32>, vector<128x64xf32> -> vector<128x64xf32>
    %125 = vector.extract_strided_slice %0 {offsets = [7, 0], sizes = [1, 64], strides = [1, 1]} : vector<17x64xf32> to vector<1x64xf32>
    %126 = vector.broadcast %125 : vector<1x64xf32> to vector<128x64xf32>
    %127 = arith.addf %124, %126 : vector<128x64xf32>
    %c5 = arith.constant 5 : index
    %c0_49 = arith.constant 0 : index
    %c0_50 = arith.constant 0 : index
    %128 = vector.load %arg5[%c5, %c0_49, %c0_50] : memref<6x64x64xf32, #tpu.memory_space<vmem>>, vector<1x64x64xf32>
    %129 = vector.shape_cast %128 : vector<1x64x64xf32> to vector<64x64xf32>
    %cst_51 = arith.constant dense<0.000000e+00> : vector<128x64xf32>
    %130 = tpu.matmul %97, %129, %cst_51 {dimension_numbers = #tpu.dot_dimension_numbers<[1], [0], [0], [1], [0, 0, 1, 1], [], []>} : vector<128x64xf32>, vector<64x64xf32>, vector<128x64xf32> -> vector<128x64xf32>
    %131 = vector.extract_strided_slice %0 {offsets = [8, 0], sizes = [1, 64], strides = [1, 1]} : vector<17x64xf32> to vector<1x64xf32>
    %132 = vector.broadcast %131 : vector<1x64xf32> to vector<128x64xf32>
    %133 = arith.addf %130, %132 : vector<128x64xf32>
    %134 = arith.addf %103, %121 : vector<128x64xf32>
    %135 = arith.negf %134 : vector<128x64xf32>
    %136 = math.exp %135 : vector<128x64xf32>
    %cst_52 = arith.constant 1.000000e+00 : f32
    %137 = vector.broadcast %cst_52 : f32 to vector<128x64xf32>
    %138 = arith.addf %137, %136 : vector<128x64xf32>
    %139 = arith.divf %137, %138 : vector<128x64xf32>
    %140 = arith.addf %109, %127 : vector<128x64xf32>
    %141 = arith.negf %140 : vector<128x64xf32>
    %142 = math.exp %141 : vector<128x64xf32>
    %cst_53 = arith.constant 1.000000e+00 : f32
    %143 = vector.broadcast %cst_53 : f32 to vector<128x64xf32>
    %144 = arith.addf %143, %142 : vector<128x64xf32>
    %145 = arith.divf %143, %144 : vector<128x64xf32>
    %146 = arith.mulf %139, %133 : vector<128x64xf32>
    %147 = arith.addf %115, %146 : vector<128x64xf32>
    %148 = math.tanh %147 : vector<128x64xf32>
    %cst_54 = arith.constant 1.000000e+00 : f32
    %149 = vector.broadcast %cst_54 : f32 to vector<128x64xf32>
    %150 = arith.subf %149, %145 : vector<128x64xf32>
    %151 = arith.mulf %150, %148 : vector<128x64xf32>
    %152 = arith.mulf %145, %97 : vector<128x64xf32>
    %153 = arith.addf %151, %152 : vector<128x64xf32>
    %154 = vector.extract_strided_slice %0 {offsets = [9, 0], sizes = [1, 64], strides = [1, 1]} : vector<17x64xf32> to vector<1x64xf32>
    %155 = vector.extract_strided_slice %0 {offsets = [10, 0], sizes = [1, 64], strides = [1, 1]} : vector<17x64xf32> to vector<1x64xf32>
    %cst_55 = arith.constant dense<0.000000e+00> : vector<128xf32>
    %156 = vector.multi_reduction <add>, %153, %cst_55 [1] : vector<128x64xf32> to vector<128xf32>
    %157 = vector.shape_cast %156 : vector<128xf32> to vector<128x1xf32>
    %cst_56 = arith.constant 6.400000e+01 : f32
    %158 = vector.broadcast %cst_56 : f32 to vector<128x1xf32>
    %159 = arith.divf %157, %158 : vector<128x1xf32>
    %160 = vector.broadcast %159 : vector<128x1xf32> to vector<128x64xf32>
    %161 = arith.subf %153, %160 : vector<128x64xf32>
    %162 = arith.mulf %161, %161 : vector<128x64xf32>
    %cst_57 = arith.constant dense<0.000000e+00> : vector<128xf32>
    %163 = vector.multi_reduction <add>, %162, %cst_57 [1] : vector<128x64xf32> to vector<128xf32>
    %164 = vector.shape_cast %163 : vector<128xf32> to vector<128x1xf32>
    %cst_58 = arith.constant 6.400000e+01 : f32
    %165 = vector.broadcast %cst_58 : f32 to vector<128x1xf32>
    %166 = arith.divf %164, %165 : vector<128x1xf32>
    %167 = vector.broadcast %159 : vector<128x1xf32> to vector<128x64xf32>
    %168 = arith.subf %153, %167 : vector<128x64xf32>
    %cst_59 = arith.constant 9.99999974E-6 : f32
    %169 = vector.broadcast %cst_59 : f32 to vector<128x1xf32>
    %170 = arith.addf %166, %169 : vector<128x1xf32>
    %171 = math.rsqrt %170 : vector<128x1xf32>
    %172 = vector.broadcast %171 : vector<128x1xf32> to vector<128x64xf32>
    %173 = arith.mulf %168, %172 : vector<128x64xf32>
    %174 = vector.broadcast %154 : vector<1x64xf32> to vector<128x64xf32>
    %175 = arith.mulf %173, %174 : vector<128x64xf32>
    %176 = vector.broadcast %155 : vector<1x64xf32> to vector<128x64xf32>
    %177 = arith.addf %175, %176 : vector<128x64xf32>
    %c0_60 = arith.constant 0 : index
    %c0_61 = arith.constant 0 : index
    %178 = vector.load %arg6[%c0_60, %c0_61] : memref<64x128xf32, #tpu.memory_space<vmem>>, vector<64x128xf32>
    %cst_62 = arith.constant dense<0.000000e+00> : vector<128x128xf32>
    %179 = tpu.matmul %177, %178, %cst_62 {dimension_numbers = #tpu.dot_dimension_numbers<[1], [0], [0], [1], [0, 0, 1, 1], [], []>} : vector<128x64xf32>, vector<64x128xf32>, vector<128x128xf32> -> vector<128x128xf32>
    %c0_63 = arith.constant 0 : index
    %c0_64 = arith.constant 0 : index
    %180 = vector.load %arg8[%c0_63, %c0_64] : memref<1x128xf32, #tpu.memory_space<vmem>>, vector<1x128xf32>
    %181 = vector.broadcast %180 : vector<1x128xf32> to vector<128x128xf32>
    %182 = arith.addf %179, %181 : vector<128x128xf32>
    %c0_65 = arith.constant 0 : index
    %c0_66 = arith.constant 0 : index
    %183 = vector.load %arg9[%c0_65, %c0_66] : memref<128x128xf32, #tpu.memory_space<vmem>>, vector<128x128xf32>
    tpu.vector_store %arg9[%c0_65, %c0_66], %182 {strides = array<i32>} : memref<128x128xf32, #tpu.memory_space<vmem>>, vector<128x128xf32>,
    %c0_67 = arith.constant 0 : index
    %c0_68 = arith.constant 0 : index
    %184 = vector.load %arg10[%c0_67, %c0_68] : memref<128x64xf32, #tpu.memory_space<vmem>>, vector<128x64xf32>
    tpu.vector_store %arg10[%c0_67, %c0_68], %153 {strides = array<i32>} : memref<128x64xf32, #tpu.memory_space<vmem>>, vector<128x64xf32>,
    return
  }
  func.func @transform_0(%arg0: i32) -> (i32, i32) {
    %c0_i32 = arith.constant 0 : i32
    %c0_i32_0 = arith.constant 0 : i32
    return %arg0, %c0_i32 : i32, i32
  }
  func.func @transform_1(%arg0: i32) -> (i32, i32) {
    %c0_i32 = arith.constant 0 : i32
    %c0_i32_0 = arith.constant 0 : i32
    return %arg0, %c0_i32 : i32, i32
  }
  func.func @transform_2(%arg0: i32) -> (i32, i32) {
    %c0_i32 = arith.constant 0 : i32
    %c0_i32_0 = arith.constant 0 : i32
    %c0_i32_1 = arith.constant 0 : i32
    return %c0_i32, %c0_i32_0 : i32, i32
  }
  func.func @transform_3(%arg0: i32) -> (i32, i32, i32) {
    %c0_i32 = arith.constant 0 : i32
    %c0_i32_0 = arith.constant 0 : i32
    %c0_i32_1 = arith.constant 0 : i32
    %c0_i32_2 = arith.constant 0 : i32
    return %c0_i32, %c0_i32_0, %c0_i32_1 : i32, i32, i32
  }
  func.func @transform_4(%arg0: i32) -> (i32, i32, i32) {
    %c0_i32 = arith.constant 0 : i32
    %c0_i32_0 = arith.constant 0 : i32
    %c0_i32_1 = arith.constant 0 : i32
    %c0_i32_2 = arith.constant 0 : i32
    return %c0_i32, %c0_i32_0, %c0_i32_1 : i32, i32, i32
  }
  func.func @transform_5(%arg0: i32) -> (i32, i32) {
    %c0_i32 = arith.constant 0 : i32
    %c0_i32_0 = arith.constant 0 : i32
    %c0_i32_1 = arith.constant 0 : i32
    return %c0_i32, %c0_i32_0 : i32, i32
  }
  func.func @transform_6(%arg0: i32) -> (i32, i32) {
    %c0_i32 = arith.constant 0 : i32
    %c0_i32_0 = arith.constant 0 : i32
    %c0_i32_1 = arith.constant 0 : i32
    return %c0_i32, %c0_i32_0 : i32, i32
  }
  func.func @transform_7(%arg0: i32) -> (i32, i32) {
    %c0_i32 = arith.constant 0 : i32
    %c0_i32_0 = arith.constant 0 : i32
    %c0_i32_1 = arith.constant 0 : i32
    return %c0_i32, %c0_i32_0 : i32, i32
  }
  func.func @transform_8(%arg0: i32) -> (i32, i32) {
    %c0_i32 = arith.constant 0 : i32
    %c0_i32_0 = arith.constant 0 : i32
    return %arg0, %c0_i32 : i32, i32
  }
  func.func @transform_9(%arg0: i32) -> (i32, i32) {
    %c0_i32 = arith.constant 0 : i32
    %c0_i32_0 = arith.constant 0 : i32
    return %arg0, %c0_i32 : i32, i32
  }
}

</mosaic_0001>

<llo_original>
// kernel: tpu_custom_call.1
$region0: #{tpu_custom_call.1}
  #allocation0 [shape = 'u32[]', space=smem, size = 0x4, offset = 0x4, fixed_abs, tag = 'smem constant byte address 0x4 - core index']
  #allocation1 [shape = 'u32[144,128]{1,0:T(1,128)}', space=vmem, size = 0x12000, scoped, tag = 'internal scratch']
  %s0 = inlined_call_operand.vmem [shape: f32[256,80], index: 0, kind: input, shape index: {}]
  %s1 = inlined_call_operand.vmem [shape: f32[256,64], index: 1, kind: input, shape index: {}, may-alias: {1,9}]
  %s2 = inlined_call_operand.vmem [shape: f32[80,64], index: 2, kind: input, shape index: {}]
  %s3 = inlined_call_operand.vmem [shape: f32[2,64,64], index: 3, kind: input, shape index: {}]
  %s4 = inlined_call_operand.vmem [shape: f32[6,64,64], index: 4, kind: input, shape index: {}]
  %s5 = inlined_call_operand.vmem [shape: f32[64,128], index: 5, kind: input, shape index: {}]
  %s6 = inlined_call_operand.vmem [shape: f32[17,64], index: 6, kind: input, shape index: {}]
  %s7 = inlined_call_operand.vmem [shape: f32[1,128], index: 7, kind: input, shape index: {}]
  %s8 = inlined_call_operand.hbm [shape: f32[256,128], index: 8, kind: output, shape index: {0}]
  %s9 = inlined_call_operand.vmem [shape: f32[256,64], index: 9, kind: output, shape index: {1}, may-alias: {1,9}]
  %10 = xla_tuple %s8, %s9
  %s11 = sld [smem:[#allocation0]]
  $region73: #{tpu_custom_call.1} parent=0
    _
  %s13 = ssub.s32 1, %s11
  %s14 = scalar_select 0, %s13, %s11
  $region1: #{tpu_custom_call.1} parent=0
    #allocation2 [shape = 'u8[131072]{0}', space=vmem, size = 0x20000, scoped, tag = 'output window, operand 0']
    #allocation3 [shape = 's32[2]{0}', space=sflag, size = 0x8, scoped, tag = 'scoped memory for tpu_custom_call.1']
    %15 = vsyncpa [#allocation3], 0
    %s16 = scalar_lea.sflag [#allocation3], 1
    %17 = vsyncpa %s16, 0
    loop: start=0, step=1, limit=4
    $region2: #{tpu_custom_call.1} parent=1 // loop_pre_header
      _
    $region3: #{tpu_custom_call.1} parent=1 // loop_header
      %s19 = sphi 0, %s23
      %p20 = scmp.ge.s32.totalorder %s19, 4
      %s29 = sphi 0, %s31
      %s32 = sphi 0, %s29
      %s33 = sphi 0, %s32
      %s49 = sphi 0, %s33
      %s55 = sphi 0, %s57
      %s58 = sphi 0, %s55
      %s59 = sphi 0, %s58
      %s75 = sphi 0, %s59
      %s79 = sphi 0, %s79
      %s81 = sphi 0, %s79
      %s82 = sphi 0, %s81
      %s96 = sphi 0, %s82
      %s100 = sphi 0, %s100
      %s102 = sphi 0, %s100
      %s103 = sphi 0, %s102
      %s117 = sphi 0, %s103
      %s121 = sphi 0, %s121
      %s123 = sphi 0, %s121
      %s124 = sphi 0, %s123
      %s138 = sphi 0, %s124
      %s142 = sphi 0, %s142
      %s144 = sphi 0, %s142
      %s145 = sphi 0, %s144
      %s159 = sphi 0, %s145
      %s163 = sphi 0, %s163
      %s165 = sphi 0, %s163
      %s166 = sphi 0, %s165
      %s180 = sphi 0, %s166
      %s184 = sphi 0, %s184
      %s186 = sphi 0, %s184
      %s187 = sphi 0, %s186
      %s201 = sphi 0, %s187
      %s207 = sphi 0, %s209
      %s210 = sphi 0, %s207
      %s211 = sphi 0, %s210
      %s227 = sphi 0, %s211
      %s233 = sphi 0, %s235
      %s236 = sphi 0, %s233
      %s237 = sphi 0, %s236
      %s253 = sphi 0, %s237
    $region4: #{tpu_custom_call.1} parent=1 // loop_header_branch
      %22 = sbr.rel (%p20) target = $region8
    $region5: #{tpu_custom_call.1} parent=1 // loop_body
      %s24 = ssub.s32 %s19, 1
      %s25 = ssub.s32 %s19, 2
      %s26 = sadd.s32 %s19, 1
      %s27 = ssub.s32 %s19, %s26
      %p28 = scmp.eq.s32.totalorder %s27, 0
      %s30 = sadd.s32 %s29, 1
      %s31 = scalar_select %p28, %s29, %s30
      %p34 = pneg %p28
      %p35 = scmp.eq.s32.totalorder %s19, 1
      %p36 = por %p34, %p35
      %p37 = scmp.ne.s32.totalorder %s29, %s32
      %p38 = scmp.eq.s32.totalorder %s19, 0
      %p39 = por %p37, %p38
      %p40 = scmp.ne.s32.totalorder %s29, %s32
      %p41 = scmp.eq.s32.totalorder %s24, 1
      %p42 = por %p40, %p41
      %p43 = scmp.ne.s32.totalorder %s32, %s33
      %p44 = scmp.eq.s32.totalorder %s24, 0
      %p45 = por %p43, %p44
      %p46 = scmp.ne.s32.totalorder %s32, %s33
      %p47 = scmp.eq.s32.totalorder %s25, 1
      %p48 = por %p46, %p47
      %p50 = scmp.ne.s32.totalorder %s33, %s49
      %p51 = scmp.eq.s32.totalorder %s25, 0
      %p52 = por %p50, %p51
      %s53 = ssub.s32 %s19, %s26
      %p54 = scmp.eq.s32.totalorder %s53, 0
      %s56 = sadd.s32 %s55, 1
      %s57 = scalar_select %p54, %s55, %s56
      %p60 = pneg %p54
      %p61 = scmp.eq.s32.totalorder %s19, 1
      %p62 = por %p60, %p61
      %p63 = scmp.ne.s32.totalorder %s55, %s58
      %p64 = scmp.eq.s32.totalorder %s19, 0
      %p65 = por %p63, %p64
      %p66 = scmp.ne.s32.totalorder %s55, %s58
      %p67 = scmp.eq.s32.totalorder %s24, 1
      %p68 = por %p66, %p67
      %p69 = scmp.ne.s32.totalorder %s58, %s59
      %p70 = scmp.eq.s32.totalorder %s24, 0
      %p71 = por %p69, %p70
      %p72 = scmp.ne.s32.totalorder %s58, %s59
      %p73 = scmp.eq.s32.totalorder %s25, 1
      %p74 = por %p72, %p73
      %p76 = scmp.ne.s32.totalorder %s59, %s75
      %p77 = scmp.eq.s32.totalorder %s25, 0
      %p78 = por %p76, %p77
      %s80 = sadd.s32 %s79, 1
      %p83 = scmp.eq.s32.totalorder %s19, 1
      %p84 = scmp.ne.s32.totalorder %s79, %s81
      %p85 = scmp.eq.s32.totalorder %s19, 0
      %p86 = por %p84, %p85
      %p87 = scmp.ne.s32.totalorder %s79, %s81
      %p88 = scmp.eq.s32.totalorder %s24, 1
      %p89 = por %p87, %p88
      %p90 = scmp.ne.s32.totalorder %s81, %s82
      %p91 = scmp.eq.s32.totalorder %s24, 0
      %p92 = por %p90, %p91
      %p93 = scmp.ne.s32.totalorder %s81, %s82
      %p94 = scmp.eq.s32.totalorder %s25, 1
      %p95 = por %p93, %p94
      %p97 = scmp.ne.s32.totalorder %s82, %s96
      %p98 = scmp.eq.s32.totalorder %s25, 0
      %p99 = por %p97, %p98
      %s101 = sadd.s32 %s100, 1
      %p104 = scmp.eq.s32.totalorder %s19, 1
      %p105 = scmp.ne.s32.totalorder %s100, %s102
      %p106 = scmp.eq.s32.totalorder %s19, 0
      %p107 = por %p105, %p106
      %p108 = scmp.ne.s32.totalorder %s100, %s102
      %p109 = scmp.eq.s32.totalorder %s24, 1
      %p110 = por %p108, %p109
      %p111 = scmp.ne.s32.totalorder %s102, %s103
      %p112 = scmp.eq.s32.totalorder %s24, 0
      %p113 = por %p111, %p112
      %p114 = scmp.ne.s32.totalorder %s102, %s103
      %p115 = scmp.eq.s32.totalorder %s25, 1
      %p116 = por %p114, %p115
      %p118 = scmp.ne.s32.totalorder %s103, %s117
      %p119 = scmp.eq.s32.totalorder %s25, 0
      %p120 = por %p118, %p119
      %s122 = sadd.s32 %s121, 1
      %p125 = scmp.eq.s32.totalorder %s19, 1
      %p126 = scmp.ne.s32.totalorder %s121, %s123
      %p127 = scmp.eq.s32.totalorder %s19, 0
      %p128 = por %p126, %p127
      %p129 = scmp.ne.s32.totalorder %s121, %s123
      %p130 = scmp.eq.s32.totalorder %s24, 1
      %p131 = por %p129, %p130
      %p132 = scmp.ne.s32.totalorder %s123, %s124
      %p133 = scmp.eq.s32.totalorder %s24, 0
      %p134 = por %p132, %p133
      %p135 = scmp.ne.s32.totalorder %s123, %s124
      %p136 = scmp.eq.s32.totalorder %s25, 1
      %p137 = por %p135, %p136
      %p139 = scmp.ne.s32.totalorder %s124, %s138
      %p140 = scmp.eq.s32.totalorder %s25, 0
      %p141 = por %p139, %p140
      %s143 = sadd.s32 %s142, 1
      %p146 = scmp.eq.s32.totalorder %s19, 1
      %p147 = scmp.ne.s32.totalorder %s142, %s144
      %p148 = scmp.eq.s32.totalorder %s19, 0
      %p149 = por %p147, %p148
      %p150 = scmp.ne.s32.totalorder %s142, %s144
      %p151 = scmp.eq.s32.totalorder %s24, 1
      %p152 = por %p150, %p151
      %p153 = scmp.ne.s32.totalorder %s144, %s145
      %p154 = scmp.eq.s32.totalorder %s24, 0
      %p155 = por %p153, %p154
      %p156 = scmp.ne.s32.totalorder %s144, %s145
      %p157 = scmp.eq.s32.totalorder %s25, 1
      %p158 = por %p156, %p157
      %p160 = scmp.ne.s32.totalorder %s145, %s159
      %p161 = scmp.eq.s32.totalorder %s25, 0
      %p162 = por %p160, %p161
      %s164 = sadd.s32 %s163, 1
      %p167 = scmp.eq.s32.totalorder %s19, 1
      %p168 = scmp.ne.s32.totalorder %s163, %s165
      %p169 = scmp.eq.s32.totalorder %s19, 0
      %p170 = por %p168, %p169
      %p171 = scmp.ne.s32.totalorder %s163, %s165
      %p172 = scmp.eq.s32.totalorder %s24, 1
      %p173 = por %p171, %p172
      %p174 = scmp.ne.s32.totalorder %s165, %s166
      %p175 = scmp.eq.s32.totalorder %s24, 0
      %p176 = por %p174, %p175
      %p177 = scmp.ne.s32.totalorder %s165, %s166
      %p178 = scmp.eq.s32.totalorder %s25, 1
      %p179 = por %p177, %p178
      %p181 = scmp.ne.s32.totalorder %s166, %s180
      %p182 = scmp.eq.s32.totalorder %s25, 0
      %p183 = por %p181, %p182
      %s185 = sadd.s32 %s184, 1
      %p188 = scmp.eq.s32.totalorder %s19, 1
      %p189 = scmp.ne.s32.totalorder %s184, %s186
      %p190 = scmp.eq.s32.totalorder %s19, 0
      %p191 = por %p189, %p190
      %p192 = scmp.ne.s32.totalorder %s184, %s186
      %p193 = scmp.eq.s32.totalorder %s24, 1
      %p194 = por %p192, %p193
      %p195 = scmp.ne.s32.totalorder %s186, %s187
      %p196 = scmp.eq.s32.totalorder %s24, 0
      %p197 = por %p195, %p196
      %p198 = scmp.ne.s32.totalorder %s186, %s187
      %p199 = scmp.eq.s32.totalorder %s25, 1
      %p200 = por %p198, %p199
      %p202 = scmp.ne.s32.totalorder %s187, %s201
      %p203 = scmp.eq.s32.totalorder %s25, 0
      %p204 = por %p202, %p203
      %s205 = ssub.s32 %s19, %s26
      %p206 = scmp.eq.s32.totalorder %s205, 0
      %s208 = sadd.s32 %s207, 1
      %s209 = scalar_select %p206, %s207, %s208
      %p212 = pneg %p206
      %p213 = scmp.eq.s32.totalorder %s19, 1
      %p214 = por %p212, %p213
      %p215 = scmp.ne.s32.totalorder %s207, %s210
      %p216 = scmp.eq.s32.totalorder %s19, 0
      %p217 = por %p215, %p216
      %p218 = scmp.ne.s32.totalorder %s207, %s210
      %p219 = scmp.eq.s32.totalorder %s24, 1
      %p220 = por %p218, %p219
      %p221 = scmp.ne.s32.totalorder %s210, %s211
      %p222 = scmp.eq.s32.totalorder %s24, 0
      %p223 = por %p221, %p222
      %p224 = scmp.ne.s32.totalorder %s210, %s211
      %p225 = scmp.eq.s32.totalorder %s25, 1
      %p226 = por %p224, %p225
      %p228 = scmp.ne.s32.totalorder %s211, %s227
      %p229 = scmp.eq.s32.totalorder %s25, 0
      %p230 = por %p228, %p229
      %s231 = ssub.s32 %s19, %s26
      %p232 = scmp.eq.s32.totalorder %s231, 0
      %s234 = sadd.s32 %s233, 1
      %s235 = scalar_select %p232, %s233, %s234
      %p238 = pneg %p232
      %p239 = scmp.eq.s32.totalorder %s19, 1
      %p240 = por %p238, %p239
      %p241 = scmp.ne.s32.totalorder %s233, %s236
      %p242 = scmp.eq.s32.totalorder %s19, 0
      %p243 = por %p241, %p242
      %p244 = scmp.ne.s32.totalorder %s233, %s236
      %p245 = scmp.eq.s32.totalorder %s24, 1
      %p246 = por %p244, %p245
      %p247 = scmp.ne.s32.totalorder %s236, %s237
      %p248 = scmp.eq.s32.totalorder %s24, 0
      %p249 = por %p247, %p248
      %p250 = scmp.ne.s32.totalorder %s236, %s237
      %p251 = scmp.eq.s32.totalorder %s25, 1
      %p252 = por %p250, %p251
      %p254 = scmp.ne.s32.totalorder %s237, %s253
      %p255 = scmp.eq.s32.totalorder %s25, 0
      %p256 = por %p254, %p255
      %p257 = scmp.le.s32.totalorder 1, %s19
      %p258 = scmp.lt.s32.totalorder %s19, 3
      %p259 = pnand %p257, %p258
      %p260 = pneg %p259
      // Predicated region
      $region9: #{tpu_custom_call.1} parent=5 // pred_check
        _
      $region10: #{tpu_custom_call.1} parent=5 // pred_check_branch
        %262 = sbr.rel (%p259) target = $region12
      $region11: #{tpu_custom_call.1} parent=5 // pred_region
        %s263 = ssub.s32 %s19, 1
        // Predicated region
        $region13: #{tpu_custom_call.1} parent=11 // pred_check
          %p264 = pneg %p92
        $region14: #{tpu_custom_call.1} parent=11 // pred_check_branch
          %266 = sbr.rel (%p264) target = $region16
        $region15: #{tpu_custom_call.1} parent=11 // pred_region
          _
        $region16: #{tpu_custom_call.1} parent=11 // pred_fallthru
          _
        // Predicated region
        $region17: #{tpu_custom_call.1} parent=11 // pred_check
          %p267 = pneg %p113
        $region18: #{tpu_custom_call.1} parent=11 // pred_check_branch
          %269 = sbr.rel (%p267) target = $region20
        $region19: #{tpu_custom_call.1} parent=11 // pred_region
          _
        $region20: #{tpu_custom_call.1} parent=11 // pred_fallthru
          _
        // Predicated region
        $region21: #{tpu_custom_call.1} parent=11 // pred_check
          %p270 = pneg %p134
        $region22: #{tpu_custom_call.1} parent=11 // pred_check_branch
          %272 = sbr.rel (%p270) target = $region24
        $region23: #{tpu_custom_call.1} parent=11 // pred_region
          _
        $region24: #{tpu_custom_call.1} parent=11 // pred_fallthru
          _
        // Predicated region
        $region25: #{tpu_custom_call.1} parent=11 // pred_check
          %p273 = pneg %p155
        $region26: #{tpu_custom_call.1} parent=11 // pred_check_branch
          %275 = sbr.rel (%p273) target = $region28
        $region27: #{tpu_custom_call.1} parent=11 // pred_region
          _
        $region28: #{tpu_custom_call.1} parent=11 // pred_fallthru
          _
        // Predicated region
        $region29: #{tpu_custom_call.1} parent=11 // pred_check
          %p276 = pneg %p176
        $region30: #{tpu_custom_call.1} parent=11 // pred_check_branch
          %278 = sbr.rel (%p276) target = $region32
        $region31: #{tpu_custom_call.1} parent=11 // pred_region
          _
        $region32: #{tpu_custom_call.1} parent=11 // pred_fallthru
          _
        // Predicated region
        $region33: #{tpu_custom_call.1} parent=11 // pred_check
          %p279 = pneg %p197
        $region34: #{tpu_custom_call.1} parent=11 // pred_check_branch
          %281 = sbr.rel (%p279) target = $region36
        $region35: #{tpu_custom_call.1} parent=11 // pred_region
          _
        $region36: #{tpu_custom_call.1} parent=11 // pred_fallthru
          _
      $region12: #{tpu_custom_call.1} parent=5 // pred_fallthru
        _
      %p282 = scmp.lt.s32.totalorder %s19, 2
      // Predicated region
      $region37: #{tpu_custom_call.1} parent=5 // pred_check
        %p283 = pneg %p282
      $region38: #{tpu_custom_call.1} parent=5 // pred_check_branch
        %285 = sbr.rel (%p283) target = $region40
      $region39: #{tpu_custom_call.1} parent=5 // pred_region
        // Predicated region
        $region41: #{tpu_custom_call.1} parent=39 // pred_check
          %p286 = pneg %p39
        $region42: #{tpu_custom_call.1} parent=39 // pred_check_branch
          %288 = sbr.rel (%p286) target = $region44
        $region43: #{tpu_custom_call.1} parent=39 // pred_region
          %s289 = smul.u32 16, %s19
          %p290 = scmp.lt.s32.totalorder %s289, 31
          %s291 = scalar_select %p290, %s289, 31
          %s292 = smul.addr %s291, 8
          %s293 = scalar_lea.vmem %s0, %s292
          %s294 = smul.u32 16, %s19
        $region44: #{tpu_custom_call.1} parent=39 // pred_fallthru
          _
        // Predicated region
        $region45: #{tpu_custom_call.1} parent=39 // pred_check
          %p295 = pneg %p65
        $region46: #{tpu_custom_call.1} parent=39 // pred_check_branch
          %297 = sbr.rel (%p295) target = $region48
        $region47: #{tpu_custom_call.1} parent=39 // pred_region
          %s298 = smul.u32 16, %s19
          %p299 = scmp.lt.s32.totalorder %s298, 31
          %s300 = scalar_select %p299, %s298, 31
          %s301 = smul.addr %s300, 8
          %s302 = scalar_lea.vmem %s1, %s301
          %s303 = smul.u32 16, %s19
        $region48: #{tpu_custom_call.1} parent=39 // pred_fallthru
          _
      $region40: #{tpu_custom_call.1} parent=5 // pred_fallthru
        _
      %p304 = scmp.le.s32.totalorder 1, %s19
      %p305 = scmp.lt.s32.totalorder %s19, 3
      %p306 = pnand %p304, %p305
      %p307 = pneg %p306
      // Predicated region
      $region49: #{tpu_custom_call.1} parent=5 // pred_check
        _
      $region50: #{tpu_custom_call.1} parent=5 // pred_check_branch
        %309 = sbr.rel (%p306) target = $region52
      $region51: #{tpu_custom_call.1} parent=5 // pred_region
        %s310 = ssub.s32 %s19, 1
        %s311 = smul.u32 16, %s24
        %p312 = scmp.lt.s32.totalorder %s311, 31
        %s313 = scalar_select %p312, %s311, 31
        %s314 = smul.addr %s313, 8
        %s315 = scalar_lea.vmem %s0, %s314
        %p316 = pneg %p45
        %p317 = pneg %p42
        %s318 = smul.u32 16, %s24
        %p319 = scmp.lt.s32.totalorder %s318, 31
        %s320 = scalar_select %p319, %s318, 31
        %s321 = smul.addr %s320, 8
        %s322 = scalar_lea.vmem %s1, %s321
        %p323 = pneg %p71
        %p324 = pneg %p68
        %p325 = pneg %p92
        %p326 = pneg %p89
        %p327 = pneg %p113
        %p328 = pneg %p110
        %p329 = pneg %p134
        %p330 = pneg %p131
        %p331 = pneg %p155
        %p332 = pneg %p152
        %p333 = pneg %p176
        %p334 = pneg %p173
        %p335 = pneg %p197
        %p336 = pneg %p194
        %p337 = pneg %p223
        %p338 = pneg %p220
        %s339 = sand.u32 %s210, 1
        %s340 = scalar_lea.sflag [#allocation3], %s339
        %s341 = sand.u32 %s210, 1
        %s342 = smul.addr %s341, 128
        %s343 = scalar_lea.vmem [#allocation2], %s342
        %p344 = pneg %p249
        %p345 = pneg %p246
        %s346 = smul.u32 16, %s24
        %p347 = scmp.lt.s32.totalorder %s346, 31
        %s348 = scalar_select %p347, %s346, 31
        %s349 = smul.addr %s348, 8
        %s350 = scalar_lea.vmem %s9, %s349
        %s351 = smul.u32 16, %s24
        %p352 = scmp.lt.s32.totalorder %s351, 31
        %s353 = scalar_select %p352, %s351, 31
        %s354 = smul.addr %s353, 8
        %s355 = scalar_lea.vmem %s0, %s354
        %s356 = smul.u32 16, %s24
        %s357 = smul.u32 16, %s24
        %p358 = scmp.lt.s32.totalorder %s357, 31
        %s359 = scalar_select %p358, %s357, 31
        %s360 = smul.addr %s359, 8
        %s361 = scalar_lea.vmem %s1, %s360
        %s362 = smul.u32 16, %s24
        %s363 = smul.u32 16, %s24
        %s364 = smul.u32 16, %s24
        %p365 = scmp.lt.s32.totalorder %s364, 31
        %s366 = scalar_select %p365, %s364, 31
        %s367 = smul.addr %s366, 8
        %s368 = scalar_lea.vmem %s9, %s367
        %s369 = smul.u32 16, %s24
        %v370 = vld [vmem:[%s6] sm:$0xff]
        %v371 = vld [vmem:[%s6 + $0x8] sm:$0xff]
        %v372 = vld [vmem:[%s6 + $0x10] sm:$0x1]
        %v373 = vld [vmem:[%s355] sm:$0xff]
        %v374 = vld [vmem:[%s355 + $0x8] sm:$0xff]
        %v375 = vld [vmem:[%s355 + $0x10] sm:$0xff]
        %v376 = vld [vmem:[%s355 + $0x18] sm:$0xff]
        %v377 = vld [vmem:[%s355 + $0x20] sm:$0xff]
        %v378 = vld [vmem:[%s355 + $0x28] sm:$0xff]
        %v379 = vld [vmem:[%s355 + $0x30] sm:$0xff]
        %v380 = vld [vmem:[%s355 + $0x38] sm:$0xff]
        %v381 = vld [vmem:[%s355 + $0x40] sm:$0xff]
        %v382 = vld [vmem:[%s355 + $0x48] sm:$0xff]
        %v383 = vld [vmem:[%s355 + $0x50] sm:$0xff]
        %v384 = vld [vmem:[%s355 + $0x58] sm:$0xff]
        %v385 = vld [vmem:[%s355 + $0x60] sm:$0xff]
        %v386 = vld [vmem:[%s355 + $0x68] sm:$0xff]
        %v387 = vld [vmem:[%s355 + $0x70] sm:$0xff]
        %v388 = vld [vmem:[%s355 + $0x78] sm:$0xff]
        %v389 = vld [vmem:[%s2] sm:$0xff]
        %v390 = vld [vmem:[%s2 + $0x8] sm:$0xff]
        %v391 = vld [vmem:[%s2 + $0x10] sm:$0xff]
        %v392 = vld [vmem:[%s2 + $0x18] sm:$0xff]
        %v393 = vld [vmem:[%s2 + $0x20] sm:$0xff]
        %v394 = vld [vmem:[%s2 + $0x28] sm:$0xff]
        %v395 = vld [vmem:[%s2 + $0x30] sm:$0xff]
        %v396 = vld [vmem:[%s2 + $0x38] sm:$0xff]
        %v397 = vld [vmem:[%s2 + $0x40] sm:$0xff]
        %v398 = vld [vmem:[%s2 + $0x48] sm:$0xff]
        %v399 = vlaneseq
        %v400 = vshrl.u32 %v399, 7
        %v401 = vsub.s32 0, %v400
        %v402 = vrot.slane %v370, %v401
        %vm403 = vcmask 654336
        %v405 = vsel %vm403, %v373, 0
        %v408 = vsel %vm403, %v374, 0
        %v411 = vsel %vm403, %v375, 0
        %v414 = vsel %vm403, %v376, 0
        %v417 = vsel %vm403, %v377, 0
        %v420 = vsel %vm403, %v378, 0
        %v423 = vsel %vm403, %v379, 0
        %v426 = vsel %vm403, %v380, 0
        %v429 = vsel %vm403, %v381, 0
        %v432 = vsel %vm403, %v382, 0
        %v435 = vsel %vm403, %v383, 0
        %v438 = vsel %vm403, %v384, 0
        %v441 = vsel %vm403, %v385, 0
        %v444 = vsel %vm403, %v386, 0
        %v447 = vsel %vm403, %v387, 0
        %v450 = vsel %vm403, %v388, 0
        %452 = vmatprep.subr.mxu0 0.0
        %453 = vmatpush1.msra.mxu0 0.0
        %454 = vmatprep.subr.mxu0 0.0
        %455 = vmatpush1.msra.mxu0 0.0
        %456 = vmatprep.subr.mxu0 0.0
        %457 = vmatpush1.msra.mxu0 0.0
        %458 = vmatprep.subr.mxu0 0.0
        %459 = vmatpush1.msra.mxu0 0.0
        %460 = vmatprep.subr.mxu0 0.0
        %461 = vmatpush1.msra.mxu0 0.0
        %462 = vmatprep.subr.mxu0 0.0
        %463 = vmatpush1.msra.mxu0 0.0
        %464 = vmatprep.subr.mxu0 0.0
        %465 = vmatpush1.msra.mxu0 %v398
        %466 = vmatprep.subr.mxu0 0.0
        %467 = vmatpush1.msra.mxu0 %v397
        %468 = vmatprep.subr.mxu0 0.0
        %469 = vmatpush1.msra.mxu0 %v396
        %470 = vmatprep.subr.mxu0 0.0
        %471 = vmatpush1.msra.mxu0 %v395
        %472 = vmatprep.subr.mxu0 0.0
        %473 = vmatpush1.msra.mxu0 %v394
        %474 = vmatprep.subr.mxu0 0.0
        %475 = vmatpush1.msra.mxu0 %v393
        %476 = vmatprep.subr.mxu0 0.0
        %477 = vmatpush1.msra.mxu0 %v392
        %478 = vmatprep.subr.mxu0 0.0
        %479 = vmatpush1.msra.mxu0 %v391
        %480 = vmatprep.subr.mxu0 0.0
        %481 = vmatpush1.msra.mxu0 %v390
        %482 = vmatprep.subr.mxu0 0.0
        %483 = vmatpush1.msra.mxu0 %v389
        %484 = vmatprep.subr.mxu0 0.0
        %485 = vmatpush2.msra.mxu0 0.0
        %486 = vmatprep.subr.mxu0 0.0
        %487 = vmatpush2.msra.mxu0 0.0
        %488 = vmatprep.subr.mxu0 0.0
        %489 = vmatpush2.msra.mxu0 0.0
        %490 = vmatprep.subr.mxu0 0.0
        %491 = vmatpush2.msra.mxu0 0.0
        %492 = vmatprep.subr.mxu0 0.0
        %493 = vmatpush2.msra.mxu0 0.0
        %494 = vmatprep.subr.mxu0 0.0
        %495 = vmatpush2.msra.mxu0 0.0
        %496 = vmatprep.subr.mxu0 0.0
        %497 = vmatpush2.msra.mxu0 0.0
        %498 = vmatprep.subr.mxu0 0.0
        %499 = vmatpush2.msra.mxu0 0.0
        %500 = vmatprep.subr.mxu0 0.0
        %501 = vmatpush2.msra.mxu0 0.0
        %502 = vmatprep.subr.mxu0 0.0
        %503 = vmatpush2.msra.mxu0 0.0
        %504 = vmatprep.subr.mxu0 0.0
        %505 = vmatpush2.msra.mxu0 0.0
        %506 = vmatprep.subr.mxu0 0.0
        %507 = vmatpush2.msra.mxu0 0.0
        %508 = vmatprep.subr.mxu0 0.0
        %509 = vmatpush2.msra.mxu0 0.0
        %510 = vmatprep.subr.mxu0 0.0
        %511 = vmatpush2.msra.mxu0 0.0
        %512 = vmatprep.subr.mxu0 0.0
        %513 = vmatpush2.msra.mxu0 0.0
        %514 = vmatprep.subr.mxu0 0.0
        %515 = vmatpush2.msra.mxu0 0.0
        %516 = vmatprep.mubr.f32.mxu0 0.0
        %517 = vmatmul.mubr.f32.gmra.mxu0 %v405
        %v518 = vpop.f32.mrf.mxu0
        %v519 = vadd.f32 %v402, %v518
        %v520 = vpop.f32.mrf.mxu0
        %521 = vmatprep.mubr.f32.mxu0 0.0
        %522 = vmatmul.mubr.f32.gmra.mxu0 %v408
        %v523 = vpop.f32.mrf.mxu0
        %v524 = vadd.f32 %v402, %v523
        %v525 = vpop.f32.mrf.mxu0
        %526 = vmatprep.mubr.f32.mxu0 0.0
        %527 = vmatmul.mubr.f32.gmra.mxu0 %v411
        %v528 = vpop.f32.mrf.mxu0
        %v529 = vadd.f32 %v402, %v528
        %v530 = vpop.f32.mrf.mxu0
        %531 = vmatprep.mubr.f32.mxu0 0.0
        %532 = vmatmul.mubr.f32.gmra.mxu0 %v414
        %v533 = vpop.f32.mrf.mxu0
        %v534 = vadd.f32 %v402, %v533
        %v535 = vpop.f32.mrf.mxu0
        %536 = vmatprep.mubr.f32.mxu0 0.0
        %537 = vmatmul.mubr.f32.gmra.mxu0 %v417
        %v538 = vpop.f32.mrf.mxu0
        %v539 = vadd.f32 %v402, %v538
        %v540 = vpop.f32.mrf.mxu0
        %541 = vmatprep.mubr.f32.mxu0 0.0
        %542 = vmatmul.mubr.f32.gmra.mxu0 %v420
        %v543 = vpop.f32.mrf.mxu0
        %v544 = vadd.f32 %v402, %v543
        %v545 = vpop.f32.mrf.mxu0
        %546 = vmatprep.mubr.f32.mxu0 0.0
        %547 = vmatmul.mubr.f32.gmra.mxu0 %v423
        %v548 = vpop.f32.mrf.mxu0
        %v549 = vadd.f32 %v402, %v548
        %v550 = vpop.f32.mrf.mxu0
        %551 = vmatprep.mubr.f32.mxu0 0.0
        %552 = vmatmul.mubr.f32.gmra.mxu0 %v426
        %v553 = vpop.f32.mrf.mxu0
        %v554 = vadd.f32 %v402, %v553
        %v555 = vpop.f32.mrf.mxu0
        %556 = vmatprep.mubr.f32.mxu0 0.0
        %557 = vmatmul.mubr.f32.gmra.mxu0 %v429
        %v558 = vpop.f32.mrf.mxu0
        %v559 = vadd.f32 %v402, %v558
        %v560 = vpop.f32.mrf.mxu0
        %561 = vmatprep.mubr.f32.mxu0 0.0
        %562 = vmatmul.mubr.f32.gmra.mxu0 %v432
        %v563 = vpop.f32.mrf.mxu0
        %v564 = vadd.f32 %v402, %v563
        %v565 = vpop.f32.mrf.mxu0
        %566 = vmatprep.mubr.f32.mxu0 0.0
        %567 = vmatmul.mubr.f32.gmra.mxu0 %v435
        %v568 = vpop.f32.mrf.mxu0
        %v569 = vadd.f32 %v402, %v568
        %v570 = vpop.f32.mrf.mxu0
        %571 = vmatprep.mubr.f32.mxu0 0.0
        %572 = vmatmul.mubr.f32.gmra.mxu0 %v438
        %v573 = vpop.f32.mrf.mxu0
        %v574 = vadd.f32 %v402, %v573
        %v575 = vpop.f32.mrf.mxu0
        %576 = vmatprep.mubr.f32.mxu0 0.0
        %577 = vmatmul.mubr.f32.gmra.mxu0 %v441
        %v578 = vpop.f32.mrf.mxu0
        %v579 = vadd.f32 %v402, %v578
        %v580 = vpop.f32.mrf.mxu0
        %581 = vmatprep.mubr.f32.mxu0 0.0
        %582 = vmatmul.mubr.f32.gmra.mxu0 %v444
        %v583 = vpop.f32.mrf.mxu0
        %v584 = vadd.f32 %v402, %v583
        %v585 = vpop.f32.mrf.mxu0
        %586 = vmatprep.mubr.f32.mxu0 0.0
        %587 = vmatmul.mubr.f32.gmra.mxu0 %v447
        %v588 = vpop.f32.mrf.mxu0
        %v589 = vadd.f32 %v402, %v588
        %v590 = vpop.f32.mrf.mxu0
        %591 = vmatprep.mubr.f32.mxu0 0.0
        %592 = vmatmul.mubr.f32.gmra.mxu0 %v450
        %v593 = vpop.f32.mrf.mxu0
        %v594 = vadd.f32 %v402, %v593
        %v595 = vpop.f32.mrf.mxu0
        %596 = vdwg.mxu0
        %v597 = vmax.f32 %v519, 0.0
        %v598 = vmax.f32 %v524, 0.0
        %v599 = vmax.f32 %v529, 0.0
        %v600 = vmax.f32 %v534, 0.0
        %v601 = vmax.f32 %v539, 0.0
        %v602 = vmax.f32 %v544, 0.0
        %v603 = vmax.f32 %v549, 0.0
        %v604 = vmax.f32 %v554, 0.0
        %v605 = vmax.f32 %v559, 0.0
        %v606 = vmax.f32 %v564, 0.0
        %v607 = vmax.f32 %v569, 0.0
        %v608 = vmax.f32 %v574, 0.0
        %v609 = vmax.f32 %v579, 0.0
        %v610 = vmax.f32 %v584, 0.0
        %v611 = vmax.f32 %v589, 0.0
        %v612 = vmax.f32 %v594, 0.0
        %vm613 = vcmask 523264
        %v614 = vsel %vm613, %v597, 0.0
        %615 = vadd.xlane.f32.xlu0 %v614
        %v616 = vpop.xlane.xlu0 %615
        %v617 = vsel %vm613, %v598, 0.0
        %618 = vadd.xlane.f32.xlu0 %v617
        %v619 = vpop.xlane.xlu0 %618
        %v620 = vsel %vm613, %v599, 0.0
        %621 = vadd.xlane.f32.xlu0 %v620
        %v622 = vpop.xlane.xlu0 %621
        %v623 = vsel %vm613, %v600, 0.0
        %624 = vadd.xlane.f32.xlu0 %v623
        %v625 = vpop.xlane.xlu0 %624
        %v626 = vsel %vm613, %v601, 0.0
        %627 = vadd.xlane.f32.xlu0 %v626
        %v628 = vpop.xlane.xlu0 %627
        %v629 = vsel %vm613, %v602, 0.0
        %630 = vadd.xlane.f32.xlu0 %v629
        %v631 = vpop.xlane.xlu0 %630
        %v632 = vsel %vm613, %v603, 0.0
        %633 = vadd.xlane.f32.xlu0 %v632
        %v634 = vpop.xlane.xlu0 %633
        %v635 = vsel %vm613, %v604, 0.0
        %636 = vadd.xlane.f32.xlu0 %v635
        %v637 = vpop.xlane.xlu0 %636
        %v638 = vsel %vm613, %v605, 0.0
        %639 = vadd.xlane.f32.xlu0 %v638
        %v640 = vpop.xlane.xlu0 %639
        %v641 = vsel %vm613, %v606, 0.0
        %642 = vadd.xlane.f32.xlu0 %v641
        %v643 = vpop.xlane.xlu0 %642
        %v644 = vsel %vm613, %v607, 0.0
        %645 = vadd.xlane.f32.xlu0 %v644
        %v646 = vpop.xlane.xlu0 %645
        %v647 = vsel %vm613, %v608, 0.0
        %648 = vadd.xlane.f32.xlu0 %v647
        %v649 = vpop.xlane.xlu0 %648
        %v650 = vsel %vm613, %v609, 0.0
        %651 = vadd.xlane.f32.xlu0 %v650
        %v652 = vpop.xlane.xlu0 %651
        %v653 = vsel %vm613, %v610, 0.0
        %654 = vadd.xlane.f32.xlu0 %v653
        %v655 = vpop.xlane.xlu0 %654
        %v656 = vsel %vm613, %v611, 0.0
        %657 = vadd.xlane.f32.xlu0 %v656
        %v658 = vpop.xlane.xlu0 %657
        %v659 = vsel %vm613, %v612, 0.0
        %660 = vadd.xlane.f32.xlu0 %v659
        %v661 = vpop.xlane.xlu0 %660
        %v662 = vrcp.pop 64.0
        %v663 = vmul.f32 %v616, %v662
        %v664 = vmul.f32 %v619, %v662
        %v665 = vmul.f32 %v622, %v662
        %v666 = vmul.f32 %v625, %v662
        %v667 = vmul.f32 %v628, %v662
        %v668 = vmul.f32 %v631, %v662
        %v669 = vmul.f32 %v634, %v662
        %v670 = vmul.f32 %v637, %v662
        %v671 = vmul.f32 %v640, %v662
        %v672 = vmul.f32 %v643, %v662
        %v673 = vmul.f32 %v646, %v662
        %v674 = vmul.f32 %v649, %v662
        %v675 = vmul.f32 %v652, %v662
        %v676 = vmul.f32 %v655, %v662
        %v677 = vmul.f32 %v658, %v662
        %v678 = vmul.f32 %v661, %v662
        %v679 = vsub.f32 %v597, %v663
        %v680 = vsub.f32 %v598, %v664
        %v681 = vsub.f32 %v599, %v665
        %v682 = vsub.f32 %v600, %v666
        %v683 = vsub.f32 %v601, %v667
        %v684 = vsub.f32 %v602, %v668
        %v685 = vsub.f32 %v603, %v669
        %v686 = vsub.f32 %v604, %v670
        %v687 = vsub.f32 %v605, %v671
        %v688 = vsub.f32 %v606, %v672
        %v689 = vsub.f32 %v607, %v673
        %v690 = vsub.f32 %v608, %v674
        %v691 = vsub.f32 %v609, %v675
        %v692 = vsub.f32 %v610, %v676
        %v693 = vsub.f32 %v611, %v677
        %v694 = vsub.f32 %v612, %v678
        %v695 = vmul.f32 %v679, %v679
        %v696 = vmul.f32 %v680, %v680
        %v697 = vmul.f32 %v681, %v681
        %v698 = vmul.f32 %v682, %v682
        %v699 = vmul.f32 %v683, %v683
        %v700 = vmul.f32 %v684, %v684
        %v701 = vmul.f32 %v685, %v685
        %v702 = vmul.f32 %v686, %v686
        %v703 = vmul.f32 %v687, %v687
        %v704 = vmul.f32 %v688, %v688
        %v705 = vmul.f32 %v689, %v689
        %v706 = vmul.f32 %v690, %v690
        %v707 = vmul.f32 %v691, %v691
        %v708 = vmul.f32 %v692, %v692
        %v709 = vmul.f32 %v693, %v693
        %v710 = vmul.f32 %v694, %v694
        %v711 = vsel %vm613, %v695, 0.0
        %712 = vadd.xlane.f32.xlu0 %v711
        %v713 = vpop.xlane.xlu0 %712
        %v714 = vsel %vm613, %v696, 0.0
        %715 = vadd.xlane.f32.xlu0 %v714
        %v716 = vpop.xlane.xlu0 %715
        %v717 = vsel %vm613, %v697, 0.0
        %718 = vadd.xlane.f32.xlu0 %v717
        %v719 = vpop.xlane.xlu0 %718
        %v720 = vsel %vm613, %v698, 0.0
        %721 = vadd.xlane.f32.xlu0 %v720
        %v722 = vpop.xlane.xlu0 %721
        %v723 = vsel %vm613, %v699, 0.0
        %724 = vadd.xlane.f32.xlu0 %v723
        %v725 = vpop.xlane.xlu0 %724
        %v726 = vsel %vm613, %v700, 0.0
        %727 = vadd.xlane.f32.xlu0 %v726
        %v728 = vpop.xlane.xlu0 %727
        %v729 = vsel %vm613, %v701, 0.0
        %730 = vadd.xlane.f32.xlu0 %v729
        %v731 = vpop.xlane.xlu0 %730
        %v732 = vsel %vm613, %v702, 0.0
        %733 = vadd.xlane.f32.xlu0 %v732
        %v734 = vpop.xlane.xlu0 %733
        %v735 = vsel %vm613, %v703, 0.0
        %736 = vadd.xlane.f32.xlu0 %v735
        %v737 = vpop.xlane.xlu0 %736
        %v738 = vsel %vm613, %v704, 0.0
        %739 = vadd.xlane.f32.xlu0 %v738
        %v740 = vpop.xlane.xlu0 %739
        %v741 = vsel %vm613, %v705, 0.0
        %742 = vadd.xlane.f32.xlu0 %v741
        %v743 = vpop.xlane.xlu0 %742
        %v744 = vsel %vm613, %v706, 0.0
        %745 = vadd.xlane.f32.xlu0 %v744
        %v746 = vpop.xlane.xlu0 %745
        %v747 = vsel %vm613, %v707, 0.0
        %748 = vadd.xlane.f32.xlu0 %v747
        %v749 = vpop.xlane.xlu0 %748
        %v750 = vsel %vm613, %v708, 0.0
        %751 = vadd.xlane.f32.xlu0 %v750
        %v752 = vpop.xlane.xlu0 %751
        %v753 = vsel %vm613, %v709, 0.0
        %754 = vadd.xlane.f32.xlu0 %v753
        %v755 = vpop.xlane.xlu0 %754
        %v756 = vsel %vm613, %v710, 0.0
        %757 = vadd.xlane.f32.xlu0 %v756
        %v758 = vpop.xlane.xlu0 %757
        %v759 = vmul.f32 %v713, %v662
        %v760 = vmul.f32 %v716, %v662
        %v761 = vmul.f32 %v719, %v662
        %v762 = vmul.f32 %v722, %v662
        %v763 = vmul.f32 %v725, %v662
        %v764 = vmul.f32 %v728, %v662
        %v765 = vmul.f32 %v731, %v662
        %v766 = vmul.f32 %v734, %v662
        %v767 = vmul.f32 %v737, %v662
        %v768 = vmul.f32 %v740, %v662
        %v769 = vmul.f32 %v743, %v662
        %v770 = vmul.f32 %v746, %v662
        %v771 = vmul.f32 %v749, %v662
        %v772 = vmul.f32 %v752, %v662
        %v773 = vmul.f32 %v755, %v662
        %v774 = vmul.f32 %v758, %v662
        %v775 = vadd.f32 %v759, 1e-05
        %v776 = vadd.f32 %v760, 1e-05
        %v777 = vadd.f32 %v761, 1e-05
        %v778 = vadd.f32 %v762, 1e-05
        %v779 = vadd.f32 %v763, 1e-05
        %v780 = vadd.f32 %v764, 1e-05
        %v781 = vadd.f32 %v765, 1e-05
        %v782 = vadd.f32 %v766, 1e-05
        %v783 = vadd.f32 %v767, 1e-05
        %v784 = vadd.f32 %v768, 1e-05
        %v785 = vadd.f32 %v769, 1e-05
        %v786 = vadd.f32 %v770, 1e-05
        %v787 = vadd.f32 %v771, 1e-05
        %v788 = vadd.f32 %v772, 1e-05
        %v789 = vadd.f32 %v773, 1e-05
        %v790 = vadd.f32 %v774, 1e-05
        %v791 = vrsqrt.pop %v775
        %v792 = vrsqrt.pop %v776
        %v793 = vrsqrt.pop %v777
        %v794 = vrsqrt.pop %v778
        %v795 = vrsqrt.pop %v779
        %v796 = vrsqrt.pop %v780
        %v797 = vrsqrt.pop %v781
        %v798 = vrsqrt.pop %v782
        %v799 = vrsqrt.pop %v783
        %v800 = vrsqrt.pop %v784
        %v801 = vrsqrt.pop %v785
        %v802 = vrsqrt.pop %v786
        %v803 = vrsqrt.pop %v787
        %v804 = vrsqrt.pop %v788
        %v805 = vrsqrt.pop %v789
        %v806 = vrsqrt.pop %v790
        %v807 = vmul.f32 %v679, %v791
        %v808 = vmul.f32 %v680, %v792
        %v809 = vmul.f32 %v681, %v793
        %v810 = vmul.f32 %v682, %v794
        %v811 = vmul.f32 %v683, %v795
        %v812 = vmul.f32 %v684, %v796
        %v813 = vmul.f32 %v685, %v797
        %v814 = vmul.f32 %v686, %v798
        %v815 = vmul.f32 %v687, %v799
        %v816 = vmul.f32 %v688, %v800
        %v817 = vmul.f32 %v689, %v801
        %v818 = vmul.f32 %v690, %v802
        %v819 = vmul.f32 %v691, %v803
        %v820 = vmul.f32 %v692, %v804
        %v821 = vmul.f32 %v693, %v805
        %v822 = vmul.f32 %v694, %v806
        %v823 = vlaneseq
        %v824 = vshrl.u32 %v823, 7
        %v825 = vsub.s32 1, %v824
        %v826 = vrot.slane %v370, %v825
        %v827 = vmul.f32 %v807, %v826
        %v828 = vmul.f32 %v808, %v826
        %v829 = vmul.f32 %v809, %v826
        %v830 = vmul.f32 %v810, %v826
        %v831 = vmul.f32 %v811, %v826
        %v832 = vmul.f32 %v812, %v826
        %v833 = vmul.f32 %v813, %v826
        %v834 = vmul.f32 %v814, %v826
        %v835 = vmul.f32 %v815, %v826
        %v836 = vmul.f32 %v816, %v826
        %v837 = vmul.f32 %v817, %v826
        %v838 = vmul.f32 %v818, %v826
        %v839 = vmul.f32 %v819, %v826
        %v840 = vmul.f32 %v820, %v826
        %v841 = vmul.f32 %v821, %v826
        %v842 = vmul.f32 %v822, %v826
        %v843 = vlaneseq
        %v844 = vshrl.u32 %v843, 7
        %v845 = vsub.s32 2, %v844
        %v846 = vrot.slane %v370, %v845
        %v847 = vadd.f32 %v827, %v846
        %v848 = vadd.f32 %v828, %v846
        %v849 = vadd.f32 %v829, %v846
        %v850 = vadd.f32 %v830, %v846
        %v851 = vadd.f32 %v831, %v846
        %v852 = vadd.f32 %v832, %v846
        %v853 = vadd.f32 %v833, %v846
        %v854 = vadd.f32 %v834, %v846
        %v855 = vadd.f32 %v835, %v846
        %v856 = vadd.f32 %v836, %v846
        %v857 = vadd.f32 %v837, %v846
        %v858 = vadd.f32 %v838, %v846
        %v859 = vadd.f32 %v839, %v846
        %v860 = vadd.f32 %v840, %v846
        %v861 = vadd.f32 %v841, %v846
        %v862 = vadd.f32 %v842, %v846
        %v863 = vld [vmem:[%s3] sm:$0xff]
        %v864 = vld [vmem:[%s3 + $0x8] sm:$0xff]
        %v865 = vld [vmem:[%s3 + $0x10] sm:$0xff]
        %v866 = vld [vmem:[%s3 + $0x18] sm:$0xff]
        %v867 = vld [vmem:[%s3 + $0x20] sm:$0xff]
        %v868 = vld [vmem:[%s3 + $0x28] sm:$0xff]
        %v869 = vld [vmem:[%s3 + $0x30] sm:$0xff]
        %v870 = vld [vmem:[%s3 + $0x38] sm:$0xff]
        %v871 = vlaneseq
        %v872 = vshrl.u32 %v871, 7
        %v873 = vsub.s32 3, %v872
        %v874 = vrot.slane %v371, %v873
        %v876 = vsel %vm613, %v847, 0
        %v879 = vsel %vm613, %v848, 0
        %v882 = vsel %vm613, %v849, 0
        %v885 = vsel %vm613, %v850, 0
        %v888 = vsel %vm613, %v851, 0
        %v891 = vsel %vm613, %v852, 0
        %v894 = vsel %vm613, %v853, 0
        %v897 = vsel %vm613, %v854, 0
        %v900 = vsel %vm613, %v855, 0
        %v903 = vsel %vm613, %v856, 0
        %v906 = vsel %vm613, %v857, 0
        %v909 = vsel %vm613, %v858, 0
        %v912 = vsel %vm613, %v859, 0
        %v915 = vsel %vm613, %v860, 0
        %v918 = vsel %vm613, %v861, 0
        %v921 = vsel %vm613, %v862, 0
        %923 = vmatprep.subr.mxu0 0.0
        %924 = vmatpush1.msra.mxu0 0.0
        %925 = vmatprep.subr.mxu0 0.0
        %926 = vmatpush1.msra.mxu0 0.0
        %927 = vmatprep.subr.mxu0 0.0
        %928 = vmatpush1.msra.mxu0 0.0
        %929 = vmatprep.subr.mxu0 0.0
        %930 = vmatpush1.msra.mxu0 0.0
        %931 = vmatprep.subr.mxu0 0.0
        %932 = vmatpush1.msra.mxu0 0.0
        %933 = vmatprep.subr.mxu0 0.0
        %934 = vmatpush1.msra.mxu0 0.0
        %935 = vmatprep.subr.mxu0 0.0
        %936 = vmatpush1.msra.mxu0 0.0
        %937 = vmatprep.subr.mxu0 0.0
        %938 = vmatpush1.msra.mxu0 0.0
        %939 = vmatprep.subr.mxu0 0.0
        %940 = vmatpush1.msra.mxu0 %v870
        %941 = vmatprep.subr.mxu0 0.0
        %942 = vmatpush1.msra.mxu0 %v869
        %943 = vmatprep.subr.mxu0 0.0
        %944 = vmatpush1.msra.mxu0 %v868
        %945 = vmatprep.subr.mxu0 0.0
        %946 = vmatpush1.msra.mxu0 %v867
        %947 = vmatprep.subr.mxu0 0.0
        %948 = vmatpush1.msra.mxu0 %v866
        %949 = vmatprep.subr.mxu0 0.0
        %950 = vmatpush1.msra.mxu0 %v865
        %951 = vmatprep.subr.mxu0 0.0
        %952 = vmatpush1.msra.mxu0 %v864
        %953 = vmatprep.subr.mxu0 0.0
        %954 = vmatpush1.msra.mxu0 %v863
        %955 = vmatprep.subr.mxu0 0.0
        %956 = vmatpush2.msra.mxu0 0.0
        %957 = vmatprep.subr.mxu0 0.0
        %958 = vmatpush2.msra.mxu0 0.0
        %959 = vmatprep.subr.mxu0 0.0
        %960 = vmatpush2.msra.mxu0 0.0
        %961 = vmatprep.subr.mxu0 0.0
        %962 = vmatpush2.msra.mxu0 0.0
        %963 = vmatprep.subr.mxu0 0.0
        %964 = vmatpush2.msra.mxu0 0.0
        %965 = vmatprep.subr.mxu0 0.0
        %966 = vmatpush2.msra.mxu0 0.0
        %967 = vmatprep.subr.mxu0 0.0
        %968 = vmatpush2.msra.mxu0 0.0
        %969 = vmatprep.subr.mxu0 0.0
        %970 = vmatpush2.msra.mxu0 0.0
        %971 = vmatprep.subr.mxu0 0.0
        %972 = vmatpush2.msra.mxu0 0.0
        %973 = vmatprep.subr.mxu0 0.0
        %974 = vmatpush2.msra.mxu0 0.0
        %975 = vmatprep.subr.mxu0 0.0
        %976 = vmatpush2.msra.mxu0 0.0
        %977 = vmatprep.subr.mxu0 0.0
        %978 = vmatpush2.msra.mxu0 0.0
        %979 = vmatprep.subr.mxu0 0.0
        %980 = vmatpush2.msra.mxu0 0.0
        %981 = vmatprep.subr.mxu0 0.0
        %982 = vmatpush2.msra.mxu0 0.0
        %983 = vmatprep.subr.mxu0 0.0
        %984 = vmatpush2.msra.mxu0 0.0
        %985 = vmatprep.subr.mxu0 0.0
        %986 = vmatpush2.msra.mxu0 0.0
        %987 = vmatprep.mubr.f32.mxu0 0.0
        %988 = vmatmul.mubr.f32.gmra.mxu0 %v876
        %v989 = vpop.f32.mrf.mxu0
        %v990 = vadd.f32 %v874, %v989
        %v991 = vpop.f32.mrf.mxu0
        %992 = vmatprep.mubr.f32.mxu0 0.0
        %993 = vmatmul.mubr.f32.gmra.mxu0 %v879
        %v994 = vpop.f32.mrf.mxu0
        %v995 = vadd.f32 %v874, %v994
        %v996 = vpop.f32.mrf.mxu0
        %997 = vmatprep.mubr.f32.mxu0 0.0
        %998 = vmatmul.mubr.f32.gmra.mxu0 %v882
        %v999 = vpop.f32.mrf.mxu0
        %v1000 = vadd.f32 %v874, %v999
        %v1001 = vpop.f32.mrf.mxu0
        %1002 = vmatprep.mubr.f32.mxu0 0.0
        %1003 = vmatmul.mubr.f32.gmra.mxu0 %v885
        %v1004 = vpop.f32.mrf.mxu0
        %v1005 = vadd.f32 %v874, %v1004
        %v1006 = vpop.f32.mrf.mxu0
        %1007 = vmatprep.mubr.f32.mxu0 0.0
        %1008 = vmatmul.mubr.f32.gmra.mxu0 %v888
        %v1009 = vpop.f32.mrf.mxu0
        %v1010 = vadd.f32 %v874, %v1009
        %v1011 = vpop.f32.mrf.mxu0
        %1012 = vmatprep.mubr.f32.mxu0 0.0
        %1013 = vmatmul.mubr.f32.gmra.mxu0 %v891
        %v1014 = vpop.f32.mrf.mxu0
        %v1015 = vadd.f32 %v874, %v1014
        %v1016 = vpop.f32.mrf.mxu0
        %1017 = vmatprep.mubr.f32.mxu0 0.0
        %1018 = vmatmul.mubr.f32.gmra.mxu0 %v894
        %v1019 = vpop.f32.mrf.mxu0
        %v1020 = vadd.f32 %v874, %v1019
        %v1021 = vpop.f32.mrf.mxu0
        %1022 = vmatprep.mubr.f32.mxu0 0.0
        %1023 = vmatmul.mubr.f32.gmra.mxu0 %v897
        %v1024 = vpop.f32.mrf.mxu0
        %v1025 = vadd.f32 %v874, %v1024
        %v1026 = vpop.f32.mrf.mxu0
        %1027 = vmatprep.mubr.f32.mxu0 0.0
        %1028 = vmatmul.mubr.f32.gmra.mxu0 %v900
        %v1029 = vpop.f32.mrf.mxu0
        %v1030 = vadd.f32 %v874, %v1029
        %v1031 = vpop.f32.mrf.mxu0
        %1032 = vmatprep.mubr.f32.mxu0 0.0
        %1033 = vmatmul.mubr.f32.gmra.mxu0 %v903
        %v1034 = vpop.f32.mrf.mxu0
        %v1035 = vadd.f32 %v874, %v1034
        %v1036 = vpop.f32.mrf.mxu0
        %1037 = vmatprep.mubr.f32.mxu0 0.0
        %1038 = vmatmul.mubr.f32.gmra.mxu0 %v906
        %v1039 = vpop.f32.mrf.mxu0
        %v1040 = vadd.f32 %v874, %v1039
        %v1041 = vpop.f32.mrf.mxu0
        %1042 = vmatprep.mubr.f32.mxu0 0.0
        %1043 = vmatmul.mubr.f32.gmra.mxu0 %v909
        %v1044 = vpop.f32.mrf.mxu0
        %v1045 = vadd.f32 %v874, %v1044
        %v1046 = vpop.f32.mrf.mxu0
        %1047 = vmatprep.mubr.f32.mxu0 0.0
        %1048 = vmatmul.mubr.f32.gmra.mxu0 %v912
        %v1049 = vpop.f32.mrf.mxu0
        %v1050 = vadd.f32 %v874, %v1049
        %v1051 = vpop.f32.mrf.mxu0
        %1052 = vmatprep.mubr.f32.mxu0 0.0
        %1053 = vmatmul.mubr.f32.gmra.mxu0 %v915
        %v1054 = vpop.f32.mrf.mxu0
        %v1055 = vadd.f32 %v874, %v1054
        %v1056 = vpop.f32.mrf.mxu0
        %1057 = vmatprep.mubr.f32.mxu0 0.0
        %1058 = vmatmul.mubr.f32.gmra.mxu0 %v918
        %v1059 = vpop.f32.mrf.mxu0
        %v1060 = vadd.f32 %v874, %v1059
        %v1061 = vpop.f32.mrf.mxu0
        %1062 = vmatprep.mubr.f32.mxu0 0.0
        %1063 = vmatmul.mubr.f32.gmra.mxu0 %v921
        %v1064 = vpop.f32.mrf.mxu0
        %v1065 = vadd.f32 %v874, %v1064
        %v1066 = vpop.f32.mrf.mxu0
        %1067 = vdwg.mxu0
        %v1068 = vmax.f32 %v990, 0.0
        %v1069 = vmax.f32 %v995, 0.0
        %v1070 = vmax.f32 %v1000, 0.0
        %v1071 = vmax.f32 %v1005, 0.0
        %v1072 = vmax.f32 %v1010, 0.0
        %v1073 = vmax.f32 %v1015, 0.0
        %v1074 = vmax.f32 %v1020, 0.0
        %v1075 = vmax.f32 %v1025, 0.0
        %v1076 = vmax.f32 %v1030, 0.0
        %v1077 = vmax.f32 %v1035, 0.0
        %v1078 = vmax.f32 %v1040, 0.0
        %v1079 = vmax.f32 %v1045, 0.0
        %v1080 = vmax.f32 %v1050, 0.0
        %v1081 = vmax.f32 %v1055, 0.0
        %v1082 = vmax.f32 %v1060, 0.0
        %v1083 = vmax.f32 %v1065, 0.0
        %v1084 = vsel %vm613, %v1068, 0.0
        %1085 = vadd.xlane.f32.xlu0 %v1084
        %v1086 = vpop.xlane.xlu0 %1085
        %v1087 = vsel %vm613, %v1069, 0.0
        %1088 = vadd.xlane.f32.xlu0 %v1087
        %v1089 = vpop.xlane.xlu0 %1088
        %v1090 = vsel %vm613, %v1070, 0.0
        %1091 = vadd.xlane.f32.xlu0 %v1090
        %v1092 = vpop.xlane.xlu0 %1091
        %v1093 = vsel %vm613, %v1071, 0.0
        %1094 = vadd.xlane.f32.xlu0 %v1093
        %v1095 = vpop.xlane.xlu0 %1094
        %v1096 = vsel %vm613, %v1072, 0.0
        %1097 = vadd.xlane.f32.xlu0 %v1096
        %v1098 = vpop.xlane.xlu0 %1097
        %v1099 = vsel %vm613, %v1073, 0.0
        %1100 = vadd.xlane.f32.xlu0 %v1099
        %v1101 = vpop.xlane.xlu0 %1100
        %v1102 = vsel %vm613, %v1074, 0.0
        %1103 = vadd.xlane.f32.xlu0 %v1102
        %v1104 = vpop.xlane.xlu0 %1103
        %v1105 = vsel %vm613, %v1075, 0.0
        %1106 = vadd.xlane.f32.xlu0 %v1105
        %v1107 = vpop.xlane.xlu0 %1106
        %v1108 = vsel %vm613, %v1076, 0.0
        %1109 = vadd.xlane.f32.xlu0 %v1108
        %v1110 = vpop.xlane.xlu0 %1109
        %v1111 = vsel %vm613, %v1077, 0.0
        %1112 = vadd.xlane.f32.xlu0 %v1111
        %v1113 = vpop.xlane.xlu0 %1112
        %v1114 = vsel %vm613, %v1078, 0.0
        %1115 = vadd.xlane.f32.xlu0 %v1114
        %v1116 = vpop.xlane.xlu0 %1115
        %v1117 = vsel %vm613, %v1079, 0.0
        %1118 = vadd.xlane.f32.xlu0 %v1117
        %v1119 = vpop.xlane.xlu0 %1118
        %v1120 = vsel %vm613, %v1080, 0.0
        %1121 = vadd.xlane.f32.xlu0 %v1120
        %v1122 = vpop.xlane.xlu0 %1121
        %v1123 = vsel %vm613, %v1081, 0.0
        %1124 = vadd.xlane.f32.xlu0 %v1123
        %v1125 = vpop.xlane.xlu0 %1124
        %v1126 = vsel %vm613, %v1082, 0.0
        %1127 = vadd.xlane.f32.xlu0 %v1126
        %v1128 = vpop.xlane.xlu0 %1127
        %v1129 = vsel %vm613, %v1083, 0.0
        %1130 = vadd.xlane.f32.xlu0 %v1129
        %v1131 = vpop.xlane.xlu0 %1130
        %v1132 = vmul.f32 %v1086, %v662
        %v1133 = vmul.f32 %v1089, %v662
        %v1134 = vmul.f32 %v1092, %v662
        %v1135 = vmul.f32 %v1095, %v662
        %v1136 = vmul.f32 %v1098, %v662
        %v1137 = vmul.f32 %v1101, %v662
        %v1138 = vmul.f32 %v1104, %v662
        %v1139 = vmul.f32 %v1107, %v662
        %v1140 = vmul.f32 %v1110, %v662
        %v1141 = vmul.f32 %v1113, %v662
        %v1142 = vmul.f32 %v1116, %v662
        %v1143 = vmul.f32 %v1119, %v662
        %v1144 = vmul.f32 %v1122, %v662
        %v1145 = vmul.f32 %v1125, %v662
        %v1146 = vmul.f32 %v1128, %v662
        %v1147 = vmul.f32 %v1131, %v662
        %v1148 = vsub.f32 %v1068, %v1132
        %v1149 = vsub.f32 %v1069, %v1133
        %v1150 = vsub.f32 %v1070, %v1134
        %v1151 = vsub.f32 %v1071, %v1135
        %v1152 = vsub.f32 %v1072, %v1136
        %v1153 = vsub.f32 %v1073, %v1137
        %v1154 = vsub.f32 %v1074, %v1138
        %v1155 = vsub.f32 %v1075, %v1139
        %v1156 = vsub.f32 %v1076, %v1140
        %v1157 = vsub.f32 %v1077, %v1141
        %v1158 = vsub.f32 %v1078, %v1142
        %v1159 = vsub.f32 %v1079, %v1143
        %v1160 = vsub.f32 %v1080, %v1144
        %v1161 = vsub.f32 %v1081, %v1145
        %v1162 = vsub.f32 %v1082, %v1146
        %v1163 = vsub.f32 %v1083, %v1147
        %v1164 = vmul.f32 %v1148, %v1148
        %v1165 = vmul.f32 %v1149, %v1149
        %v1166 = vmul.f32 %v1150, %v1150
        %v1167 = vmul.f32 %v1151, %v1151
        %v1168 = vmul.f32 %v1152, %v1152
        %v1169 = vmul.f32 %v1153, %v1153
        %v1170 = vmul.f32 %v1154, %v1154
        %v1171 = vmul.f32 %v1155, %v1155
        %v1172 = vmul.f32 %v1156, %v1156
        %v1173 = vmul.f32 %v1157, %v1157
        %v1174 = vmul.f32 %v1158, %v1158
        %v1175 = vmul.f32 %v1159, %v1159
        %v1176 = vmul.f32 %v1160, %v1160
        %v1177 = vmul.f32 %v1161, %v1161
        %v1178 = vmul.f32 %v1162, %v1162
        %v1179 = vmul.f32 %v1163, %v1163
        %v1180 = vsel %vm613, %v1164, 0.0
        %1181 = vadd.xlane.f32.xlu0 %v1180
        %v1182 = vpop.xlane.xlu0 %1181
        %v1183 = vsel %vm613, %v1165, 0.0
        %1184 = vadd.xlane.f32.xlu0 %v1183
        %v1185 = vpop.xlane.xlu0 %1184
        %v1186 = vsel %vm613, %v1166, 0.0
        %1187 = vadd.xlane.f32.xlu0 %v1186
        %v1188 = vpop.xlane.xlu0 %1187
        %v1189 = vsel %vm613, %v1167, 0.0
        %1190 = vadd.xlane.f32.xlu0 %v1189
        %v1191 = vpop.xlane.xlu0 %1190
        %v1192 = vsel %vm613, %v1168, 0.0
        %1193 = vadd.xlane.f32.xlu0 %v1192
        %v1194 = vpop.xlane.xlu0 %1193
        %v1195 = vsel %vm613, %v1169, 0.0
        %1196 = vadd.xlane.f32.xlu0 %v1195
        %v1197 = vpop.xlane.xlu0 %1196
        %v1198 = vsel %vm613, %v1170, 0.0
        %1199 = vadd.xlane.f32.xlu0 %v1198
        %v1200 = vpop.xlane.xlu0 %1199
        %v1201 = vsel %vm613, %v1171, 0.0
        %1202 = vadd.xlane.f32.xlu0 %v1201
        %v1203 = vpop.xlane.xlu0 %1202
        %v1204 = vsel %vm613, %v1172, 0.0
        %1205 = vadd.xlane.f32.xlu0 %v1204
        %v1206 = vpop.xlane.xlu0 %1205
        %v1207 = vsel %vm613, %v1173, 0.0
        %1208 = vadd.xlane.f32.xlu0 %v1207
        %v1209 = vpop.xlane.xlu0 %1208
        %v1210 = vsel %vm613, %v1174, 0.0
        %1211 = vadd.xlane.f32.xlu0 %v1210
        %v1212 = vpop.xlane.xlu0 %1211
        %v1213 = vsel %vm613, %v1175, 0.0
        %1214 = vadd.xlane.f32.xlu0 %v1213
        %v1215 = vpop.xlane.xlu0 %1214
        %v1216 = vsel %vm613, %v1176, 0.0
        %1217 = vadd.xlane.f32.xlu0 %v1216
        %v1218 = vpop.xlane.xlu0 %1217
        %v1219 = vsel %vm613, %v1177, 0.0
        %1220 = vadd.xlane.f32.xlu0 %v1219
        %v1221 = vpop.xlane.xlu0 %1220
        %v1222 = vsel %vm613, %v1178, 0.0
        %1223 = vadd.xlane.f32.xlu0 %v1222
        %v1224 = vpop.xlane.xlu0 %1223
        %v1225 = vsel %vm613, %v1179, 0.0
        %1226 = vadd.xlane.f32.xlu0 %v1225
        %v1227 = vpop.xlane.xlu0 %1226
        %v1228 = vmul.f32 %v1182, %v662
        %v1229 = vmul.f32 %v1185, %v662
        %v1230 = vmul.f32 %v1188, %v662
        %v1231 = vmul.f32 %v1191, %v662
        %v1232 = vmul.f32 %v1194, %v662
        %v1233 = vmul.f32 %v1197, %v662
        %v1234 = vmul.f32 %v1200, %v662
        %v1235 = vmul.f32 %v1203, %v662
        %v1236 = vmul.f32 %v1206, %v662
        %v1237 = vmul.f32 %v1209, %v662
        %v1238 = vmul.f32 %v1212, %v662
        %v1239 = vmul.f32 %v1215, %v662
        %v1240 = vmul.f32 %v1218, %v662
        %v1241 = vmul.f32 %v1221, %v662
        %v1242 = vmul.f32 %v1224, %v662
        %v1243 = vmul.f32 %v1227, %v662
        %v1244 = vadd.f32 %v1228, 1e-05
        %v1245 = vadd.f32 %v1229, 1e-05
        %v1246 = vadd.f32 %v1230, 1e-05
        %v1247 = vadd.f32 %v1231, 1e-05
        %v1248 = vadd.f32 %v1232, 1e-05
        %v1249 = vadd.f32 %v1233, 1e-05
        %v1250 = vadd.f32 %v1234, 1e-05
        %v1251 = vadd.f32 %v1235, 1e-05
        %v1252 = vadd.f32 %v1236, 1e-05
        %v1253 = vadd.f32 %v1237, 1e-05
        %v1254 = vadd.f32 %v1238, 1e-05
        %v1255 = vadd.f32 %v1239, 1e-05
        %v1256 = vadd.f32 %v1240, 1e-05
        %v1257 = vadd.f32 %v1241, 1e-05
        %v1258 = vadd.f32 %v1242, 1e-05
        %v1259 = vadd.f32 %v1243, 1e-05
        %v1260 = vrsqrt.pop %v1244
        %v1261 = vrsqrt.pop %v1245
        %v1262 = vrsqrt.pop %v1246
        %v1263 = vrsqrt.pop %v1247
        %v1264 = vrsqrt.pop %v1248
        %v1265 = vrsqrt.pop %v1249
        %v1266 = vrsqrt.pop %v1250
        %v1267 = vrsqrt.pop %v1251
        %v1268 = vrsqrt.pop %v1252
        %v1269 = vrsqrt.pop %v1253
        %v1270 = vrsqrt.pop %v1254
        %v1271 = vrsqrt.pop %v1255
        %v1272 = vrsqrt.pop %v1256
        %v1273 = vrsqrt.pop %v1257
        %v1274 = vrsqrt.pop %v1258
        %v1275 = vrsqrt.pop %v1259
        %v1276 = vmul.f32 %v1148, %v1260
        %v1277 = vmul.f32 %v1149, %v1261
        %v1278 = vmul.f32 %v1150, %v1262
        %v1279 = vmul.f32 %v1151, %v1263
        %v1280 = vmul.f32 %v1152, %v1264
        %v1281 = vmul.f32 %v1153, %v1265
        %v1282 = vmul.f32 %v1154, %v1266
        %v1283 = vmul.f32 %v1155, %v1267
        %v1284 = vmul.f32 %v1156, %v1268
        %v1285 = vmul.f32 %v1157, %v1269
        %v1286 = vmul.f32 %v1158, %v1270
        %v1287 = vmul.f32 %v1159, %v1271
        %v1288 = vmul.f32 %v1160, %v1272
        %v1289 = vmul.f32 %v1161, %v1273
        %v1290 = vmul.f32 %v1162, %v1274
        %v1291 = vmul.f32 %v1163, %v1275
        %v1292 = vlaneseq
        %v1293 = vshrl.u32 %v1292, 7
        %v1294 = vsub.s32 4, %v1293
        %v1295 = vrot.slane %v371, %v1294
        %v1296 = vmul.f32 %v1276, %v1295
        %v1297 = vmul.f32 %v1277, %v1295
        %v1298 = vmul.f32 %v1278, %v1295
        %v1299 = vmul.f32 %v1279, %v1295
        %v1300 = vmul.f32 %v1280, %v1295
        %v1301 = vmul.f32 %v1281, %v1295
        %v1302 = vmul.f32 %v1282, %v1295
        %v1303 = vmul.f32 %v1283, %v1295
        %v1304 = vmul.f32 %v1284, %v1295
        %v1305 = vmul.f32 %v1285, %v1295
        %v1306 = vmul.f32 %v1286, %v1295
        %v1307 = vmul.f32 %v1287, %v1295
        %v1308 = vmul.f32 %v1288, %v1295
        %v1309 = vmul.f32 %v1289, %v1295
        %v1310 = vmul.f32 %v1290, %v1295
        %v1311 = vmul.f32 %v1291, %v1295
        %v1312 = vlaneseq
        %v1313 = vshrl.u32 %v1312, 7
        %v1314 = vsub.s32 5, %v1313
        %v1315 = vrot.slane %v371, %v1314
        %v1316 = vadd.f32 %v1296, %v1315
        %v1317 = vadd.f32 %v1297, %v1315
        %v1318 = vadd.f32 %v1298, %v1315
        %v1319 = vadd.f32 %v1299, %v1315
        %v1320 = vadd.f32 %v1300, %v1315
        %v1321 = vadd.f32 %v1301, %v1315
        %v1322 = vadd.f32 %v1302, %v1315
        %v1323 = vadd.f32 %v1303, %v1315
        %v1324 = vadd.f32 %v1304, %v1315
        %v1325 = vadd.f32 %v1305, %v1315
        %v1326 = vadd.f32 %v1306, %v1315
        %v1327 = vadd.f32 %v1307, %v1315
        %v1328 = vadd.f32 %v1308, %v1315
        %v1329 = vadd.f32 %v1309, %v1315
        %v1330 = vadd.f32 %v1310, %v1315
        %v1331 = vadd.f32 %v1311, %v1315
        %s1332 = scalar_lea.vmem %s3, 64
        %v1333 = vld [vmem:[%s1332] sm:$0xff]
        %v1334 = vld [vmem:[%s1332 + $0x8] sm:$0xff]
        %v1335 = vld [vmem:[%s1332 + $0x10] sm:$0xff]
        %v1336 = vld [vmem:[%s1332 + $0x18] sm:$0xff]
        %v1337 = vld [vmem:[%s1332 + $0x20] sm:$0xff]
        %v1338 = vld [vmem:[%s1332 + $0x28] sm:$0xff]
        %v1339 = vld [vmem:[%s1332 + $0x30] sm:$0xff]
        %v1340 = vld [vmem:[%s1332 + $0x38] sm:$0xff]
        %v1341 = vlaneseq
        %v1342 = vshrl.u32 %v1341, 7
        %v1343 = vsub.s32 6, %v1342
        %v1344 = vrot.slane %v371, %v1343
        %v1346 = vsel %vm613, %v1316, 0
        %v1349 = vsel %vm613, %v1317, 0
        %v1352 = vsel %vm613, %v1318, 0
        %v1355 = vsel %vm613, %v1319, 0
        %v1358 = vsel %vm613, %v1320, 0
        %v1361 = vsel %vm613, %v1321, 0
        %v1364 = vsel %vm613, %v1322, 0
        %v1367 = vsel %vm613, %v1323, 0
        %v1370 = vsel %vm613, %v1324, 0
        %v1373 = vsel %vm613, %v1325, 0
        %v1376 = vsel %vm613, %v1326, 0
        %v1379 = vsel %vm613, %v1327, 0
        %v1382 = vsel %vm613, %v1328, 0
        %v1385 = vsel %vm613, %v1329, 0
        %v1388 = vsel %vm613, %v1330, 0
        %v1391 = vsel %vm613, %v1331, 0
        %1393 = vmatprep.subr.mxu0 0.0
        %1394 = vmatpush1.msra.mxu0 0.0
        %1395 = vmatprep.subr.mxu0 0.0
        %1396 = vmatpush1.msra.mxu0 0.0
        %1397 = vmatprep.subr.mxu0 0.0
        %1398 = vmatpush1.msra.mxu0 0.0
        %1399 = vmatprep.subr.mxu0 0.0
        %1400 = vmatpush1.msra.mxu0 0.0
        %1401 = vmatprep.subr.mxu0 0.0
        %1402 = vmatpush1.msra.mxu0 0.0
        %1403 = vmatprep.subr.mxu0 0.0
        %1404 = vmatpush1.msra.mxu0 0.0
        %1405 = vmatprep.subr.mxu0 0.0
        %1406 = vmatpush1.msra.mxu0 0.0
        %1407 = vmatprep.subr.mxu0 0.0
        %1408 = vmatpush1.msra.mxu0 0.0
        %1409 = vmatprep.subr.mxu0 0.0
        %1410 = vmatpush1.msra.mxu0 %v1340
        %1411 = vmatprep.subr.mxu0 0.0
        %1412 = vmatpush1.msra.mxu0 %v1339
        %1413 = vmatprep.subr.mxu0 0.0
        %1414 = vmatpush1.msra.mxu0 %v1338
        %1415 = vmatprep.subr.mxu0 0.0
        %1416 = vmatpush1.msra.mxu0 %v1337
        %1417 = vmatprep.subr.mxu0 0.0
        %1418 = vmatpush1.msra.mxu0 %v1336
        %1419 = vmatprep.subr.mxu0 0.0
        %1420 = vmatpush1.msra.mxu0 %v1335
        %1421 = vmatprep.subr.mxu0 0.0
        %1422 = vmatpush1.msra.mxu0 %v1334
        %1423 = vmatprep.subr.mxu0 0.0
        %1424 = vmatpush1.msra.mxu0 %v1333
        %1425 = vmatprep.subr.mxu0 0.0
        %1426 = vmatpush2.msra.mxu0 0.0
        %1427 = vmatprep.subr.mxu0 0.0
        %1428 = vmatpush2.msra.mxu0 0.0
        %1429 = vmatprep.subr.mxu0 0.0
        %1430 = vmatpush2.msra.mxu0 0.0
        %1431 = vmatprep.subr.mxu0 0.0
        %1432 = vmatpush2.msra.mxu0 0.0
        %1433 = vmatprep.subr.mxu0 0.0
        %1434 = vmatpush2.msra.mxu0 0.0
        %1435 = vmatprep.subr.mxu0 0.0
        %1436 = vmatpush2.msra.mxu0 0.0
        %1437 = vmatprep.subr.mxu0 0.0
        %1438 = vmatpush2.msra.mxu0 0.0
        %1439 = vmatprep.subr.mxu0 0.0
        %1440 = vmatpush2.msra.mxu0 0.0
        %1441 = vmatprep.subr.mxu0 0.0
        %1442 = vmatpush2.msra.mxu0 0.0
        %1443 = vmatprep.subr.mxu0 0.0
        %1444 = vmatpush2.msra.mxu0 0.0
        %1445 = vmatprep.subr.mxu0 0.0
        %1446 = vmatpush2.msra.mxu0 0.0
        %1447 = vmatprep.subr.mxu0 0.0
        %1448 = vmatpush2.msra.mxu0 0.0
        %1449 = vmatprep.subr.mxu0 0.0
        %1450 = vmatpush2.msra.mxu0 0.0
        %1451 = vmatprep.subr.mxu0 0.0
        %1452 = vmatpush2.msra.mxu0 0.0
        %1453 = vmatprep.subr.mxu0 0.0
        %1454 = vmatpush2.msra.mxu0 0.0
        %1455 = vmatprep.subr.mxu0 0.0
        %1456 = vmatpush2.msra.mxu0 0.0
        %1457 = vmatprep.mubr.f32.mxu0 0.0
        %1458 = vmatmul.mubr.f32.gmra.mxu0 %v1346
        %v1459 = vpop.f32.mrf.mxu0
        %v1460 = vadd.f32 %v1344, %v1459
        %v1461 = vpop.f32.mrf.mxu0
        %1462 = vmatprep.mubr.f32.mxu0 0.0
        %1463 = vmatmul.mubr.f32.gmra.mxu0 %v1349
        %v1464 = vpop.f32.mrf.mxu0
        %v1465 = vadd.f32 %v1344, %v1464
        %v1466 = vpop.f32.mrf.mxu0
        %1467 = vmatprep.mubr.f32.mxu0 0.0
        %1468 = vmatmul.mubr.f32.gmra.mxu0 %v1352
        %v1469 = vpop.f32.mrf.mxu0
        %v1470 = vadd.f32 %v1344, %v1469
        %v1471 = vpop.f32.mrf.mxu0
        %1472 = vmatprep.mubr.f32.mxu0 0.0
        %1473 = vmatmul.mubr.f32.gmra.mxu0 %v1355
        %v1474 = vpop.f32.mrf.mxu0
        %v1475 = vadd.f32 %v1344, %v1474
        %v1476 = vpop.f32.mrf.mxu0
        %1477 = vmatprep.mubr.f32.mxu0 0.0
        %1478 = vmatmul.mubr.f32.gmra.mxu0 %v1358
        %v1479 = vpop.f32.mrf.mxu0
        %v1480 = vadd.f32 %v1344, %v1479
        %v1481 = vpop.f32.mrf.mxu0
        %1482 = vmatprep.mubr.f32.mxu0 0.0
        %1483 = vmatmul.mubr.f32.gmra.mxu0 %v1361
        %v1484 = vpop.f32.mrf.mxu0
        %v1485 = vadd.f32 %v1344, %v1484
        %v1486 = vpop.f32.mrf.mxu0
        %1487 = vmatprep.mubr.f32.mxu0 0.0
        %1488 = vmatmul.mubr.f32.gmra.mxu0 %v1364
        %v1489 = vpop.f32.mrf.mxu0
        %v1490 = vadd.f32 %v1344, %v1489
        %v1491 = vpop.f32.mrf.mxu0
        %1492 = vmatprep.mubr.f32.mxu0 0.0
        %1493 = vmatmul.mubr.f32.gmra.mxu0 %v1367
        %v1494 = vpop.f32.mrf.mxu0
        %v1495 = vadd.f32 %v1344, %v1494
        %v1496 = vpop.f32.mrf.mxu0
        %1497 = vmatprep.mubr.f32.mxu0 0.0
        %1498 = vmatmul.mubr.f32.gmra.mxu0 %v1370
        %v1499 = vpop.f32.mrf.mxu0
        %v1500 = vadd.f32 %v1344, %v1499
        %v1501 = vpop.f32.mrf.mxu0
        %1502 = vmatprep.mubr.f32.mxu0 0.0
        %1503 = vmatmul.mubr.f32.gmra.mxu0 %v1373
        %v1504 = vpop.f32.mrf.mxu0
        %v1505 = vadd.f32 %v1344, %v1504
        %v1506 = vpop.f32.mrf.mxu0
        %1507 = vmatprep.mubr.f32.mxu0 0.0
        %1508 = vmatmul.mubr.f32.gmra.mxu0 %v1376
        %v1509 = vpop.f32.mrf.mxu0
        %v1510 = vadd.f32 %v1344, %v1509
        %v1511 = vpop.f32.mrf.mxu0
        %1512 = vmatprep.mubr.f32.mxu0 0.0
        %1513 = vmatmul.mubr.f32.gmra.mxu0 %v1379
        %v1514 = vpop.f32.mrf.mxu0
        %v1515 = vadd.f32 %v1344, %v1514
        %v1516 = vpop.f32.mrf.mxu0
        %1517 = vmatprep.mubr.f32.mxu0 0.0
        %1518 = vmatmul.mubr.f32.gmra.mxu0 %v1382
        %v1519 = vpop.f32.mrf.mxu0
        %v1520 = vadd.f32 %v1344, %v1519
        %v1521 = vpop.f32.mrf.mxu0
        %1522 = vmatprep.mubr.f32.mxu0 0.0
        %1523 = vmatmul.mubr.f32.gmra.mxu0 %v1385
        %v1524 = vpop.f32.mrf.mxu0
        %v1525 = vadd.f32 %v1344, %v1524
        %v1526 = vpop.f32.mrf.mxu0
        %1527 = vmatprep.mubr.f32.mxu0 0.0
        %1528 = vmatmul.mubr.f32.gmra.mxu0 %v1388
        %v1529 = vpop.f32.mrf.mxu0
        %v1530 = vadd.f32 %v1344, %v1529
        %v1531 = vpop.f32.mrf.mxu0
        %1532 = vmatprep.mubr.f32.mxu0 0.0
        %1533 = vmatmul.mubr.f32.gmra.mxu0 %v1391
        %v1534 = vpop.f32.mrf.mxu0
        %v1535 = vadd.f32 %v1344, %v1534
        %v1536 = vpop.f32.mrf.mxu0
        %1537 = vdwg.mxu0
        %v1538 = vmax.f32 %v1460, 0.0
        %v1539 = vmax.f32 %v1465, 0.0
        %v1540 = vmax.f32 %v1470, 0.0
        %v1541 = vmax.f32 %v1475, 0.0
        %v1542 = vmax.f32 %v1480, 0.0
        %v1543 = vmax.f32 %v1485, 0.0
        %v1544 = vmax.f32 %v1490, 0.0
        %v1545 = vmax.f32 %v1495, 0.0
        %v1546 = vmax.f32 %v1500, 0.0
        %v1547 = vmax.f32 %v1505, 0.0
        %v1548 = vmax.f32 %v1510, 0.0
        %v1549 = vmax.f32 %v1515, 0.0
        %v1550 = vmax.f32 %v1520, 0.0
        %v1551 = vmax.f32 %v1525, 0.0
        %v1552 = vmax.f32 %v1530, 0.0
        %v1553 = vmax.f32 %v1535, 0.0
        %v1554 = vsel %vm613, %v1538, 0.0
        %1555 = vadd.xlane.f32.xlu0 %v1554
        %v1556 = vpop.xlane.xlu0 %1555
        %v1557 = vsel %vm613, %v1539, 0.0
        %1558 = vadd.xlane.f32.xlu0 %v1557
        %v1559 = vpop.xlane.xlu0 %1558
        %v1560 = vsel %vm613, %v1540, 0.0
        %1561 = vadd.xlane.f32.xlu0 %v1560
        %v1562 = vpop.xlane.xlu0 %1561
        %v1563 = vsel %vm613, %v1541, 0.0
        %1564 = vadd.xlane.f32.xlu0 %v1563
        %v1565 = vpop.xlane.xlu0 %1564
        %v1566 = vsel %vm613, %v1542, 0.0
        %1567 = vadd.xlane.f32.xlu0 %v1566
        %v1568 = vpop.xlane.xlu0 %1567
        %v1569 = vsel %vm613, %v1543, 0.0
        %1570 = vadd.xlane.f32.xlu0 %v1569
        %v1571 = vpop.xlane.xlu0 %1570
        %v1572 = vsel %vm613, %v1544, 0.0
        %1573 = vadd.xlane.f32.xlu0 %v1572
        %v1574 = vpop.xlane.xlu0 %1573
        %v1575 = vsel %vm613, %v1545, 0.0
        %1576 = vadd.xlane.f32.xlu0 %v1575
        %v1577 = vpop.xlane.xlu0 %1576
        %v1578 = vsel %vm613, %v1546, 0.0
        %1579 = vadd.xlane.f32.xlu0 %v1578
        %v1580 = vpop.xlane.xlu0 %1579
        %v1581 = vsel %vm613, %v1547, 0.0
        %1582 = vadd.xlane.f32.xlu0 %v1581
        %v1583 = vpop.xlane.xlu0 %1582
        %v1584 = vsel %vm613, %v1548, 0.0
        %1585 = vadd.xlane.f32.xlu0 %v1584
        %v1586 = vpop.xlane.xlu0 %1585
        %v1587 = vsel %vm613, %v1549, 0.0
        %1588 = vadd.xlane.f32.xlu0 %v1587
        %v1589 = vpop.xlane.xlu0 %1588
        %v1590 = vsel %vm613, %v1550, 0.0
        %1591 = vadd.xlane.f32.xlu0 %v1590
        %v1592 = vpop.xlane.xlu0 %1591
        %v1593 = vsel %vm613, %v1551, 0.0
        %1594 = vadd.xlane.f32.xlu0 %v1593
        %v1595 = vpop.xlane.xlu0 %1594
        %v1596 = vsel %vm613, %v1552, 0.0
        %1597 = vadd.xlane.f32.xlu0 %v1596
        %v1598 = vpop.xlane.xlu0 %1597
        %v1599 = vsel %vm613, %v1553, 0.0
        %1600 = vadd.xlane.f32.xlu0 %v1599
        %v1601 = vpop.xlane.xlu0 %1600
        %v1602 = vmul.f32 %v1556, %v662
        %v1603 = vmul.f32 %v1559, %v662
        %v1604 = vmul.f32 %v1562, %v662
        %v1605 = vmul.f32 %v1565, %v662
        %v1606 = vmul.f32 %v1568, %v662
        %v1607 = vmul.f32 %v1571, %v662
        %v1608 = vmul.f32 %v1574, %v662
        %v1609 = vmul.f32 %v1577, %v662
        %v1610 = vmul.f32 %v1580, %v662
        %v1611 = vmul.f32 %v1583, %v662
        %v1612 = vmul.f32 %v1586, %v662
        %v1613 = vmul.f32 %v1589, %v662
        %v1614 = vmul.f32 %v1592, %v662
        %v1615 = vmul.f32 %v1595, %v662
        %v1616 = vmul.f32 %v1598, %v662
        %v1617 = vmul.f32 %v1601, %v662
        %v1618 = vsub.f32 %v1538, %v1602
        %v1619 = vsub.f32 %v1539, %v1603
        %v1620 = vsub.f32 %v1540, %v1604
        %v1621 = vsub.f32 %v1541, %v1605
        %v1622 = vsub.f32 %v1542, %v1606
        %v1623 = vsub.f32 %v1543, %v1607
        %v1624 = vsub.f32 %v1544, %v1608
        %v1625 = vsub.f32 %v1545, %v1609
        %v1626 = vsub.f32 %v1546, %v1610
        %v1627 = vsub.f32 %v1547, %v1611
        %v1628 = vsub.f32 %v1548, %v1612
        %v1629 = vsub.f32 %v1549, %v1613
        %v1630 = vsub.f32 %v1550, %v1614
        %v1631 = vsub.f32 %v1551, %v1615
        %v1632 = vsub.f32 %v1552, %v1616
        %v1633 = vsub.f32 %v1553, %v1617
        %v1634 = vmul.f32 %v1618, %v1618
        %v1635 = vmul.f32 %v1619, %v1619
        %v1636 = vmul.f32 %v1620, %v1620
        %v1637 = vmul.f32 %v1621, %v1621
        %v1638 = vmul.f32 %v1622, %v1622
        %v1639 = vmul.f32 %v1623, %v1623
        %v1640 = vmul.f32 %v1624, %v1624
        %v1641 = vmul.f32 %v1625, %v1625
        %v1642 = vmul.f32 %v1626, %v1626
        %v1643 = vmul.f32 %v1627, %v1627
        %v1644 = vmul.f32 %v1628, %v1628
        %v1645 = vmul.f32 %v1629, %v1629
        %v1646 = vmul.f32 %v1630, %v1630
        %v1647 = vmul.f32 %v1631, %v1631
        %v1648 = vmul.f32 %v1632, %v1632
        %v1649 = vmul.f32 %v1633, %v1633
        %v1650 = vsel %vm613, %v1634, 0.0
        %1651 = vadd.xlane.f32.xlu0 %v1650
        %v1652 = vpop.xlane.xlu0 %1651
        %v1653 = vsel %vm613, %v1635, 0.0
        %1654 = vadd.xlane.f32.xlu0 %v1653
        %v1655 = vpop.xlane.xlu0 %1654
        %v1656 = vsel %vm613, %v1636, 0.0
        %1657 = vadd.xlane.f32.xlu0 %v1656
        %v1658 = vpop.xlane.xlu0 %1657
        %v1659 = vsel %vm613, %v1637, 0.0
        %1660 = vadd.xlane.f32.xlu0 %v1659
        %v1661 = vpop.xlane.xlu0 %1660
        %v1662 = vsel %vm613, %v1638, 0.0
        %1663 = vadd.xlane.f32.xlu0 %v1662
        %v1664 = vpop.xlane.xlu0 %1663
        %v1665 = vsel %vm613, %v1639, 0.0
        %1666 = vadd.xlane.f32.xlu0 %v1665
        %v1667 = vpop.xlane.xlu0 %1666
        %v1668 = vsel %vm613, %v1640, 0.0
        %1669 = vadd.xlane.f32.xlu0 %v1668
        %v1670 = vpop.xlane.xlu0 %1669
        %v1671 = vsel %vm613, %v1641, 0.0
        %1672 = vadd.xlane.f32.xlu0 %v1671
        %v1673 = vpop.xlane.xlu0 %1672
        %v1674 = vsel %vm613, %v1642, 0.0
        %1675 = vadd.xlane.f32.xlu0 %v1674
        %v1676 = vpop.xlane.xlu0 %1675
        %v1677 = vsel %vm613, %v1643, 0.0
        %1678 = vadd.xlane.f32.xlu0 %v1677
        %v1679 = vpop.xlane.xlu0 %1678
        %v1680 = vsel %vm613, %v1644, 0.0
        %1681 = vadd.xlane.f32.xlu0 %v1680
        %v1682 = vpop.xlane.xlu0 %1681
        %v1683 = vsel %vm613, %v1645, 0.0
        %1684 = vadd.xlane.f32.xlu0 %v1683
        %v1685 = vpop.xlane.xlu0 %1684
        %v1686 = vsel %vm613, %v1646, 0.0
        %1687 = vadd.xlane.f32.xlu0 %v1686
        %v1688 = vpop.xlane.xlu0 %1687
        %v1689 = vsel %vm613, %v1647, 0.0
        %1690 = vadd.xlane.f32.xlu0 %v1689
        %v1691 = vpop.xlane.xlu0 %1690
        %v1692 = vsel %vm613, %v1648, 0.0
        %1693 = vadd.xlane.f32.xlu0 %v1692
        %v1694 = vpop.xlane.xlu0 %1693
        %v1695 = vsel %vm613, %v1649, 0.0
        %1696 = vadd.xlane.f32.xlu0 %v1695
        %v1697 = vpop.xlane.xlu0 %1696
        %v1698 = vmul.f32 %v1652, %v662
        %v1699 = vmul.f32 %v1655, %v662
        %v1700 = vmul.f32 %v1658, %v662
        %v1701 = vmul.f32 %v1661, %v662
        %v1702 = vmul.f32 %v1664, %v662
        %v1703 = vmul.f32 %v1667, %v662
        %v1704 = vmul.f32 %v1670, %v662
        %v1705 = vmul.f32 %v1673, %v662
        %v1706 = vmul.f32 %v1676, %v662
        %v1707 = vmul.f32 %v1679, %v662
        %v1708 = vmul.f32 %v1682, %v662
        %v1709 = vmul.f32 %v1685, %v662
        %v1710 = vmul.f32 %v1688, %v662
        %v1711 = vmul.f32 %v1691, %v662
        %v1712 = vmul.f32 %v1694, %v662
        %v1713 = vmul.f32 %v1697, %v662
        %v1714 = vadd.f32 %v1698, 1e-05
        %v1715 = vadd.f32 %v1699, 1e-05
        %v1716 = vadd.f32 %v1700, 1e-05
        %v1717 = vadd.f32 %v1701, 1e-05
        %v1718 = vadd.f32 %v1702, 1e-05
        %v1719 = vadd.f32 %v1703, 1e-05
        %v1720 = vadd.f32 %v1704, 1e-05
        %v1721 = vadd.f32 %v1705, 1e-05
        %v1722 = vadd.f32 %v1706, 1e-05
        %v1723 = vadd.f32 %v1707, 1e-05
        %v1724 = vadd.f32 %v1708, 1e-05
        %v1725 = vadd.f32 %v1709, 1e-05
        %v1726 = vadd.f32 %v1710, 1e-05
        %v1727 = vadd.f32 %v1711, 1e-05
        %v1728 = vadd.f32 %v1712, 1e-05
        %v1729 = vadd.f32 %v1713, 1e-05
        %v1730 = vrsqrt.pop %v1714
        %v1731 = vrsqrt.pop %v1715
        %v1732 = vrsqrt.pop %v1716
        %v1733 = vrsqrt.pop %v1717
        %v1734 = vrsqrt.pop %v1718
        %v1735 = vrsqrt.pop %v1719
        %v1736 = vrsqrt.pop %v1720
        %v1737 = vrsqrt.pop %v1721
        %v1738 = vrsqrt.pop %v1722
        %v1739 = vrsqrt.pop %v1723
        %v1740 = vrsqrt.pop %v1724
        %v1741 = vrsqrt.pop %v1725
        %v1742 = vrsqrt.pop %v1726
        %v1743 = vrsqrt.pop %v1727
        %v1744 = vrsqrt.pop %v1728
        %v1745 = vrsqrt.pop %v1729
        %v1746 = vmul.f32 %v1618, %v1730
        %v1747 = vmul.f32 %v1619, %v1731
        %v1748 = vmul.f32 %v1620, %v1732
        %v1749 = vmul.f32 %v1621, %v1733
        %v1750 = vmul.f32 %v1622, %v1734
        %v1751 = vmul.f32 %v1623, %v1735
        %v1752 = vmul.f32 %v1624, %v1736
        %v1753 = vmul.f32 %v1625, %v1737
        %v1754 = vmul.f32 %v1626, %v1738
        %v1755 = vmul.f32 %v1627, %v1739
        %v1756 = vmul.f32 %v1628, %v1740
        %v1757 = vmul.f32 %v1629, %v1741
        %v1758 = vmul.f32 %v1630, %v1742
        %v1759 = vmul.f32 %v1631, %v1743
        %v1760 = vmul.f32 %v1632, %v1744
        %v1761 = vmul.f32 %v1633, %v1745
        %v1762 = vlaneseq
        %v1763 = vshrl.u32 %v1762, 7
        %v1764 = vsub.s32 7, %v1763
        %v1765 = vrot.slane %v371, %v1764
        %v1766 = vmul.f32 %v1746, %v1765
        %v1767 = vmul.f32 %v1747, %v1765
        %v1768 = vmul.f32 %v1748, %v1765
        %v1769 = vmul.f32 %v1749, %v1765
        %v1770 = vmul.f32 %v1750, %v1765
        %v1771 = vmul.f32 %v1751, %v1765
        %v1772 = vmul.f32 %v1752, %v1765
        %v1773 = vmul.f32 %v1753, %v1765
        %v1774 = vmul.f32 %v1754, %v1765
        %v1775 = vmul.f32 %v1755, %v1765
        %v1776 = vmul.f32 %v1756, %v1765
        %v1777 = vmul.f32 %v1757, %v1765
        %v1778 = vmul.f32 %v1758, %v1765
        %v1779 = vmul.f32 %v1759, %v1765
        %v1780 = vmul.f32 %v1760, %v1765
        %v1781 = vmul.f32 %v1761, %v1765
        %v1782 = vlaneseq
        %v1783 = vshrl.u32 %v1782, 7
        %v1784 = vsub.s32 0, %v1783
        %v1785 = vrot.slane %v372, %v1784
        %v1786 = vadd.f32 %v1766, %v1785
        %v1787 = vadd.f32 %v1767, %v1785
        %v1788 = vadd.f32 %v1768, %v1785
        %v1789 = vadd.f32 %v1769, %v1785
        %v1790 = vadd.f32 %v1770, %v1785
        %v1791 = vadd.f32 %v1771, %v1785
        %v1792 = vadd.f32 %v1772, %v1785
        %v1793 = vadd.f32 %v1773, %v1785
        %v1794 = vadd.f32 %v1774, %v1785
        %v1795 = vadd.f32 %v1775, %v1785
        %v1796 = vadd.f32 %v1776, %v1785
        %v1797 = vadd.f32 %v1777, %v1785
        %v1798 = vadd.f32 %v1778, %v1785
        %v1799 = vadd.f32 %v1779, %v1785
        %v1800 = vadd.f32 %v1780, %v1785
        %v1801 = vadd.f32 %v1781, %v1785
        %v1802 = vld [vmem:[%s361] sm:$0xff]
        %v1803 = vld [vmem:[%s361 + $0x8] sm:$0xff]
        %v1804 = vld [vmem:[%s361 + $0x10] sm:$0xff]
        %v1805 = vld [vmem:[%s361 + $0x18] sm:$0xff]
        %v1806 = vld [vmem:[%s361 + $0x20] sm:$0xff]
        %v1807 = vld [vmem:[%s361 + $0x28] sm:$0xff]
        %v1808 = vld [vmem:[%s361 + $0x30] sm:$0xff]
        %v1809 = vld [vmem:[%s361 + $0x38] sm:$0xff]
        %v1810 = vld [vmem:[%s361 + $0x40] sm:$0xff]
        %v1811 = vld [vmem:[%s361 + $0x48] sm:$0xff]
        %v1812 = vld [vmem:[%s361 + $0x50] sm:$0xff]
        %v1813 = vld [vmem:[%s361 + $0x58] sm:$0xff]
        %v1814 = vld [vmem:[%s361 + $0x60] sm:$0xff]
        %v1815 = vld [vmem:[%s361 + $0x68] sm:$0xff]
        %v1816 = vld [vmem:[%s361 + $0x70] sm:$0xff]
        %v1817 = vld [vmem:[%s361 + $0x78] sm:$0xff]
        %v1818 = vld [vmem:[%s4] sm:$0xff]
        %v1819 = vld [vmem:[%s4 + $0x8] sm:$0xff]
        %v1820 = vld [vmem:[%s4 + $0x10] sm:$0xff]
        %v1821 = vld [vmem:[%s4 + $0x18] sm:$0xff]
        %v1822 = vld [vmem:[%s4 + $0x20] sm:$0xff]
        %v1823 = vld [vmem:[%s4 + $0x28] sm:$0xff]
        %v1824 = vld [vmem:[%s4 + $0x30] sm:$0xff]
        %v1825 = vld [vmem:[%s4 + $0x38] sm:$0xff]
        %v1826 = vlaneseq
        %v1827 = vshrl.u32 %v1826, 7
        %v1828 = vsub.s32 3, %v1827
        %v1829 = vrot.slane %v370, %v1828
        %v1831 = vsel %vm613, %v1786, 0
        %v1834 = vsel %vm613, %v1787, 0
        %v1837 = vsel %vm613, %v1788, 0
        %v1840 = vsel %vm613, %v1789, 0
        %v1843 = vsel %vm613, %v1790, 0
        %v1846 = vsel %vm613, %v1791, 0
        %v1849 = vsel %vm613, %v1792, 0
        %v1852 = vsel %vm613, %v1793, 0
        %v1855 = vsel %vm613, %v1794, 0
        %v1858 = vsel %vm613, %v1795, 0
        %v1861 = vsel %vm613, %v1796, 0
        %v1864 = vsel %vm613, %v1797, 0
        %v1867 = vsel %vm613, %v1798, 0
        %v1870 = vsel %vm613, %v1799, 0
        %v1873 = vsel %vm613, %v1800, 0
        %v1876 = vsel %vm613, %v1801, 0
        %1878 = vmatprep.subr.mxu0 0.0
        %1879 = vmatpush1.msra.mxu0 0.0
        %1880 = vmatprep.subr.mxu0 0.0
        %1881 = vmatpush1.msra.mxu0 0.0
        %1882 = vmatprep.subr.mxu0 0.0
        %1883 = vmatpush1.msra.mxu0 0.0
        %1884 = vmatprep.subr.mxu0 0.0
        %1885 = vmatpush1.msra.mxu0 0.0
        %1886 = vmatprep.subr.mxu0 0.0
        %1887 = vmatpush1.msra.mxu0 0.0
        %1888 = vmatprep.subr.mxu0 0.0
        %1889 = vmatpush1.msra.mxu0 0.0
        %1890 = vmatprep.subr.mxu0 0.0
        %1891 = vmatpush1.msra.mxu0 0.0
        %1892 = vmatprep.subr.mxu0 0.0
        %1893 = vmatpush1.msra.mxu0 0.0
        %1894 = vmatprep.subr.mxu0 0.0
        %1895 = vmatpush1.msra.mxu0 %v1825
        %1896 = vmatprep.subr.mxu0 0.0
        %1897 = vmatpush1.msra.mxu0 %v1824
        %1898 = vmatprep.subr.mxu0 0.0
        %1899 = vmatpush1.msra.mxu0 %v1823
        %1900 = vmatprep.subr.mxu0 0.0
        %1901 = vmatpush1.msra.mxu0 %v1822
        %1902 = vmatprep.subr.mxu0 0.0
        %1903 = vmatpush1.msra.mxu0 %v1821
        %1904 = vmatprep.subr.mxu0 0.0
        %1905 = vmatpush1.msra.mxu0 %v1820
        %1906 = vmatprep.subr.mxu0 0.0
        %1907 = vmatpush1.msra.mxu0 %v1819
        %1908 = vmatprep.subr.mxu0 0.0
        %1909 = vmatpush1.msra.mxu0 %v1818
        %1910 = vmatprep.subr.mxu0 0.0
        %1911 = vmatpush2.msra.mxu0 0.0
        %1912 = vmatprep.subr.mxu0 0.0
        %1913 = vmatpush2.msra.mxu0 0.0
        %1914 = vmatprep.subr.mxu0 0.0
        %1915 = vmatpush2.msra.mxu0 0.0
        %1916 = vmatprep.subr.mxu0 0.0
        %1917 = vmatpush2.msra.mxu0 0.0
        %1918 = vmatprep.subr.mxu0 0.0
        %1919 = vmatpush2.msra.mxu0 0.0
        %1920 = vmatprep.subr.mxu0 0.0
        %1921 = vmatpush2.msra.mxu0 0.0
        %1922 = vmatprep.subr.mxu0 0.0
        %1923 = vmatpush2.msra.mxu0 0.0
        %1924 = vmatprep.subr.mxu0 0.0
        %1925 = vmatpush2.msra.mxu0 0.0
        %1926 = vmatprep.subr.mxu0 0.0
        %1927 = vmatpush2.msra.mxu0 0.0
        %1928 = vmatprep.subr.mxu0 0.0
        %1929 = vmatpush2.msra.mxu0 0.0
        %1930 = vmatprep.subr.mxu0 0.0
        %1931 = vmatpush2.msra.mxu0 0.0
        %1932 = vmatprep.subr.mxu0 0.0
        %1933 = vmatpush2.msra.mxu0 0.0
        %1934 = vmatprep.subr.mxu0 0.0
        %1935 = vmatpush2.msra.mxu0 0.0
        %1936 = vmatprep.subr.mxu0 0.0
        %1937 = vmatpush2.msra.mxu0 0.0
        %1938 = vmatprep.subr.mxu0 0.0
        %1939 = vmatpush2.msra.mxu0 0.0
        %1940 = vmatprep.subr.mxu0 0.0
        %1941 = vmatpush2.msra.mxu0 0.0
        %1942 = vmatprep.mubr.f32.mxu0 0.0
        %1943 = vmatmul.mubr.f32.gmra.mxu0 %v1831
        %v1944 = vpop.f32.mrf.mxu0
        %v1945 = vadd.f32 %v1829, %v1944
        %v1946 = vpop.f32.mrf.mxu0
        %1947 = vmatprep.mubr.f32.mxu0 0.0
        %1948 = vmatmul.mubr.f32.gmra.mxu0 %v1834
        %v1949 = vpop.f32.mrf.mxu0
        %v1950 = vadd.f32 %v1829, %v1949
        %v1951 = vpop.f32.mrf.mxu0
        %1952 = vmatprep.mubr.f32.mxu0 0.0
        %1953 = vmatmul.mubr.f32.gmra.mxu0 %v1837
        %v1954 = vpop.f32.mrf.mxu0
        %v1955 = vadd.f32 %v1829, %v1954
        %v1956 = vpop.f32.mrf.mxu0
        %1957 = vmatprep.mubr.f32.mxu0 0.0
        %1958 = vmatmul.mubr.f32.gmra.mxu0 %v1840
        %v1959 = vpop.f32.mrf.mxu0
        %v1960 = vadd.f32 %v1829, %v1959
        %v1961 = vpop.f32.mrf.mxu0
        %1962 = vmatprep.mubr.f32.mxu0 0.0
        %1963 = vmatmul.mubr.f32.gmra.mxu0 %v1843
        %v1964 = vpop.f32.mrf.mxu0
        %v1965 = vadd.f32 %v1829, %v1964
        %v1966 = vpop.f32.mrf.mxu0
        %1967 = vmatprep.mubr.f32.mxu0 0.0
        %1968 = vmatmul.mubr.f32.gmra.mxu0 %v1846
        %v1969 = vpop.f32.mrf.mxu0
        %v1970 = vadd.f32 %v1829, %v1969
        %v1971 = vpop.f32.mrf.mxu0
        %1972 = vmatprep.mubr.f32.mxu0 0.0
        %1973 = vmatmul.mubr.f32.gmra.mxu0 %v1849
        %v1974 = vpop.f32.mrf.mxu0
        %v1975 = vadd.f32 %v1829, %v1974
        %v1976 = vpop.f32.mrf.mxu0
        %1977 = vmatprep.mubr.f32.mxu0 0.0
        %1978 = vmatmul.mubr.f32.gmra.mxu0 %v1852
        %v1979 = vpop.f32.mrf.mxu0
        %v1980 = vadd.f32 %v1829, %v1979
        %v1981 = vpop.f32.mrf.mxu0
        %1982 = vmatprep.mubr.f32.mxu0 0.0
        %1983 = vmatmul.mubr.f32.gmra.mxu0 %v1855
        %v1984 = vpop.f32.mrf.mxu0
        %v1985 = vadd.f32 %v1829, %v1984
        %v1986 = vpop.f32.mrf.mxu0
        %1987 = vmatprep.mubr.f32.mxu0 0.0
        %1988 = vmatmul.mubr.f32.gmra.mxu0 %v1858
        %v1989 = vpop.f32.mrf.mxu0
        %v1990 = vadd.f32 %v1829, %v1989
        %v1991 = vpop.f32.mrf.mxu0
        %1992 = vmatprep.mubr.f32.mxu0 0.0
        %1993 = vmatmul.mubr.f32.gmra.mxu0 %v1861
        %v1994 = vpop.f32.mrf.mxu0
        %v1995 = vadd.f32 %v1829, %v1994
        %v1996 = vpop.f32.mrf.mxu0
        %1997 = vmatprep.mubr.f32.mxu0 0.0
        %1998 = vmatmul.mubr.f32.gmra.mxu0 %v1864
        %v1999 = vpop.f32.mrf.mxu0
        %v2000 = vadd.f32 %v1829, %v1999
        %v2001 = vpop.f32.mrf.mxu0
        %2002 = vmatprep.mubr.f32.mxu0 0.0
        %2003 = vmatmul.mubr.f32.gmra.mxu0 %v1867
        %v2004 = vpop.f32.mrf.mxu0
        %v2005 = vadd.f32 %v1829, %v2004
        %v2006 = vpop.f32.mrf.mxu0
        %2007 = vmatprep.mubr.f32.mxu0 0.0
        %2008 = vmatmul.mubr.f32.gmra.mxu0 %v1870
        %v2009 = vpop.f32.mrf.mxu0
        %v2010 = vadd.f32 %v1829, %v2009
        %v2011 = vpop.f32.mrf.mxu0
        %2012 = vmatprep.mubr.f32.mxu0 0.0
        %2013 = vmatmul.mubr.f32.gmra.mxu0 %v1873
        %v2014 = vpop.f32.mrf.mxu0
        %v2015 = vadd.f32 %v1829, %v2014
        %v2016 = vpop.f32.mrf.mxu0
        %2017 = vmatprep.mubr.f32.mxu0 0.0
        %2018 = vmatmul.mubr.f32.gmra.mxu0 %v1876
        %v2019 = vpop.f32.mrf.mxu0
        %v2020 = vadd.f32 %v1829, %v2019
        %v2021 = vpop.f32.mrf.mxu0
        %2022 = vdwg.mxu0
        %s2023 = scalar_lea.vmem %s4, 64
        %v2024 = vld [vmem:[%s2023] sm:$0xff]
        %v2025 = vld [vmem:[%s2023 + $0x8] sm:$0xff]
        %v2026 = vld [vmem:[%s2023 + $0x10] sm:$0xff]
        %v2027 = vld [vmem:[%s2023 + $0x18] sm:$0xff]
        %v2028 = vld [vmem:[%s2023 + $0x20] sm:$0xff]
        %v2029 = vld [vmem:[%s2023 + $0x28] sm:$0xff]
        %v2030 = vld [vmem:[%s2023 + $0x30] sm:$0xff]
        %v2031 = vld [vmem:[%s2023 + $0x38] sm:$0xff]
        %v2032 = vlaneseq
        %v2033 = vshrl.u32 %v2032, 7
        %v2034 = vsub.s32 4, %v2033
        %v2035 = vrot.slane %v370, %v2034
        %2036 = vmatprep.subr.mxu0 0.0
        %2037 = vmatpush1.msra.mxu0 0.0
        %2038 = vmatprep.subr.mxu0 0.0
        %2039 = vmatpush1.msra.mxu0 0.0
        %2040 = vmatprep.subr.mxu0 0.0
        %2041 = vmatpush1.msra.mxu0 0.0
        %2042 = vmatprep.subr.mxu0 0.0
        %2043 = vmatpush1.msra.mxu0 0.0
        %2044 = vmatprep.subr.mxu0 0.0
        %2045 = vmatpush1.msra.mxu0 0.0
        %2046 = vmatprep.subr.mxu0 0.0
        %2047 = vmatpush1.msra.mxu0 0.0
        %2048 = vmatprep.subr.mxu0 0.0
        %2049 = vmatpush1.msra.mxu0 0.0
        %2050 = vmatprep.subr.mxu0 0.0
        %2051 = vmatpush1.msra.mxu0 0.0
        %2052 = vmatprep.subr.mxu0 0.0
        %2053 = vmatpush1.msra.mxu0 %v2031
        %2054 = vmatprep.subr.mxu0 0.0
        %2055 = vmatpush1.msra.mxu0 %v2030
        %2056 = vmatprep.subr.mxu0 0.0
        %2057 = vmatpush1.msra.mxu0 %v2029
        %2058 = vmatprep.subr.mxu0 0.0
        %2059 = vmatpush1.msra.mxu0 %v2028
        %2060 = vmatprep.subr.mxu0 0.0
        %2061 = vmatpush1.msra.mxu0 %v2027
        %2062 = vmatprep.subr.mxu0 0.0
        %2063 = vmatpush1.msra.mxu0 %v2026
        %2064 = vmatprep.subr.mxu0 0.0
        %2065 = vmatpush1.msra.mxu0 %v2025
        %2066 = vmatprep.subr.mxu0 0.0
        %2067 = vmatpush1.msra.mxu0 %v2024
        %2068 = vmatprep.subr.mxu0 0.0
        %2069 = vmatpush2.msra.mxu0 0.0
        %2070 = vmatprep.subr.mxu0 0.0
        %2071 = vmatpush2.msra.mxu0 0.0
        %2072 = vmatprep.subr.mxu0 0.0
        %2073 = vmatpush2.msra.mxu0 0.0
        %2074 = vmatprep.subr.mxu0 0.0
        %2075 = vmatpush2.msra.mxu0 0.0
        %2076 = vmatprep.subr.mxu0 0.0
        %2077 = vmatpush2.msra.mxu0 0.0
        %2078 = vmatprep.subr.mxu0 0.0
        %2079 = vmatpush2.msra.mxu0 0.0
        %2080 = vmatprep.subr.mxu0 0.0
        %2081 = vmatpush2.msra.mxu0 0.0
        %2082 = vmatprep.subr.mxu0 0.0
        %2083 = vmatpush2.msra.mxu0 0.0
        %2084 = vmatprep.subr.mxu0 0.0
        %2085 = vmatpush2.msra.mxu0 0.0
        %2086 = vmatprep.subr.mxu0 0.0
        %2087 = vmatpush2.msra.mxu0 0.0
        %2088 = vmatprep.subr.mxu0 0.0
        %2089 = vmatpush2.msra.mxu0 0.0
        %2090 = vmatprep.subr.mxu0 0.0
        %2091 = vmatpush2.msra.mxu0 0.0
        %2092 = vmatprep.subr.mxu0 0.0
        %2093 = vmatpush2.msra.mxu0 0.0
        %2094 = vmatprep.subr.mxu0 0.0
        %2095 = vmatpush2.msra.mxu0 0.0
        %2096 = vmatprep.subr.mxu0 0.0
        %2097 = vmatpush2.msra.mxu0 0.0
        %2098 = vmatprep.subr.mxu0 0.0
        %2099 = vmatpush2.msra.mxu0 0.0
        %2100 = vmatprep.mubr.f32.mxu0 0.0
        %2101 = vmatmul.mubr.f32.gmra.mxu0 %v1831
        %v2102 = vpop.f32.mrf.mxu0
        %v2103 = vadd.f32 %v2035, %v2102
        %v2104 = vpop.f32.mrf.mxu0
        %2105 = vmatprep.mubr.f32.mxu0 0.0
        %2106 = vmatmul.mubr.f32.gmra.mxu0 %v1834
        %v2107 = vpop.f32.mrf.mxu0
        %v2108 = vadd.f32 %v2035, %v2107
        %v2109 = vpop.f32.mrf.mxu0
        %2110 = vmatprep.mubr.f32.mxu0 0.0
        %2111 = vmatmul.mubr.f32.gmra.mxu0 %v1837
        %v2112 = vpop.f32.mrf.mxu0
        %v2113 = vadd.f32 %v2035, %v2112
        %v2114 = vpop.f32.mrf.mxu0
        %2115 = vmatprep.mubr.f32.mxu0 0.0
        %2116 = vmatmul.mubr.f32.gmra.mxu0 %v1840
        %v2117 = vpop.f32.mrf.mxu0
        %v2118 = vadd.f32 %v2035, %v2117
        %v2119 = vpop.f32.mrf.mxu0
        %2120 = vmatprep.mubr.f32.mxu0 0.0
        %2121 = vmatmul.mubr.f32.gmra.mxu0 %v1843
        %v2122 = vpop.f32.mrf.mxu0
        %v2123 = vadd.f32 %v2035, %v2122
        %v2124 = vpop.f32.mrf.mxu0
        %2125 = vmatprep.mubr.f32.mxu0 0.0
        %2126 = vmatmul.mubr.f32.gmra.mxu0 %v1846
        %v2127 = vpop.f32.mrf.mxu0
        %v2128 = vadd.f32 %v2035, %v2127
        %v2129 = vpop.f32.mrf.mxu0
        %2130 = vmatprep.mubr.f32.mxu0 0.0
        %2131 = vmatmul.mubr.f32.gmra.mxu0 %v1849
        %v2132 = vpop.f32.mrf.mxu0
        %v2133 = vadd.f32 %v2035, %v2132
        %v2134 = vpop.f32.mrf.mxu0
        %2135 = vmatprep.mubr.f32.mxu0 0.0
        %2136 = vmatmul.mubr.f32.gmra.mxu0 %v1852
        %v2137 = vpop.f32.mrf.mxu0
        %v2138 = vadd.f32 %v2035, %v2137
        %v2139 = vpop.f32.mrf.mxu0
        %2140 = vmatprep.mubr.f32.mxu0 0.0
        %2141 = vmatmul.mubr.f32.gmra.mxu0 %v1855
        %v2142 = vpop.f32.mrf.mxu0
        %v2143 = vadd.f32 %v2035, %v2142
        %v2144 = vpop.f32.mrf.mxu0
        %2145 = vmatprep.mubr.f32.mxu0 0.0
        %2146 = vmatmul.mubr.f32.gmra.mxu0 %v1858
        %v2147 = vpop.f32.mrf.mxu0
        %v2148 = vadd.f32 %v2035, %v2147
        %v2149 = vpop.f32.mrf.mxu0
        %2150 = vmatprep.mubr.f32.mxu0 0.0
        %2151 = vmatmul.mubr.f32.gmra.mxu0 %v1861
        %v2152 = vpop.f32.mrf.mxu0
        %v2153 = vadd.f32 %v2035, %v2152
        %v2154 = vpop.f32.mrf.mxu0
        %2155 = vmatprep.mubr.f32.mxu0 0.0
        %2156 = vmatmul.mubr.f32.gmra.mxu0 %v1864
        %v2157 = vpop.f32.mrf.mxu0
        %v2158 = vadd.f32 %v2035, %v2157
        %v2159 = vpop.f32.mrf.mxu0
        %2160 = vmatprep.mubr.f32.mxu0 0.0
        %2161 = vmatmul.mubr.f32.gmra.mxu0 %v1867
        %v2162 = vpop.f32.mrf.mxu0
        %v2163 = vadd.f32 %v2035, %v2162
        %v2164 = vpop.f32.mrf.mxu0
        %2165 = vmatprep.mubr.f32.mxu0 0.0
        %2166 = vmatmul.mubr.f32.gmra.mxu0 %v1870
        %v2167 = vpop.f32.mrf.mxu0
        %v2168 = vadd.f32 %v2035, %v2167
        %v2169 = vpop.f32.mrf.mxu0
        %2170 = vmatprep.mubr.f32.mxu0 0.0
        %2171 = vmatmul.mubr.f32.gmra.mxu0 %v1873
        %v2172 = vpop.f32.mrf.mxu0
        %v2173 = vadd.f32 %v2035, %v2172
        %v2174 = vpop.f32.mrf.mxu0
        %2175 = vmatprep.mubr.f32.mxu0 0.0
        %2176 = vmatmul.mubr.f32.gmra.mxu0 %v1876
        %v2177 = vpop.f32.mrf.mxu0
        %v2178 = vadd.f32 %v2035, %v2177
        %v2179 = vpop.f32.mrf.mxu0
        %2180 = vdwg.mxu0
        %s2181 = scalar_lea.vmem %s4, 128
        %v2182 = vld [vmem:[%s2181] sm:$0xff]
        %v2183 = vld [vmem:[%s2181 + $0x8] sm:$0xff]
        %v2184 = vld [vmem:[%s2181 + $0x10] sm:$0xff]
        %v2185 = vld [vmem:[%s2181 + $0x18] sm:$0xff]
        %v2186 = vld [vmem:[%s2181 + $0x20] sm:$0xff]
        %v2187 = vld [vmem:[%s2181 + $0x28] sm:$0xff]
        %v2188 = vld [vmem:[%s2181 + $0x30] sm:$0xff]
        %v2189 = vld [vmem:[%s2181 + $0x38] sm:$0xff]
        %v2190 = vlaneseq
        %v2191 = vshrl.u32 %v2190, 7
        %v2192 = vsub.s32 5, %v2191
        %v2193 = vrot.slane %v370, %v2192
        %2194 = vmatprep.subr.mxu0 0.0
        %2195 = vmatpush1.msra.mxu0 0.0
        %2196 = vmatprep.subr.mxu0 0.0
        %2197 = vmatpush1.msra.mxu0 0.0
        %2198 = vmatprep.subr.mxu0 0.0
        %2199 = vmatpush1.msra.mxu0 0.0
        %2200 = vmatprep.subr.mxu0 0.0
        %2201 = vmatpush1.msra.mxu0 0.0
        %2202 = vmatprep.subr.mxu0 0.0
        %2203 = vmatpush1.msra.mxu0 0.0
        %2204 = vmatprep.subr.mxu0 0.0
        %2205 = vmatpush1.msra.mxu0 0.0
        %2206 = vmatprep.subr.mxu0 0.0
        %2207 = vmatpush1.msra.mxu0 0.0
        %2208 = vmatprep.subr.mxu0 0.0
        %2209 = vmatpush1.msra.mxu0 0.0
        %2210 = vmatprep.subr.mxu0 0.0
        %2211 = vmatpush1.msra.mxu0 %v2189
        %2212 = vmatprep.subr.mxu0 0.0
        %2213 = vmatpush1.msra.mxu0 %v2188
        %2214 = vmatprep.subr.mxu0 0.0
        %2215 = vmatpush1.msra.mxu0 %v2187
        %2216 = vmatprep.subr.mxu0 0.0
        %2217 = vmatpush1.msra.mxu0 %v2186
        %2218 = vmatprep.subr.mxu0 0.0
        %2219 = vmatpush1.msra.mxu0 %v2185
        %2220 = vmatprep.subr.mxu0 0.0
        %2221 = vmatpush1.msra.mxu0 %v2184
        %2222 = vmatprep.subr.mxu0 0.0
        %2223 = vmatpush1.msra.mxu0 %v2183
        %2224 = vmatprep.subr.mxu0 0.0
        %2225 = vmatpush1.msra.mxu0 %v2182
        %2226 = vmatprep.subr.mxu0 0.0
        %2227 = vmatpush2.msra.mxu0 0.0
        %2228 = vmatprep.subr.mxu0 0.0
        %2229 = vmatpush2.msra.mxu0 0.0
        %2230 = vmatprep.subr.mxu0 0.0
        %2231 = vmatpush2.msra.mxu0 0.0
        %2232 = vmatprep.subr.mxu0 0.0
        %2233 = vmatpush2.msra.mxu0 0.0
        %2234 = vmatprep.subr.mxu0 0.0
        %2235 = vmatpush2.msra.mxu0 0.0
        %2236 = vmatprep.subr.mxu0 0.0
        %2237 = vmatpush2.msra.mxu0 0.0
        %2238 = vmatprep.subr.mxu0 0.0
        %2239 = vmatpush2.msra.mxu0 0.0
        %2240 = vmatprep.subr.mxu0 0.0
        %2241 = vmatpush2.msra.mxu0 0.0
        %2242 = vmatprep.subr.mxu0 0.0
        %2243 = vmatpush2.msra.mxu0 0.0
        %2244 = vmatprep.subr.mxu0 0.0
        %2245 = vmatpush2.msra.mxu0 0.0
        %2246 = vmatprep.subr.mxu0 0.0
        %2247 = vmatpush2.msra.mxu0 0.0
        %2248 = vmatprep.subr.mxu0 0.0
        %2249 = vmatpush2.msra.mxu0 0.0
        %2250 = vmatprep.subr.mxu0 0.0
        %2251 = vmatpush2.msra.mxu0 0.0
        %2252 = vmatprep.subr.mxu0 0.0
        %2253 = vmatpush2.msra.mxu0 0.0
        %2254 = vmatprep.subr.mxu0 0.0
        %2255 = vmatpush2.msra.mxu0 0.0
        %2256 = vmatprep.subr.mxu0 0.0
        %2257 = vmatpush2.msra.mxu0 0.0
        %2258 = vmatprep.mubr.f32.mxu0 0.0
        %2259 = vmatmul.mubr.f32.gmra.mxu0 %v1831
        %v2260 = vpop.f32.mrf.mxu0
        %v2261 = vadd.f32 %v2193, %v2260
        %v2262 = vpop.f32.mrf.mxu0
        %2263 = vmatprep.mubr.f32.mxu0 0.0
        %2264 = vmatmul.mubr.f32.gmra.mxu0 %v1834
        %v2265 = vpop.f32.mrf.mxu0
        %v2266 = vadd.f32 %v2193, %v2265
        %v2267 = vpop.f32.mrf.mxu0
        %2268 = vmatprep.mubr.f32.mxu0 0.0
        %2269 = vmatmul.mubr.f32.gmra.mxu0 %v1837
        %v2270 = vpop.f32.mrf.mxu0
        %v2271 = vadd.f32 %v2193, %v2270
        %v2272 = vpop.f32.mrf.mxu0
        %2273 = vmatprep.mubr.f32.mxu0 0.0
        %2274 = vmatmul.mubr.f32.gmra.mxu0 %v1840
        %v2275 = vpop.f32.mrf.mxu0
        %v2276 = vadd.f32 %v2193, %v2275
        %v2277 = vpop.f32.mrf.mxu0
        %2278 = vmatprep.mubr.f32.mxu0 0.0
        %2279 = vmatmul.mubr.f32.gmra.mxu0 %v1843
        %v2280 = vpop.f32.mrf.mxu0
        %v2281 = vadd.f32 %v2193, %v2280
        %v2282 = vpop.f32.mrf.mxu0
        %2283 = vmatprep.mubr.f32.mxu0 0.0
        %2284 = vmatmul.mubr.f32.gmra.mxu0 %v1846
        %v2285 = vpop.f32.mrf.mxu0
        %v2286 = vadd.f32 %v2193, %v2285
        %v2287 = vpop.f32.mrf.mxu0
        %2288 = vmatprep.mubr.f32.mxu0 0.0
        %2289 = vmatmul.mubr.f32.gmra.mxu0 %v1849
        %v2290 = vpop.f32.mrf.mxu0
        %v2291 = vadd.f32 %v2193, %v2290
        %v2292 = vpop.f32.mrf.mxu0
        %2293 = vmatprep.mubr.f32.mxu0 0.0
        %2294 = vmatmul.mubr.f32.gmra.mxu0 %v1852
        %v2295 = vpop.f32.mrf.mxu0
        %v2296 = vadd.f32 %v2193, %v2295
        %v2297 = vpop.f32.mrf.mxu0
        %2298 = vmatprep.mubr.f32.mxu0 0.0
        %2299 = vmatmul.mubr.f32.gmra.mxu0 %v1855
        %v2300 = vpop.f32.mrf.mxu0
        %v2301 = vadd.f32 %v2193, %v2300
        %v2302 = vpop.f32.mrf.mxu0
        %2303 = vmatprep.mubr.f32.mxu0 0.0
        %2304 = vmatmul.mubr.f32.gmra.mxu0 %v1858
        %v2305 = vpop.f32.mrf.mxu0
        %v2306 = vadd.f32 %v2193, %v2305
        %v2307 = vpop.f32.mrf.mxu0
        %2308 = vmatprep.mubr.f32.mxu0 0.0
        %2309 = vmatmul.mubr.f32.gmra.mxu0 %v1861
        %v2310 = vpop.f32.mrf.mxu0
        %v2311 = vadd.f32 %v2193, %v2310
        %v2312 = vpop.f32.mrf.mxu0
        %2313 = vmatprep.mubr.f32.mxu0 0.0
        %2314 = vmatmul.mubr.f32.gmra.mxu0 %v1864
        %v2315 = vpop.f32.mrf.mxu0
        %v2316 = vadd.f32 %v2193, %v2315
        %v2317 = vpop.f32.mrf.mxu0
        %2318 = vmatprep.mubr.f32.mxu0 0.0
        %2319 = vmatmul.mubr.f32.gmra.mxu0 %v1867
        %v2320 = vpop.f32.mrf.mxu0
        %v2321 = vadd.f32 %v2193, %v2320
        %v2322 = vpop.f32.mrf.mxu0
        %2323 = vmatprep.mubr.f32.mxu0 0.0
        %2324 = vmatmul.mubr.f32.gmra.mxu0 %v1870
        %v2325 = vpop.f32.mrf.mxu0
        %v2326 = vadd.f32 %v2193, %v2325
        %v2327 = vpop.f32.mrf.mxu0
        %2328 = vmatprep.mubr.f32.mxu0 0.0
        %2329 = vmatmul.mubr.f32.gmra.mxu0 %v1873
        %v2330 = vpop.f32.mrf.mxu0
        %v2331 = vadd.f32 %v2193, %v2330
        %v2332 = vpop.f32.mrf.mxu0
        %2333 = vmatprep.mubr.f32.mxu0 0.0
        %2334 = vmatmul.mubr.f32.gmra.mxu0 %v1876
        %v2335 = vpop.f32.mrf.mxu0
        %v2336 = vadd.f32 %v2193, %v2335
        %v2337 = vpop.f32.mrf.mxu0
        %2338 = vdwg.mxu0
        %s2339 = scalar_lea.vmem %s4, 192
        %v2340 = vld [vmem:[%s2339] sm:$0xff]
        %v2341 = vld [vmem:[%s2339 + $0x8] sm:$0xff]
        %v2342 = vld [vmem:[%s2339 + $0x10] sm:$0xff]
        %v2343 = vld [vmem:[%s2339 + $0x18] sm:$0xff]
        %v2344 = vld [vmem:[%s2339 + $0x20] sm:$0xff]
        %v2345 = vld [vmem:[%s2339 + $0x28] sm:$0xff]
        %v2346 = vld [vmem:[%s2339 + $0x30] sm:$0xff]
        %v2347 = vld [vmem:[%s2339 + $0x38] sm:$0xff]
        %v2348 = vlaneseq
        %v2349 = vshrl.u32 %v2348, 7
        %v2350 = vsub.s32 6, %v2349
        %v2351 = vrot.slane %v370, %v2350
        %v2353 = vsel %vm613, %v1802, 0
        %v2356 = vsel %vm613, %v1803, 0
        %v2359 = vsel %vm613, %v1804, 0
        %v2362 = vsel %vm613, %v1805, 0
        %v2365 = vsel %vm613, %v1806, 0
        %v2368 = vsel %vm613, %v1807, 0
        %v2371 = vsel %vm613, %v1808, 0
        %v2374 = vsel %vm613, %v1809, 0
        %v2377 = vsel %vm613, %v1810, 0
        %v2380 = vsel %vm613, %v1811, 0
        %v2383 = vsel %vm613, %v1812, 0
        %v2386 = vsel %vm613, %v1813, 0
        %v2389 = vsel %vm613, %v1814, 0
        %v2392 = vsel %vm613, %v1815, 0
        %v2395 = vsel %vm613, %v1816, 0
        %v2398 = vsel %vm613, %v1817, 0
        %2400 = vmatprep.subr.mxu0 0.0
        %2401 = vmatpush1.msra.mxu0 0.0
        %2402 = vmatprep.subr.mxu0 0.0
        %2403 = vmatpush1.msra.mxu0 0.0
        %2404 = vmatprep.subr.mxu0 0.0
        %2405 = vmatpush1.msra.mxu0 0.0
        %2406 = vmatprep.subr.mxu0 0.0
        %2407 = vmatpush1.msra.mxu0 0.0
        %2408 = vmatprep.subr.mxu0 0.0
        %2409 = vmatpush1.msra.mxu0 0.0
        %2410 = vmatprep.subr.mxu0 0.0
        %2411 = vmatpush1.msra.mxu0 0.0
        %2412 = vmatprep.subr.mxu0 0.0
        %2413 = vmatpush1.msra.mxu0 0.0
        %2414 = vmatprep.subr.mxu0 0.0
        %2415 = vmatpush1.msra.mxu0 0.0
        %2416 = vmatprep.subr.mxu0 0.0
        %2417 = vmatpush1.msra.mxu0 %v2347
        %2418 = vmatprep.subr.mxu0 0.0
        %2419 = vmatpush1.msra.mxu0 %v2346
        %2420 = vmatprep.subr.mxu0 0.0
        %2421 = vmatpush1.msra.mxu0 %v2345
        %2422 = vmatprep.subr.mxu0 0.0
        %2423 = vmatpush1.msra.mxu0 %v2344
        %2424 = vmatprep.subr.mxu0 0.0
        %2425 = vmatpush1.msra.mxu0 %v2343
        %2426 = vmatprep.subr.mxu0 0.0
        %2427 = vmatpush1.msra.mxu0 %v2342
        %2428 = vmatprep.subr.mxu0 0.0
        %2429 = vmatpush1.msra.mxu0 %v2341
        %2430 = vmatprep.subr.mxu0 0.0
        %2431 = vmatpush1.msra.mxu0 %v2340
        %2432 = vmatprep.subr.mxu0 0.0
        %2433 = vmatpush2.msra.mxu0 0.0
        %2434 = vmatprep.subr.mxu0 0.0
        %2435 = vmatpush2.msra.mxu0 0.0
        %2436 = vmatprep.subr.mxu0 0.0
        %2437 = vmatpush2.msra.mxu0 0.0
        %2438 = vmatprep.subr.mxu0 0.0
        %2439 = vmatpush2.msra.mxu0 0.0
        %2440 = vmatprep.subr.mxu0 0.0
        %2441 = vmatpush2.msra.mxu0 0.0
        %2442 = vmatprep.subr.mxu0 0.0
        %2443 = vmatpush2.msra.mxu0 0.0
        %2444 = vmatprep.subr.mxu0 0.0
        %2445 = vmatpush2.msra.mxu0 0.0
        %2446 = vmatprep.subr.mxu0 0.0
        %2447 = vmatpush2.msra.mxu0 0.0
        %2448 = vmatprep.subr.mxu0 0.0
        %2449 = vmatpush2.msra.mxu0 0.0
        %2450 = vmatprep.subr.mxu0 0.0
        %2451 = vmatpush2.msra.mxu0 0.0
        %2452 = vmatprep.subr.mxu0 0.0
        %2453 = vmatpush2.msra.mxu0 0.0
        %2454 = vmatprep.subr.mxu0 0.0
        %2455 = vmatpush2.msra.mxu0 0.0
        %2456 = vmatprep.subr.mxu0 0.0
        %2457 = vmatpush2.msra.mxu0 0.0
        %2458 = vmatprep.subr.mxu0 0.0
        %2459 = vmatpush2.msra.mxu0 0.0
        %2460 = vmatprep.subr.mxu0 0.0
        %2461 = vmatpush2.msra.mxu0 0.0
        %2462 = vmatprep.subr.mxu0 0.0
        %2463 = vmatpush2.msra.mxu0 0.0
        %2464 = vmatprep.mubr.f32.mxu0 0.0
        %2465 = vmatmul.mubr.f32.gmra.mxu0 %v2353
        %v2466 = vpop.f32.mrf.mxu0
        %v2467 = vadd.f32 %v2351, %v2466
        %v2468 = vpop.f32.mrf.mxu0
        %2469 = vmatprep.mubr.f32.mxu0 0.0
        %2470 = vmatmul.mubr.f32.gmra.mxu0 %v2356
        %v2471 = vpop.f32.mrf.mxu0
        %v2472 = vadd.f32 %v2351, %v2471
        %v2473 = vpop.f32.mrf.mxu0
        %2474 = vmatprep.mubr.f32.mxu0 0.0
        %2475 = vmatmul.mubr.f32.gmra.mxu0 %v2359
        %v2476 = vpop.f32.mrf.mxu0
        %v2477 = vadd.f32 %v2351, %v2476
        %v2478 = vpop.f32.mrf.mxu0
        %2479 = vmatprep.mubr.f32.mxu0 0.0
        %2480 = vmatmul.mubr.f32.gmra.mxu0 %v2362
        %v2481 = vpop.f32.mrf.mxu0
        %v2482 = vadd.f32 %v2351, %v2481
        %v2483 = vpop.f32.mrf.mxu0
        %2484 = vmatprep.mubr.f32.mxu0 0.0
        %2485 = vmatmul.mubr.f32.gmra.mxu0 %v2365
        %v2486 = vpop.f32.mrf.mxu0
        %v2487 = vadd.f32 %v2351, %v2486
        %v2488 = vpop.f32.mrf.mxu0
        %2489 = vmatprep.mubr.f32.mxu0 0.0
        %2490 = vmatmul.mubr.f32.gmra.mxu0 %v2368
        %v2491 = vpop.f32.mrf.mxu0
        %v2492 = vadd.f32 %v2351, %v2491
        %v2493 = vpop.f32.mrf.mxu0
        %2494 = vmatprep.mubr.f32.mxu0 0.0
        %2495 = vmatmul.mubr.f32.gmra.mxu0 %v2371
        %v2496 = vpop.f32.mrf.mxu0
        %v2497 = vadd.f32 %v2351, %v2496
        %v2498 = vpop.f32.mrf.mxu0
        %2499 = vmatprep.mubr.f32.mxu0 0.0
        %2500 = vmatmul.mubr.f32.gmra.mxu0 %v2374
        %v2501 = vpop.f32.mrf.mxu0
        %v2502 = vadd.f32 %v2351, %v2501
        %v2503 = vpop.f32.mrf.mxu0
        %2504 = vmatprep.mubr.f32.mxu0 0.0
        %2505 = vmatmul.mubr.f32.gmra.mxu0 %v2377
        %v2506 = vpop.f32.mrf.mxu0
        %v2507 = vadd.f32 %v2351, %v2506
        %v2508 = vpop.f32.mrf.mxu0
        %2509 = vmatprep.mubr.f32.mxu0 0.0
        %2510 = vmatmul.mubr.f32.gmra.mxu0 %v2380
        %v2511 = vpop.f32.mrf.mxu0
        %v2512 = vadd.f32 %v2351, %v2511
        %v2513 = vpop.f32.mrf.mxu0
        %2514 = vmatprep.mubr.f32.mxu0 0.0
        %2515 = vmatmul.mubr.f32.gmra.mxu0 %v2383
        %v2516 = vpop.f32.mrf.mxu0
        %v2517 = vadd.f32 %v2351, %v2516
        %v2518 = vpop.f32.mrf.mxu0
        %2519 = vmatprep.mubr.f32.mxu0 0.0
        %2520 = vmatmul.mubr.f32.gmra.mxu0 %v2386
        %v2521 = vpop.f32.mrf.mxu0
        %v2522 = vadd.f32 %v2351, %v2521
        %v2523 = vpop.f32.mrf.mxu0
        %2524 = vmatprep.mubr.f32.mxu0 0.0
        %2525 = vmatmul.mubr.f32.gmra.mxu0 %v2389
        %v2526 = vpop.f32.mrf.mxu0
        %v2527 = vadd.f32 %v2351, %v2526
        %v2528 = vpop.f32.mrf.mxu0
        %2529 = vmatprep.mubr.f32.mxu0 0.0
        %2530 = vmatmul.mubr.f32.gmra.mxu0 %v2392
        %v2531 = vpop.f32.mrf.mxu0
        %v2532 = vadd.f32 %v2351, %v2531
        %v2533 = vpop.f32.mrf.mxu0
        %2534 = vmatprep.mubr.f32.mxu0 0.0
        %2535 = vmatmul.mubr.f32.gmra.mxu0 %v2395
        %v2536 = vpop.f32.mrf.mxu0
        %v2537 = vadd.f32 %v2351, %v2536
        %v2538 = vpop.f32.mrf.mxu0
        %2539 = vmatprep.mubr.f32.mxu0 0.0
        %2540 = vmatmul.mubr.f32.gmra.mxu0 %v2398
        %v2541 = vpop.f32.mrf.mxu0
        %v2542 = vadd.f32 %v2351, %v2541
        %v2543 = vpop.f32.mrf.mxu0
        %2544 = vdwg.mxu0
        %s2545 = scalar_lea.vmem %s4, 256
        %v2546 = vld [vmem:[%s2545] sm:$0xff]
        %v2547 = vld [vmem:[%s2545 + $0x8] sm:$0xff]
        %v2548 = vld [vmem:[%s2545 + $0x10] sm:$0xff]
        %v2549 = vld [vmem:[%s2545 + $0x18] sm:$0xff]
        %v2550 = vld [vmem:[%s2545 + $0x20] sm:$0xff]
        %v2551 = vld [vmem:[%s2545 + $0x28] sm:$0xff]
        %v2552 = vld [vmem:[%s2545 + $0x30] sm:$0xff]
        %v2553 = vld [vmem:[%s2545 + $0x38] sm:$0xff]
        %v2554 = vlaneseq
        %v2555 = vshrl.u32 %v2554, 7
        %v2556 = vsub.s32 7, %v2555
        %v2557 = vrot.slane %v370, %v2556
        %2558 = vmatprep.subr.mxu0 0.0
        %2559 = vmatpush1.msra.mxu0 0.0
        %2560 = vmatprep.subr.mxu0 0.0
        %2561 = vmatpush1.msra.mxu0 0.0
        %2562 = vmatprep.subr.mxu0 0.0
        %2563 = vmatpush1.msra.mxu0 0.0
        %2564 = vmatprep.subr.mxu0 0.0
        %2565 = vmatpush1.msra.mxu0 0.0
        %2566 = vmatprep.subr.mxu0 0.0
        %2567 = vmatpush1.msra.mxu0 0.0
        %2568 = vmatprep.subr.mxu0 0.0
        %2569 = vmatpush1.msra.mxu0 0.0
        %2570 = vmatprep.subr.mxu0 0.0
        %2571 = vmatpush1.msra.mxu0 0.0
        %2572 = vmatprep.subr.mxu0 0.0
        %2573 = vmatpush1.msra.mxu0 0.0
        %2574 = vmatprep.subr.mxu0 0.0
        %2575 = vmatpush1.msra.mxu0 %v2553
        %2576 = vmatprep.subr.mxu0 0.0
        %2577 = vmatpush1.msra.mxu0 %v2552
        %2578 = vmatprep.subr.mxu0 0.0
        %2579 = vmatpush1.msra.mxu0 %v2551
        %2580 = vmatprep.subr.mxu0 0.0
        %2581 = vmatpush1.msra.mxu0 %v2550
        %2582 = vmatprep.subr.mxu0 0.0
        %2583 = vmatpush1.msra.mxu0 %v2549
        %2584 = vmatprep.subr.mxu0 0.0
        %2585 = vmatpush1.msra.mxu0 %v2548
        %2586 = vmatprep.subr.mxu0 0.0
        %2587 = vmatpush1.msra.mxu0 %v2547
        %2588 = vmatprep.subr.mxu0 0.0
        %2589 = vmatpush1.msra.mxu0 %v2546
        %2590 = vmatprep.subr.mxu0 0.0
        %2591 = vmatpush2.msra.mxu0 0.0
        %2592 = vmatprep.subr.mxu0 0.0
        %2593 = vmatpush2.msra.mxu0 0.0
        %2594 = vmatprep.subr.mxu0 0.0
        %2595 = vmatpush2.msra.mxu0 0.0
        %2596 = vmatprep.subr.mxu0 0.0
        %2597 = vmatpush2.msra.mxu0 0.0
        %2598 = vmatprep.subr.mxu0 0.0
        %2599 = vmatpush2.msra.mxu0 0.0
        %2600 = vmatprep.subr.mxu0 0.0
        %2601 = vmatpush2.msra.mxu0 0.0
        %2602 = vmatprep.subr.mxu0 0.0
        %2603 = vmatpush2.msra.mxu0 0.0
        %2604 = vmatprep.subr.mxu0 0.0
        %2605 = vmatpush2.msra.mxu0 0.0
        %2606 = vmatprep.subr.mxu0 0.0
        %2607 = vmatpush2.msra.mxu0 0.0
        %2608 = vmatprep.subr.mxu0 0.0
        %2609 = vmatpush2.msra.mxu0 0.0
        %2610 = vmatprep.subr.mxu0 0.0
        %2611 = vmatpush2.msra.mxu0 0.0
        %2612 = vmatprep.subr.mxu0 0.0
        %2613 = vmatpush2.msra.mxu0 0.0
        %2614 = vmatprep.subr.mxu0 0.0
        %2615 = vmatpush2.msra.mxu0 0.0
        %2616 = vmatprep.subr.mxu0 0.0
        %2617 = vmatpush2.msra.mxu0 0.0
        %2618 = vmatprep.subr.mxu0 0.0
        %2619 = vmatpush2.msra.mxu0 0.0
        %2620 = vmatprep.subr.mxu0 0.0
        %2621 = vmatpush2.msra.mxu0 0.0
        %2622 = vmatprep.mubr.f32.mxu0 0.0
        %2623 = vmatmul.mubr.f32.gmra.mxu0 %v2353
        %v2624 = vpop.f32.mrf.mxu0
        %v2625 = vadd.f32 %v2557, %v2624
        %v2626 = vpop.f32.mrf.mxu0
        %2627 = vmatprep.mubr.f32.mxu0 0.0
        %2628 = vmatmul.mubr.f32.gmra.mxu0 %v2356
        %v2629 = vpop.f32.mrf.mxu0
        %v2630 = vadd.f32 %v2557, %v2629
        %v2631 = vpop.f32.mrf.mxu0
        %2632 = vmatprep.mubr.f32.mxu0 0.0
        %2633 = vmatmul.mubr.f32.gmra.mxu0 %v2359
        %v2634 = vpop.f32.mrf.mxu0
        %v2635 = vadd.f32 %v2557, %v2634
        %v2636 = vpop.f32.mrf.mxu0
        %2637 = vmatprep.mubr.f32.mxu0 0.0
        %2638 = vmatmul.mubr.f32.gmra.mxu0 %v2362
        %v2639 = vpop.f32.mrf.mxu0
        %v2640 = vadd.f32 %v2557, %v2639
        %v2641 = vpop.f32.mrf.mxu0
        %2642 = vmatprep.mubr.f32.mxu0 0.0
        %2643 = vmatmul.mubr.f32.gmra.mxu0 %v2365
        %v2644 = vpop.f32.mrf.mxu0
        %v2645 = vadd.f32 %v2557, %v2644
        %v2646 = vpop.f32.mrf.mxu0
        %2647 = vmatprep.mubr.f32.mxu0 0.0
        %2648 = vmatmul.mubr.f32.gmra.mxu0 %v2368
        %v2649 = vpop.f32.mrf.mxu0
        %v2650 = vadd.f32 %v2557, %v2649
        %v2651 = vpop.f32.mrf.mxu0
        %2652 = vmatprep.mubr.f32.mxu0 0.0
        %2653 = vmatmul.mubr.f32.gmra.mxu0 %v2371
        %v2654 = vpop.f32.mrf.mxu0
        %v2655 = vadd.f32 %v2557, %v2654
        %v2656 = vpop.f32.mrf.mxu0
        %2657 = vmatprep.mubr.f32.mxu0 0.0
        %2658 = vmatmul.mubr.f32.gmra.mxu0 %v2374
        %v2659 = vpop.f32.mrf.mxu0
        %v2660 = vadd.f32 %v2557, %v2659
        %v2661 = vpop.f32.mrf.mxu0
        %2662 = vmatprep.mubr.f32.mxu0 0.0
        %2663 = vmatmul.mubr.f32.gmra.mxu0 %v2377
        %v2664 = vpop.f32.mrf.mxu0
        %v2665 = vadd.f32 %v2557, %v2664
        %v2666 = vpop.f32.mrf.mxu0
        %2667 = vmatprep.mubr.f32.mxu0 0.0
        %2668 = vmatmul.mubr.f32.gmra.mxu0 %v2380
        %v2669 = vpop.f32.mrf.mxu0
        %v2670 = vadd.f32 %v2557, %v2669
        %v2671 = vpop.f32.mrf.mxu0
        %2672 = vmatprep.mubr.f32.mxu0 0.0
        %2673 = vmatmul.mubr.f32.gmra.mxu0 %v2383
        %v2674 = vpop.f32.mrf.mxu0
        %v2675 = vadd.f32 %v2557, %v2674
        %v2676 = vpop.f32.mrf.mxu0
        %2677 = vmatprep.mubr.f32.mxu0 0.0
        %2678 = vmatmul.mubr.f32.gmra.mxu0 %v2386
        %v2679 = vpop.f32.mrf.mxu0
        %v2680 = vadd.f32 %v2557, %v2679
        %v2681 = vpop.f32.mrf.mxu0
        %2682 = vmatprep.mubr.f32.mxu0 0.0
        %2683 = vmatmul.mubr.f32.gmra.mxu0 %v2389
        %v2684 = vpop.f32.mrf.mxu0
        %v2685 = vadd.f32 %v2557, %v2684
        %v2686 = vpop.f32.mrf.mxu0
        %2687 = vmatprep.mubr.f32.mxu0 0.0
        %2688 = vmatmul.mubr.f32.gmra.mxu0 %v2392
        %v2689 = vpop.f32.mrf.mxu0
        %v2690 = vadd.f32 %v2557, %v2689
        %v2691 = vpop.f32.mrf.mxu0
        %2692 = vmatprep.mubr.f32.mxu0 0.0
        %2693 = vmatmul.mubr.f32.gmra.mxu0 %v2395
        %v2694 = vpop.f32.mrf.mxu0
        %v2695 = vadd.f32 %v2557, %v2694
        %v2696 = vpop.f32.mrf.mxu0
        %2697 = vmatprep.mubr.f32.mxu0 0.0
        %2698 = vmatmul.mubr.f32.gmra.mxu0 %v2398
        %v2699 = vpop.f32.mrf.mxu0
        %v2700 = vadd.f32 %v2557, %v2699
        %v2701 = vpop.f32.mrf.mxu0
        %2702 = vdwg.mxu0
        %s2703 = scalar_lea.vmem %s4, 320
        %v2704 = vld [vmem:[%s2703] sm:$0xff]
        %v2705 = vld [vmem:[%s2703 + $0x8] sm:$0xff]
        %v2706 = vld [vmem:[%s2703 + $0x10] sm:$0xff]
        %v2707 = vld [vmem:[%s2703 + $0x18] sm:$0xff]
        %v2708 = vld [vmem:[%s2703 + $0x20] sm:$0xff]
        %v2709 = vld [vmem:[%s2703 + $0x28] sm:$0xff]
        %v2710 = vld [vmem:[%s2703 + $0x30] sm:$0xff]
        %v2711 = vld [vmem:[%s2703 + $0x38] sm:$0xff]
        %v2712 = vlaneseq
        %v2713 = vshrl.u32 %v2712, 7
        %v2714 = vsub.s32 0, %v2713
        %v2715 = vrot.slane %v371, %v2714
        %2716 = vmatprep.subr.mxu0 0.0
        %2717 = vmatpush1.msra.mxu0 0.0
        %2718 = vmatprep.subr.mxu0 0.0
        %2719 = vmatpush1.msra.mxu0 0.0
        %2720 = vmatprep.subr.mxu0 0.0
        %2721 = vmatpush1.msra.mxu0 0.0
        %2722 = vmatprep.subr.mxu0 0.0
        %2723 = vmatpush1.msra.mxu0 0.0
        %2724 = vmatprep.subr.mxu0 0.0
        %2725 = vmatpush1.msra.mxu0 0.0
        %2726 = vmatprep.subr.mxu0 0.0
        %2727 = vmatpush1.msra.mxu0 0.0
        %2728 = vmatprep.subr.mxu0 0.0
        %2729 = vmatpush1.msra.mxu0 0.0
        %2730 = vmatprep.subr.mxu0 0.0
        %2731 = vmatpush1.msra.mxu0 0.0
        %2732 = vmatprep.subr.mxu0 0.0
        %2733 = vmatpush1.msra.mxu0 %v2711
        %2734 = vmatprep.subr.mxu0 0.0
        %2735 = vmatpush1.msra.mxu0 %v2710
        %2736 = vmatprep.subr.mxu0 0.0
        %2737 = vmatpush1.msra.mxu0 %v2709
        %2738 = vmatprep.subr.mxu0 0.0
        %2739 = vmatpush1.msra.mxu0 %v2708
        %2740 = vmatprep.subr.mxu0 0.0
        %2741 = vmatpush1.msra.mxu0 %v2707
        %2742 = vmatprep.subr.mxu0 0.0
        %2743 = vmatpush1.msra.mxu0 %v2706
        %2744 = vmatprep.subr.mxu0 0.0
        %2745 = vmatpush1.msra.mxu0 %v2705
        %2746 = vmatprep.subr.mxu0 0.0
        %2747 = vmatpush1.msra.mxu0 %v2704
        %2748 = vmatprep.subr.mxu0 0.0
        %2749 = vmatpush2.msra.mxu0 0.0
        %2750 = vmatprep.subr.mxu0 0.0
        %2751 = vmatpush2.msra.mxu0 0.0
        %2752 = vmatprep.subr.mxu0 0.0
        %2753 = vmatpush2.msra.mxu0 0.0
        %2754 = vmatprep.subr.mxu0 0.0
        %2755 = vmatpush2.msra.mxu0 0.0
        %2756 = vmatprep.subr.mxu0 0.0
        %2757 = vmatpush2.msra.mxu0 0.0
        %2758 = vmatprep.subr.mxu0 0.0
        %2759 = vmatpush2.msra.mxu0 0.0
        %2760 = vmatprep.subr.mxu0 0.0
        %2761 = vmatpush2.msra.mxu0 0.0
        %2762 = vmatprep.subr.mxu0 0.0
        %2763 = vmatpush2.msra.mxu0 0.0
        %2764 = vmatprep.subr.mxu0 0.0
        %2765 = vmatpush2.msra.mxu0 0.0
        %2766 = vmatprep.subr.mxu0 0.0
        %2767 = vmatpush2.msra.mxu0 0.0
        %2768 = vmatprep.subr.mxu0 0.0
        %2769 = vmatpush2.msra.mxu0 0.0
        %2770 = vmatprep.subr.mxu0 0.0
        %2771 = vmatpush2.msra.mxu0 0.0
        %2772 = vmatprep.subr.mxu0 0.0
        %2773 = vmatpush2.msra.mxu0 0.0
        %2774 = vmatprep.subr.mxu0 0.0
        %2775 = vmatpush2.msra.mxu0 0.0
        %2776 = vmatprep.subr.mxu0 0.0
        %2777 = vmatpush2.msra.mxu0 0.0
        %2778 = vmatprep.subr.mxu0 0.0
        %2779 = vmatpush2.msra.mxu0 0.0
        %2780 = vmatprep.mubr.f32.mxu0 0.0
        %2781 = vmatmul.mubr.f32.gmra.mxu0 %v2353
        %v2782 = vpop.f32.mrf.mxu0
        %v2783 = vadd.f32 %v2715, %v2782
        %v2784 = vpop.f32.mrf.mxu0
        %2785 = vmatprep.mubr.f32.mxu0 0.0
        %2786 = vmatmul.mubr.f32.gmra.mxu0 %v2356
        %v2787 = vpop.f32.mrf.mxu0
        %v2788 = vadd.f32 %v2715, %v2787
        %v2789 = vpop.f32.mrf.mxu0
        %2790 = vmatprep.mubr.f32.mxu0 0.0
        %2791 = vmatmul.mubr.f32.gmra.mxu0 %v2359
        %v2792 = vpop.f32.mrf.mxu0
        %v2793 = vadd.f32 %v2715, %v2792
        %v2794 = vpop.f32.mrf.mxu0
        %2795 = vmatprep.mubr.f32.mxu0 0.0
        %2796 = vmatmul.mubr.f32.gmra.mxu0 %v2362
        %v2797 = vpop.f32.mrf.mxu0
        %v2798 = vadd.f32 %v2715, %v2797
        %v2799 = vpop.f32.mrf.mxu0
        %2800 = vmatprep.mubr.f32.mxu0 0.0
        %2801 = vmatmul.mubr.f32.gmra.mxu0 %v2365
        %v2802 = vpop.f32.mrf.mxu0
        %v2803 = vadd.f32 %v2715, %v2802
        %v2804 = vpop.f32.mrf.mxu0
        %2805 = vmatprep.mubr.f32.mxu0 0.0
        %2806 = vmatmul.mubr.f32.gmra.mxu0 %v2368
        %v2807 = vpop.f32.mrf.mxu0
        %v2808 = vadd.f32 %v2715, %v2807
        %v2809 = vpop.f32.mrf.mxu0
        %2810 = vmatprep.mubr.f32.mxu0 0.0
        %2811 = vmatmul.mubr.f32.gmra.mxu0 %v2371
        %v2812 = vpop.f32.mrf.mxu0
        %v2813 = vadd.f32 %v2715, %v2812
        %v2814 = vpop.f32.mrf.mxu0
        %2815 = vmatprep.mubr.f32.mxu0 0.0
        %2816 = vmatmul.mubr.f32.gmra.mxu0 %v2374
        %v2817 = vpop.f32.mrf.mxu0
        %v2818 = vadd.f32 %v2715, %v2817
        %v2819 = vpop.f32.mrf.mxu0
        %2820 = vmatprep.mubr.f32.mxu0 0.0
        %2821 = vmatmul.mubr.f32.gmra.mxu0 %v2377
        %v2822 = vpop.f32.mrf.mxu0
        %v2823 = vadd.f32 %v2715, %v2822
        %v2824 = vpop.f32.mrf.mxu0
        %2825 = vmatprep.mubr.f32.mxu0 0.0
        %2826 = vmatmul.mubr.f32.gmra.mxu0 %v2380
        %v2827 = vpop.f32.mrf.mxu0
        %v2828 = vadd.f32 %v2715, %v2827
        %v2829 = vpop.f32.mrf.mxu0
        %2830 = vmatprep.mubr.f32.mxu0 0.0
        %2831 = vmatmul.mubr.f32.gmra.mxu0 %v2383
        %v2832 = vpop.f32.mrf.mxu0
        %v2833 = vadd.f32 %v2715, %v2832
        %v2834 = vpop.f32.mrf.mxu0
        %2835 = vmatprep.mubr.f32.mxu0 0.0
        %2836 = vmatmul.mubr.f32.gmra.mxu0 %v2386
        %v2837 = vpop.f32.mrf.mxu0
        %v2838 = vadd.f32 %v2715, %v2837
        %v2839 = vpop.f32.mrf.mxu0
        %2840 = vmatprep.mubr.f32.mxu0 0.0
        %2841 = vmatmul.mubr.f32.gmra.mxu0 %v2389
        %v2842 = vpop.f32.mrf.mxu0
        %v2843 = vadd.f32 %v2715, %v2842
        %v2844 = vpop.f32.mrf.mxu0
        %2845 = vmatprep.mubr.f32.mxu0 0.0
        %2846 = vmatmul.mubr.f32.gmra.mxu0 %v2392
        %v2847 = vpop.f32.mrf.mxu0
        %v2848 = vadd.f32 %v2715, %v2847
        %v2849 = vpop.f32.mrf.mxu0
        %2850 = vmatprep.mubr.f32.mxu0 0.0
        %2851 = vmatmul.mubr.f32.gmra.mxu0 %v2395
        %v2852 = vpop.f32.mrf.mxu0
        %v2853 = vadd.f32 %v2715, %v2852
        %v2854 = vpop.f32.mrf.mxu0
        %2855 = vmatprep.mubr.f32.mxu0 0.0
        %2856 = vmatmul.mubr.f32.gmra.mxu0 %v2398
        %v2857 = vpop.f32.mrf.mxu0
        %v2858 = vadd.f32 %v2715, %v2857
        %v2859 = vpop.f32.mrf.mxu0
        %2860 = vdwg.mxu0
        %v2861 = vadd.f32 %v1945, %v2467
        %v2862 = vadd.f32 %v1950, %v2472
        %v2863 = vadd.f32 %v1955, %v2477
        %v2864 = vadd.f32 %v1960, %v2482
        %v2865 = vadd.f32 %v1965, %v2487
        %v2866 = vadd.f32 %v1970, %v2492
        %v2867 = vadd.f32 %v1975, %v2497
        %v2868 = vadd.f32 %v1980, %v2502
        %v2869 = vadd.f32 %v1985, %v2507
        %v2870 = vadd.f32 %v1990, %v2512
        %v2871 = vadd.f32 %v1995, %v2517
        %v2872 = vadd.f32 %v2000, %v2522
        %v2873 = vadd.f32 %v2005, %v2527
        %v2874 = vadd.f32 %v2010, %v2532
        %v2875 = vadd.f32 %v2015, %v2537
        %v2876 = vadd.f32 %v2020, %v2542
        %v2877 = vxor.u32 %v2861, 2147483648
        %v2878 = vxor.u32 %v2862, 2147483648
        %v2879 = vxor.u32 %v2863, 2147483648
        %v2880 = vxor.u32 %v2864, 2147483648
        %v2881 = vxor.u32 %v2865, 2147483648
        %v2882 = vxor.u32 %v2866, 2147483648
        %v2883 = vxor.u32 %v2867, 2147483648
        %v2884 = vxor.u32 %v2868, 2147483648
        %v2885 = vxor.u32 %v2869, 2147483648
        %v2886 = vxor.u32 %v2870, 2147483648
        %v2887 = vxor.u32 %v2871, 2147483648
        %v2888 = vxor.u32 %v2872, 2147483648
        %v2889 = vxor.u32 %v2873, 2147483648
        %v2890 = vxor.u32 %v2874, 2147483648
        %v2891 = vxor.u32 %v2875, 2147483648
        %v2892 = vxor.u32 %v2876, 2147483648
        %v2893 = vmul.f32 %v2877, 1.442695
        %v2894 = vpow.pop %v2893
        %v2895 = vmul.f32 %v2878, 1.442695
        %v2896 = vpow.pop %v2895
        %v2897 = vmul.f32 %v2879, 1.442695
        %v2898 = vpow.pop %v2897
        %v2899 = vmul.f32 %v2880, 1.442695
        %v2900 = vpow.pop %v2899
        %v2901 = vmul.f32 %v2881, 1.442695
        %v2902 = vpow.pop %v2901
        %v2903 = vmul.f32 %v2882, 1.442695
        %v2904 = vpow.pop %v2903
        %v2905 = vmul.f32 %v2883, 1.442695
        %v2906 = vpow.pop %v2905
        %v2907 = vmul.f32 %v2884, 1.442695
        %v2908 = vpow.pop %v2907
        %v2909 = vmul.f32 %v2885, 1.442695
        %v2910 = vpow.pop %v2909
        %v2911 = vmul.f32 %v2886, 1.442695
        %v2912 = vpow.pop %v2911
        %v2913 = vmul.f32 %v2887, 1.442695
        %v2914 = vpow.pop %v2913
        %v2915 = vmul.f32 %v2888, 1.442695
        %v2916 = vpow.pop %v2915
        %v2917 = vmul.f32 %v2889, 1.442695
        %v2918 = vpow.pop %v2917
        %v2919 = vmul.f32 %v2890, 1.442695
        %v2920 = vpow.pop %v2919
        %v2921 = vmul.f32 %v2891, 1.442695
        %v2922 = vpow.pop %v2921
        %v2923 = vmul.f32 %v2892, 1.442695
        %v2924 = vpow.pop %v2923
        %v2925 = vadd.f32 %v2894, 1.0
        %v2926 = vadd.f32 %v2896, 1.0
        %v2927 = vadd.f32 %v2898, 1.0
        %v2928 = vadd.f32 %v2900, 1.0
        %v2929 = vadd.f32 %v2902, 1.0
        %v2930 = vadd.f32 %v2904, 1.0
        %v2931 = vadd.f32 %v2906, 1.0
        %v2932 = vadd.f32 %v2908, 1.0
        %v2933 = vadd.f32 %v2910, 1.0
        %v2934 = vadd.f32 %v2912, 1.0
        %v2935 = vadd.f32 %v2914, 1.0
        %v2936 = vadd.f32 %v2916, 1.0
        %v2937 = vadd.f32 %v2918, 1.0
        %v2938 = vadd.f32 %v2920, 1.0
        %v2939 = vadd.f32 %v2922, 1.0
        %v2940 = vadd.f32 %v2924, 1.0
        %v2941 = vrcp.pop %v2925
        %v2942 = vmul.f32 1.0, %v2941
        %v2943 = vrcp.pop %v2926
        %v2944 = vmul.f32 1.0, %v2943
        %v2945 = vrcp.pop %v2927
        %v2946 = vmul.f32 1.0, %v2945
        %v2947 = vrcp.pop %v2928
        %v2948 = vmul.f32 1.0, %v2947
        %v2949 = vrcp.pop %v2929
        %v2950 = vmul.f32 1.0, %v2949
        %v2951 = vrcp.pop %v2930
        %v2952 = vmul.f32 1.0, %v2951
        %v2953 = vrcp.pop %v2931
        %v2954 = vmul.f32 1.0, %v2953
        %v2955 = vrcp.pop %v2932
        %v2956 = vmul.f32 1.0, %v2955
        %v2957 = vrcp.pop %v2933
        %v2958 = vmul.f32 1.0, %v2957
        %v2959 = vrcp.pop %v2934
        %v2960 = vmul.f32 1.0, %v2959
        %v2961 = vrcp.pop %v2935
        %v2962 = vmul.f32 1.0, %v2961
        %v2963 = vrcp.pop %v2936
        %v2964 = vmul.f32 1.0, %v2963
        %v2965 = vrcp.pop %v2937
        %v2966 = vmul.f32 1.0, %v2965
        %v2967 = vrcp.pop %v2938
        %v2968 = vmul.f32 1.0, %v2967
        %v2969 = vrcp.pop %v2939
        %v2970 = vmul.f32 1.0, %v2969
        %v2971 = vrcp.pop %v2940
        %v2972 = vmul.f32 1.0, %v2971
        %v2973 = vadd.f32 %v2103, %v2625
        %v2974 = vadd.f32 %v2108, %v2630
        %v2975 = vadd.f32 %v2113, %v2635
        %v2976 = vadd.f32 %v2118, %v2640
        %v2977 = vadd.f32 %v2123, %v2645
        %v2978 = vadd.f32 %v2128, %v2650
        %v2979 = vadd.f32 %v2133, %v2655
        %v2980 = vadd.f32 %v2138, %v2660
        %v2981 = vadd.f32 %v2143, %v2665
        %v2982 = vadd.f32 %v2148, %v2670
        %v2983 = vadd.f32 %v2153, %v2675
        %v2984 = vadd.f32 %v2158, %v2680
        %v2985 = vadd.f32 %v2163, %v2685
        %v2986 = vadd.f32 %v2168, %v2690
        %v2987 = vadd.f32 %v2173, %v2695
        %v2988 = vadd.f32 %v2178, %v2700
        %v2989 = vxor.u32 %v2973, 2147483648
        %v2990 = vxor.u32 %v2974, 2147483648
        %v2991 = vxor.u32 %v2975, 2147483648
        %v2992 = vxor.u32 %v2976, 2147483648
        %v2993 = vxor.u32 %v2977, 2147483648
        %v2994 = vxor.u32 %v2978, 2147483648
        %v2995 = vxor.u32 %v2979, 2147483648
        %v2996 = vxor.u32 %v2980, 2147483648
        %v2997 = vxor.u32 %v2981, 2147483648
        %v2998 = vxor.u32 %v2982, 2147483648
        %v2999 = vxor.u32 %v2983, 2147483648
        %v3000 = vxor.u32 %v2984, 2147483648
        %v3001 = vxor.u32 %v2985, 2147483648
        %v3002 = vxor.u32 %v2986, 2147483648
        %v3003 = vxor.u32 %v2987, 2147483648
        %v3004 = vxor.u32 %v2988, 2147483648
        %v3005 = vmul.f32 %v2989, 1.442695
        %v3006 = vpow.pop %v3005
        %v3007 = vmul.f32 %v2990, 1.442695
        %v3008 = vpow.pop %v3007
        %v3009 = vmul.f32 %v2991, 1.442695
        %v3010 = vpow.pop %v3009
        %v3011 = vmul.f32 %v2992, 1.442695
        %v3012 = vpow.pop %v3011
        %v3013 = vmul.f32 %v2993, 1.442695
        %v3014 = vpow.pop %v3013
        %v3015 = vmul.f32 %v2994, 1.442695
        %v3016 = vpow.pop %v3015
        %v3017 = vmul.f32 %v2995, 1.442695
        %v3018 = vpow.pop %v3017
        %v3019 = vmul.f32 %v2996, 1.442695
        %v3020 = vpow.pop %v3019
        %v3021 = vmul.f32 %v2997, 1.442695
        %v3022 = vpow.pop %v3021
        %v3023 = vmul.f32 %v2998, 1.442695
        %v3024 = vpow.pop %v3023
        %v3025 = vmul.f32 %v2999, 1.442695
        %v3026 = vpow.pop %v3025
        %v3027 = vmul.f32 %v3000, 1.442695
        %v3028 = vpow.pop %v3027
        %v3029 = vmul.f32 %v3001, 1.442695
        %v3030 = vpow.pop %v3029
        %v3031 = vmul.f32 %v3002, 1.442695
        %v3032 = vpow.pop %v3031
        %v3033 = vmul.f32 %v3003, 1.442695
        %v3034 = vpow.pop %v3033
        %v3035 = vmul.f32 %v3004, 1.442695
        %v3036 = vpow.pop %v3035
        %v3037 = vadd.f32 %v3006, 1.0
        %v3038 = vadd.f32 %v3008, 1.0
        %v3039 = vadd.f32 %v3010, 1.0
        %v3040 = vadd.f32 %v3012, 1.0
        %v3041 = vadd.f32 %v3014, 1.0
        %v3042 = vadd.f32 %v3016, 1.0
        %v3043 = vadd.f32 %v3018, 1.0
        %v3044 = vadd.f32 %v3020, 1.0
        %v3045 = vadd.f32 %v3022, 1.0
        %v3046 = vadd.f32 %v3024, 1.0
        %v3047 = vadd.f32 %v3026, 1.0
        %v3048 = vadd.f32 %v3028, 1.0
        %v3049 = vadd.f32 %v3030, 1.0
        %v3050 = vadd.f32 %v3032, 1.0
        %v3051 = vadd.f32 %v3034, 1.0
        %v3052 = vadd.f32 %v3036, 1.0
        %v3053 = vrcp.pop %v3037
        %v3054 = vmul.f32 1.0, %v3053
        %v3055 = vrcp.pop %v3038
        %v3056 = vmul.f32 1.0, %v3055
        %v3057 = vrcp.pop %v3039
        %v3058 = vmul.f32 1.0, %v3057
        %v3059 = vrcp.pop %v3040
        %v3060 = vmul.f32 1.0, %v3059
        %v3061 = vrcp.pop %v3041
        %v3062 = vmul.f32 1.0, %v3061
        %v3063 = vrcp.pop %v3042
        %v3064 = vmul.f32 1.0, %v3063
        %v3065 = vrcp.pop %v3043
        %v3066 = vmul.f32 1.0, %v3065
        %v3067 = vrcp.pop %v3044
        %v3068 = vmul.f32 1.0, %v3067
        %v3069 = vrcp.pop %v3045
        %v3070 = vmul.f32 1.0, %v3069
        %v3071 = vrcp.pop %v3046
        %v3072 = vmul.f32 1.0, %v3071
        %v3073 = vrcp.pop %v3047
        %v3074 = vmul.f32 1.0, %v3073
        %v3075 = vrcp.pop %v3048
        %v3076 = vmul.f32 1.0, %v3075
        %v3077 = vrcp.pop %v3049
        %v3078 = vmul.f32 1.0, %v3077
        %v3079 = vrcp.pop %v3050
        %v3080 = vmul.f32 1.0, %v3079
        %v3081 = vrcp.pop %v3051
        %v3082 = vmul.f32 1.0, %v3081
        %v3083 = vrcp.pop %v3052
        %v3084 = vmul.f32 1.0, %v3083
        %v3085 = vmul.f32 %v2942, %v2783
        %v3086 = vmul.f32 %v2944, %v2788
        %v3087 = vmul.f32 %v2946, %v2793
        %v3088 = vmul.f32 %v2948, %v2798
        %v3089 = vmul.f32 %v2950, %v2803
        %v3090 = vmul.f32 %v2952, %v2808
        %v3091 = vmul.f32 %v2954, %v2813
        %v3092 = vmul.f32 %v2956, %v2818
        %v3093 = vmul.f32 %v2958, %v2823
        %v3094 = vmul.f32 %v2960, %v2828
        %v3095 = vmul.f32 %v2962, %v2833
        %v3096 = vmul.f32 %v2964, %v2838
        %v3097 = vmul.f32 %v2966, %v2843
        %v3098 = vmul.f32 %v2968, %v2848
        %v3099 = vmul.f32 %v2970, %v2853
        %v3100 = vmul.f32 %v2972, %v2858
        %v3101 = vadd.f32 %v2261, %v3085
        %v3102 = vadd.f32 %v2266, %v3086
        %v3103 = vadd.f32 %v2271, %v3087
        %v3104 = vadd.f32 %v2276, %v3088
        %v3105 = vadd.f32 %v2281, %v3089
        %v3106 = vadd.f32 %v2286, %v3090
        %v3107 = vadd.f32 %v2291, %v3091
        %v3108 = vadd.f32 %v2296, %v3092
        %v3109 = vadd.f32 %v2301, %v3093
        %v3110 = vadd.f32 %v2306, %v3094
        %v3111 = vadd.f32 %v2311, %v3095
        %v3112 = vadd.f32 %v2316, %v3096
        %v3113 = vadd.f32 %v2321, %v3097
        %v3114 = vadd.f32 %v2326, %v3098
        %v3115 = vadd.f32 %v2331, %v3099
        %v3116 = vadd.f32 %v2336, %v3100
        %v3117 = vtanh.pop %v3101
        %v3118 = vtanh.pop %v3102
        %v3119 = vtanh.pop %v3103
        %v3120 = vtanh.pop %v3104
        %v3121 = vtanh.pop %v3105
        %v3122 = vtanh.pop %v3106
        %v3123 = vtanh.pop %v3107
        %v3124 = vtanh.pop %v3108
        %v3125 = vtanh.pop %v3109
        %v3126 = vtanh.pop %v3110
        %v3127 = vtanh.pop %v3111
        %v3128 = vtanh.pop %v3112
        %v3129 = vtanh.pop %v3113
        %v3130 = vtanh.pop %v3114
        %v3131 = vtanh.pop %v3115
        %v3132 = vtanh.pop %v3116
        %v3133 = vsub.f32 1.0, %v3054
        %v3134 = vsub.f32 1.0, %v3056
        %v3135 = vsub.f32 1.0, %v3058
        %v3136 = vsub.f32 1.0, %v3060
        %v3137 = vsub.f32 1.0, %v3062
        %v3138 = vsub.f32 1.0, %v3064
        %v3139 = vsub.f32 1.0, %v3066
        %v3140 = vsub.f32 1.0, %v3068
        %v3141 = vsub.f32 1.0, %v3070
        %v3142 = vsub.f32 1.0, %v3072
        %v3143 = vsub.f32 1.0, %v3074
        %v3144 = vsub.f32 1.0, %v3076
        %v3145 = vsub.f32 1.0, %v3078
        %v3146 = vsub.f32 1.0, %v3080
        %v3147 = vsub.f32 1.0, %v3082
        %v3148 = vsub.f32 1.0, %v3084
        %v3149 = vmul.f32 %v3133, %v3117
        %v3150 = vmul.f32 %v3134, %v3118
        %v3151 = vmul.f32 %v3135, %v3119
        %v3152 = vmul.f32 %v3136, %v3120
        %v3153 = vmul.f32 %v3137, %v3121
        %v3154 = vmul.f32 %v3138, %v3122
        %v3155 = vmul.f32 %v3139, %v3123
        %v3156 = vmul.f32 %v3140, %v3124
        %v3157 = vmul.f32 %v3141, %v3125
        %v3158 = vmul.f32 %v3142, %v3126
        %v3159 = vmul.f32 %v3143, %v3127
        %v3160 = vmul.f32 %v3144, %v3128
        %v3161 = vmul.f32 %v3145, %v3129
        %v3162 = vmul.f32 %v3146, %v3130
        %v3163 = vmul.f32 %v3147, %v3131
        %v3164 = vmul.f32 %v3148, %v3132
        %v3165 = vmul.f32 %v3054, %v1802
        %v3166 = vmul.f32 %v3056, %v1803
        %v3167 = vmul.f32 %v3058, %v1804
        %v3168 = vmul.f32 %v3060, %v1805
        %v3169 = vmul.f32 %v3062, %v1806
        %v3170 = vmul.f32 %v3064, %v1807
        %v3171 = vmul.f32 %v3066, %v1808
        %v3172 = vmul.f32 %v3068, %v1809
        %v3173 = vmul.f32 %v3070, %v1810
        %v3174 = vmul.f32 %v3072, %v1811
        %v3175 = vmul.f32 %v3074, %v1812
        %v3176 = vmul.f32 %v3076, %v1813
        %v3177 = vmul.f32 %v3078, %v1814
        %v3178 = vmul.f32 %v3080, %v1815
        %v3179 = vmul.f32 %v3082, %v1816
        %v3180 = vmul.f32 %v3084, %v1817
        %v3181 = vadd.f32 %v3149, %v3165
        %v3182 = vadd.f32 %v3150, %v3166
        %v3183 = vadd.f32 %v3151, %v3167
        %v3184 = vadd.f32 %v3152, %v3168
        %v3185 = vadd.f32 %v3153, %v3169
        %v3186 = vadd.f32 %v3154, %v3170
        %v3187 = vadd.f32 %v3155, %v3171
        %v3188 = vadd.f32 %v3156, %v3172
        %v3189 = vadd.f32 %v3157, %v3173
        %v3190 = vadd.f32 %v3158, %v3174
        %v3191 = vadd.f32 %v3159, %v3175
        %v3192 = vadd.f32 %v3160, %v3176
        %v3193 = vadd.f32 %v3161, %v3177
        %v3194 = vadd.f32 %v3162, %v3178
        %v3195 = vadd.f32 %v3163, %v3179
        %v3196 = vadd.f32 %v3164, %v3180
        %v3197 = vsel %vm613, %v3181, 0.0
        %3198 = vadd.xlane.f32.xlu0 %v3197
        %v3199 = vpop.xlane.xlu0 %3198
        %v3200 = vsel %vm613, %v3182, 0.0
        %3201 = vadd.xlane.f32.xlu0 %v3200
        %v3202 = vpop.xlane.xlu0 %3201
        %v3203 = vsel %vm613, %v3183, 0.0
        %3204 = vadd.xlane.f32.xlu0 %v3203
        %v3205 = vpop.xlane.xlu0 %3204
        %v3206 = vsel %vm613, %v3184, 0.0
        %3207 = vadd.xlane.f32.xlu0 %v3206
        %v3208 = vpop.xlane.xlu0 %3207
        %v3209 = vsel %vm613, %v3185, 0.0
        %3210 = vadd.xlane.f32.xlu0 %v3209
        %v3211 = vpop.xlane.xlu0 %3210
        %v3212 = vsel %vm613, %v3186, 0.0
        %3213 = vadd.xlane.f32.xlu0 %v3212
        %v3214 = vpop.xlane.xlu0 %3213
        %v3215 = vsel %vm613, %v3187, 0.0
        %3216 = vadd.xlane.f32.xlu0 %v3215
        %v3217 = vpop.xlane.xlu0 %3216
        %v3218 = vsel %vm613, %v3188, 0.0
        %3219 = vadd.xlane.f32.xlu0 %v3218
        %v3220 = vpop.xlane.xlu0 %3219
        %v3221 = vsel %vm613, %v3189, 0.0
        %3222 = vadd.xlane.f32.xlu0 %v3221
        %v3223 = vpop.xlane.xlu0 %3222
        %v3224 = vsel %vm613, %v3190, 0.0
        %3225 = vadd.xlane.f32.xlu0 %v3224
        %v3226 = vpop.xlane.xlu0 %3225
        %v3227 = vsel %vm613, %v3191, 0.0
        %3228 = vadd.xlane.f32.xlu0 %v3227
        %v3229 = vpop.xlane.xlu0 %3228
        %v3230 = vsel %vm613, %v3192, 0.0
        %3231 = vadd.xlane.f32.xlu0 %v3230
        %v3232 = vpop.xlane.xlu0 %3231
        %v3233 = vsel %vm613, %v3193, 0.0
        %3234 = vadd.xlane.f32.xlu0 %v3233
        %v3235 = vpop.xlane.xlu0 %3234
        %v3236 = vsel %vm613, %v3194, 0.0
        %3237 = vadd.xlane.f32.xlu0 %v3236
        %v3238 = vpop.xlane.xlu0 %3237
        %v3239 = vsel %vm613, %v3195, 0.0
        %3240 = vadd.xlane.f32.xlu0 %v3239
        %v3241 = vpop.xlane.xlu0 %3240
        %v3242 = vsel %vm613, %v3196, 0.0
        %3243 = vadd.xlane.f32.xlu0 %v3242
        %v3244 = vpop.xlane.xlu0 %3243
        %v3245 = vmul.f32 %v3199, %v662
        %v3246 = vmul.f32 %v3202, %v662
        %v3247 = vmul.f32 %v3205, %v662
        %v3248 = vmul.f32 %v3208, %v662
        %v3249 = vmul.f32 %v3211, %v662
        %v3250 = vmul.f32 %v3214, %v662
        %v3251 = vmul.f32 %v3217, %v662
        %v3252 = vmul.f32 %v3220, %v662
        %v3253 = vmul.f32 %v3223, %v662
        %v3254 = vmul.f32 %v3226, %v662
        %v3255 = vmul.f32 %v3229, %v662
        %v3256 = vmul.f32 %v3232, %v662
        %v3257 = vmul.f32 %v3235, %v662
        %v3258 = vmul.f32 %v3238, %v662
        %v3259 = vmul.f32 %v3241, %v662
        %v3260 = vmul.f32 %v3244, %v662
        %v3261 = vsub.f32 %v3181, %v3245
        %v3262 = vsub.f32 %v3182, %v3246
        %v3263 = vsub.f32 %v3183, %v3247
        %v3264 = vsub.f32 %v3184, %v3248
        %v3265 = vsub.f32 %v3185, %v3249
        %v3266 = vsub.f32 %v3186, %v3250
        %v3267 = vsub.f32 %v3187, %v3251
        %v3268 = vsub.f32 %v3188, %v3252
        %v3269 = vsub.f32 %v3189, %v3253
        %v3270 = vsub.f32 %v3190, %v3254
        %v3271 = vsub.f32 %v3191, %v3255
        %v3272 = vsub.f32 %v3192, %v3256
        %v3273 = vsub.f32 %v3193, %v3257
        %v3274 = vsub.f32 %v3194, %v3258
        %v3275 = vsub.f32 %v3195, %v3259
        %v3276 = vsub.f32 %v3196, %v3260
        %v3277 = vmul.f32 %v3261, %v3261
        %v3278 = vmul.f32 %v3262, %v3262
        %v3279 = vmul.f32 %v3263, %v3263
        %v3280 = vmul.f32 %v3264, %v3264
        %v3281 = vmul.f32 %v3265, %v3265
        %v3282 = vmul.f32 %v3266, %v3266
        %v3283 = vmul.f32 %v3267, %v3267
        %v3284 = vmul.f32 %v3268, %v3268
        %v3285 = vmul.f32 %v3269, %v3269
        %v3286 = vmul.f32 %v3270, %v3270
        %v3287 = vmul.f32 %v3271, %v3271
        %v3288 = vmul.f32 %v3272, %v3272
        %v3289 = vmul.f32 %v3273, %v3273
        %v3290 = vmul.f32 %v3274, %v3274
        %v3291 = vmul.f32 %v3275, %v3275
        %v3292 = vmul.f32 %v3276, %v3276
        %v3293 = vsel %vm613, %v3277, 0.0
        %3294 = vadd.xlane.f32.xlu0 %v3293
        %v3295 = vpop.xlane.xlu0 %3294
        %v3296 = vsel %vm613, %v3278, 0.0
        %3297 = vadd.xlane.f32.xlu0 %v3296
        %v3298 = vpop.xlane.xlu0 %3297
        %v3299 = vsel %vm613, %v3279, 0.0
        %3300 = vadd.xlane.f32.xlu0 %v3299
        %v3301 = vpop.xlane.xlu0 %3300
        %v3302 = vsel %vm613, %v3280, 0.0
        %3303 = vadd.xlane.f32.xlu0 %v3302
        %v3304 = vpop.xlane.xlu0 %3303
        %v3305 = vsel %vm613, %v3281, 0.0
        %3306 = vadd.xlane.f32.xlu0 %v3305
        %v3307 = vpop.xlane.xlu0 %3306
        %v3308 = vsel %vm613, %v3282, 0.0
        %3309 = vadd.xlane.f32.xlu0 %v3308
        %v3310 = vpop.xlane.xlu0 %3309
        %v3311 = vsel %vm613, %v3283, 0.0
        %3312 = vadd.xlane.f32.xlu0 %v3311
        %v3313 = vpop.xlane.xlu0 %3312
        %v3314 = vsel %vm613, %v3284, 0.0
        %3315 = vadd.xlane.f32.xlu0 %v3314
        %v3316 = vpop.xlane.xlu0 %3315
        %v3317 = vsel %vm613, %v3285, 0.0
        %3318 = vadd.xlane.f32.xlu0 %v3317
        %v3319 = vpop.xlane.xlu0 %3318
        %v3320 = vsel %vm613, %v3286, 0.0
        %3321 = vadd.xlane.f32.xlu0 %v3320
        %v3322 = vpop.xlane.xlu0 %3321
        %v3323 = vsel %vm613, %v3287, 0.0
        %3324 = vadd.xlane.f32.xlu0 %v3323
        %v3325 = vpop.xlane.xlu0 %3324
        %v3326 = vsel %vm613, %v3288, 0.0
        %3327 = vadd.xlane.f32.xlu0 %v3326
        %v3328 = vpop.xlane.xlu0 %3327
        %v3329 = vsel %vm613, %v3289, 0.0
        %3330 = vadd.xlane.f32.xlu0 %v3329
        %v3331 = vpop.xlane.xlu0 %3330
        %v3332 = vsel %vm613, %v3290, 0.0
        %3333 = vadd.xlane.f32.xlu0 %v3332
        %v3334 = vpop.xlane.xlu0 %3333
        %v3335 = vsel %vm613, %v3291, 0.0
        %3336 = vadd.xlane.f32.xlu0 %v3335
        %v3337 = vpop.xlane.xlu0 %3336
        %v3338 = vsel %vm613, %v3292, 0.0
        %3339 = vadd.xlane.f32.xlu0 %v3338
        %v3340 = vpop.xlane.xlu0 %3339
        %v3341 = vmul.f32 %v3295, %v662
        %v3342 = vmul.f32 %v3298, %v662
        %v3343 = vmul.f32 %v3301, %v662
        %v3344 = vmul.f32 %v3304, %v662
        %v3345 = vmul.f32 %v3307, %v662
        %v3346 = vmul.f32 %v3310, %v662
        %v3347 = vmul.f32 %v3313, %v662
        %v3348 = vmul.f32 %v3316, %v662
        %v3349 = vmul.f32 %v3319, %v662
        %v3350 = vmul.f32 %v3322, %v662
        %v3351 = vmul.f32 %v3325, %v662
        %v3352 = vmul.f32 %v3328, %v662
        %v3353 = vmul.f32 %v3331, %v662
        %v3354 = vmul.f32 %v3334, %v662
        %v3355 = vmul.f32 %v3337, %v662
        %v3356 = vmul.f32 %v3340, %v662
        %v3357 = vadd.f32 %v3341, 1e-05
        %v3358 = vadd.f32 %v3342, 1e-05
        %v3359 = vadd.f32 %v3343, 1e-05
        %v3360 = vadd.f32 %v3344, 1e-05
        %v3361 = vadd.f32 %v3345, 1e-05
        %v3362 = vadd.f32 %v3346, 1e-05
        %v3363 = vadd.f32 %v3347, 1e-05
        %v3364 = vadd.f32 %v3348, 1e-05
        %v3365 = vadd.f32 %v3349, 1e-05
        %v3366 = vadd.f32 %v3350, 1e-05
        %v3367 = vadd.f32 %v3351, 1e-05
        %v3368 = vadd.f32 %v3352, 1e-05
        %v3369 = vadd.f32 %v3353, 1e-05
        %v3370 = vadd.f32 %v3354, 1e-05
        %v3371 = vadd.f32 %v3355, 1e-05
        %v3372 = vadd.f32 %v3356, 1e-05
        %v3373 = vrsqrt.pop %v3357
        %v3374 = vrsqrt.pop %v3358
        %v3375 = vrsqrt.pop %v3359
        %v3376 = vrsqrt.pop %v3360
        %v3377 = vrsqrt.pop %v3361
        %v3378 = vrsqrt.pop %v3362
        %v3379 = vrsqrt.pop %v3363
        %v3380 = vrsqrt.pop %v3364
        %v3381 = vrsqrt.pop %v3365
        %v3382 = vrsqrt.pop %v3366
        %v3383 = vrsqrt.pop %v3367
        %v3384 = vrsqrt.pop %v3368
        %v3385 = vrsqrt.pop %v3369
        %v3386 = vrsqrt.pop %v3370
        %v3387 = vrsqrt.pop %v3371
        %v3388 = vrsqrt.pop %v3372
        %v3389 = vmul.f32 %v3261, %v3373
        %v3390 = vmul.f32 %v3262, %v3374
        %v3391 = vmul.f32 %v3263, %v3375
        %v3392 = vmul.f32 %v3264, %v3376
        %v3393 = vmul.f32 %v3265, %v3377
        %v3394 = vmul.f32 %v3266, %v3378
        %v3395 = vmul.f32 %v3267, %v3379
        %v3396 = vmul.f32 %v3268, %v3380
        %v3397 = vmul.f32 %v3269, %v3381
        %v3398 = vmul.f32 %v3270, %v3382
        %v3399 = vmul.f32 %v3271, %v3383
        %v3400 = vmul.f32 %v3272, %v3384
        %v3401 = vmul.f32 %v3273, %v3385
        %v3402 = vmul.f32 %v3274, %v3386
        %v3403 = vmul.f32 %v3275, %v3387
        %v3404 = vmul.f32 %v3276, %v3388
        %v3405 = vlaneseq
        %v3406 = vshrl.u32 %v3405, 7
        %v3407 = vsub.s32 1, %v3406
        %v3408 = vrot.slane %v371, %v3407
        %v3409 = vmul.f32 %v3389, %v3408
        %v3410 = vmul.f32 %v3390, %v3408
        %v3411 = vmul.f32 %v3391, %v3408
        %v3412 = vmul.f32 %v3392, %v3408
        %v3413 = vmul.f32 %v3393, %v3408
        %v3414 = vmul.f32 %v3394, %v3408
        %v3415 = vmul.f32 %v3395, %v3408
        %v3416 = vmul.f32 %v3396, %v3408
        %v3417 = vmul.f32 %v3397, %v3408
        %v3418 = vmul.f32 %v3398, %v3408
        %v3419 = vmul.f32 %v3399, %v3408
        %v3420 = vmul.f32 %v3400, %v3408
        %v3421 = vmul.f32 %v3401, %v3408
        %v3422 = vmul.f32 %v3402, %v3408
        %v3423 = vmul.f32 %v3403, %v3408
        %v3424 = vmul.f32 %v3404, %v3408
        %v3425 = vlaneseq
        %v3426 = vshrl.u32 %v3425, 7
        %v3427 = vsub.s32 2, %v3426
        %v3428 = vrot.slane %v371, %v3427
        %v3429 = vadd.f32 %v3409, %v3428
        %v3430 = vadd.f32 %v3410, %v3428
        %v3431 = vadd.f32 %v3411, %v3428
        %v3432 = vadd.f32 %v3412, %v3428
        %v3433 = vadd.f32 %v3413, %v3428
        %v3434 = vadd.f32 %v3414, %v3428
        %v3435 = vadd.f32 %v3415, %v3428
        %v3436 = vadd.f32 %v3416, %v3428
        %v3437 = vadd.f32 %v3417, %v3428
        %v3438 = vadd.f32 %v3418, %v3428
        %v3439 = vadd.f32 %v3419, %v3428
        %v3440 = vadd.f32 %v3420, %v3428
        %v3441 = vadd.f32 %v3421, %v3428
        %v3442 = vadd.f32 %v3422, %v3428
        %v3443 = vadd.f32 %v3423, %v3428
        %v3444 = vadd.f32 %v3424, %v3428
        %v3445 = vld [vmem:[%s5] sm:$0xff]
        %v3446 = vld [vmem:[%s5 + $0x8] sm:$0xff]
        %v3447 = vld [vmem:[%s5 + $0x10] sm:$0xff]
        %v3448 = vld [vmem:[%s5 + $0x18] sm:$0xff]
        %v3449 = vld [vmem:[%s5 + $0x20] sm:$0xff]
        %v3450 = vld [vmem:[%s5 + $0x28] sm:$0xff]
        %v3451 = vld [vmem:[%s5 + $0x30] sm:$0xff]
        %v3452 = vld [vmem:[%s5 + $0x38] sm:$0xff]
        %v3453 = vld [vmem:[%s7] sm:$0x1]
        %v3455 = vlaneseq
        %v3456 = vshrl.u32 %v3455, 7
        %v3457 = vsub.s32 0, %v3456
        %v3458 = vrot.slane %v3453, %v3457
        %v3461 = vsel %vm613, %v3429, 0
        %v3464 = vsel %vm613, %v3430, 0
        %v3467 = vsel %vm613, %v3431, 0
        %v3470 = vsel %vm613, %v3432, 0
        %v3473 = vsel %vm613, %v3433, 0
        %v3476 = vsel %vm613, %v3434, 0
        %v3479 = vsel %vm613, %v3435, 0
        %v3482 = vsel %vm613, %v3436, 0
        %v3485 = vsel %vm613, %v3437, 0
        %v3488 = vsel %vm613, %v3438, 0
        %v3491 = vsel %vm613, %v3439, 0
        %v3494 = vsel %vm613, %v3440, 0
        %v3497 = vsel %vm613, %v3441, 0
        %v3500 = vsel %vm613, %v3442, 0
        %v3503 = vsel %vm613, %v3443, 0
        %v3506 = vsel %vm613, %v3444, 0
        %3508 = vmatprep.subr.mxu0 0.0
        %3509 = vmatpush1.msra.mxu0 0.0
        %3510 = vmatprep.subr.mxu0 0.0
        %3511 = vmatpush1.msra.mxu0 0.0
        %3512 = vmatprep.subr.mxu0 0.0
        %3513 = vmatpush1.msra.mxu0 0.0
        %3514 = vmatprep.subr.mxu0 0.0
        %3515 = vmatpush1.msra.mxu0 0.0
        %3516 = vmatprep.subr.mxu0 0.0
        %3517 = vmatpush1.msra.mxu0 0.0
        %3518 = vmatprep.subr.mxu0 0.0
        %3519 = vmatpush1.msra.mxu0 0.0
        %3520 = vmatprep.subr.mxu0 0.0
        %3521 = vmatpush1.msra.mxu0 0.0
        %3522 = vmatprep.subr.mxu0 0.0
        %3523 = vmatpush1.msra.mxu0 0.0
        %3524 = vmatprep.subr.mxu0 0.0
        %3525 = vmatpush1.msra.mxu0 %v3452
        %3526 = vmatprep.subr.mxu0 0.0
        %3527 = vmatpush1.msra.mxu0 %v3451
        %3528 = vmatprep.subr.mxu0 0.0
        %3529 = vmatpush1.msra.mxu0 %v3450
        %3530 = vmatprep.subr.mxu0 0.0
        %3531 = vmatpush1.msra.mxu0 %v3449
        %3532 = vmatprep.subr.mxu0 0.0
        %3533 = vmatpush1.msra.mxu0 %v3448
        %3534 = vmatprep.subr.mxu0 0.0
        %3535 = vmatpush1.msra.mxu0 %v3447
        %3536 = vmatprep.subr.mxu0 0.0
        %3537 = vmatpush1.msra.mxu0 %v3446
        %3538 = vmatprep.subr.mxu0 0.0
        %3539 = vmatpush1.msra.mxu0 %v3445
        %3540 = vmatprep.subr.mxu0 0.0
        %3541 = vmatpush2.msra.mxu0 0.0
        %3542 = vmatprep.subr.mxu0 0.0
        %3543 = vmatpush2.msra.mxu0 0.0
        %3544 = vmatprep.subr.mxu0 0.0
        %3545 = vmatpush2.msra.mxu0 0.0
        %3546 = vmatprep.subr.mxu0 0.0
        %3547 = vmatpush2.msra.mxu0 0.0
        %3548 = vmatprep.subr.mxu0 0.0
        %3549 = vmatpush2.msra.mxu0 0.0
        %3550 = vmatprep.subr.mxu0 0.0
        %3551 = vmatpush2.msra.mxu0 0.0
        %3552 = vmatprep.subr.mxu0 0.0
        %3553 = vmatpush2.msra.mxu0 0.0
        %3554 = vmatprep.subr.mxu0 0.0
        %3555 = vmatpush2.msra.mxu0 0.0
        %3556 = vmatprep.subr.mxu0 0.0
        %3557 = vmatpush2.msra.mxu0 0.0
        %3558 = vmatprep.subr.mxu0 0.0
        %3559 = vmatpush2.msra.mxu0 0.0
        %3560 = vmatprep.subr.mxu0 0.0
        %3561 = vmatpush2.msra.mxu0 0.0
        %3562 = vmatprep.subr.mxu0 0.0
        %3563 = vmatpush2.msra.mxu0 0.0
        %3564 = vmatprep.subr.mxu0 0.0
        %3565 = vmatpush2.msra.mxu0 0.0
        %3566 = vmatprep.subr.mxu0 0.0
        %3567 = vmatpush2.msra.mxu0 0.0
        %3568 = vmatprep.subr.mxu0 0.0
        %3569 = vmatpush2.msra.mxu0 0.0
        %3570 = vmatprep.subr.mxu0 0.0
        %3571 = vmatpush2.msra.mxu0 0.0
        %3572 = vmatprep.mubr.f32.mxu0 0.0
        %3573 = vmatmul.mubr.f32.gmra.mxu0 %v3461
        %v3574 = vpop.f32.mrf.mxu0
        %v3575 = vadd.f32 %v3458, %v3574
        %v3576 = vpop.f32.mrf.mxu0
        %3577 = vmatprep.mubr.f32.mxu0 0.0
        %3578 = vmatmul.mubr.f32.gmra.mxu0 %v3464
        %v3579 = vpop.f32.mrf.mxu0
        %v3580 = vadd.f32 %v3458, %v3579
        %v3581 = vpop.f32.mrf.mxu0
        %3582 = vmatprep.mubr.f32.mxu0 0.0
        %3583 = vmatmul.mubr.f32.gmra.mxu0 %v3467
        %v3584 = vpop.f32.mrf.mxu0
        %v3585 = vadd.f32 %v3458, %v3584
        %v3586 = vpop.f32.mrf.mxu0
        %3587 = vmatprep.mubr.f32.mxu0 0.0
        %3588 = vmatmul.mubr.f32.gmra.mxu0 %v3470
        %v3589 = vpop.f32.mrf.mxu0
        %v3590 = vadd.f32 %v3458, %v3589
        %v3591 = vpop.f32.mrf.mxu0
        %3592 = vmatprep.mubr.f32.mxu0 0.0
        %3593 = vmatmul.mubr.f32.gmra.mxu0 %v3473
        %v3594 = vpop.f32.mrf.mxu0
        %v3595 = vadd.f32 %v3458, %v3594
        %v3596 = vpop.f32.mrf.mxu0
        %3597 = vmatprep.mubr.f32.mxu0 0.0
        %3598 = vmatmul.mubr.f32.gmra.mxu0 %v3476
        %v3599 = vpop.f32.mrf.mxu0
        %v3600 = vadd.f32 %v3458, %v3599
        %v3601 = vpop.f32.mrf.mxu0
        %3602 = vmatprep.mubr.f32.mxu0 0.0
        %3603 = vmatmul.mubr.f32.gmra.mxu0 %v3479
        %v3604 = vpop.f32.mrf.mxu0
        %v3605 = vadd.f32 %v3458, %v3604
        %v3606 = vpop.f32.mrf.mxu0
        %3607 = vmatprep.mubr.f32.mxu0 0.0
        %3608 = vmatmul.mubr.f32.gmra.mxu0 %v3482
        %v3609 = vpop.f32.mrf.mxu0
        %v3610 = vadd.f32 %v3458, %v3609
        %v3611 = vpop.f32.mrf.mxu0
        %3612 = vmatprep.mubr.f32.mxu0 0.0
        %3613 = vmatmul.mubr.f32.gmra.mxu0 %v3485
        %v3614 = vpop.f32.mrf.mxu0
        %v3615 = vadd.f32 %v3458, %v3614
        %v3616 = vpop.f32.mrf.mxu0
        %3617 = vmatprep.mubr.f32.mxu0 0.0
        %3618 = vmatmul.mubr.f32.gmra.mxu0 %v3488
        %v3619 = vpop.f32.mrf.mxu0
        %v3620 = vadd.f32 %v3458, %v3619
        %v3621 = vpop.f32.mrf.mxu0
        %3622 = vmatprep.mubr.f32.mxu0 0.0
        %3623 = vmatmul.mubr.f32.gmra.mxu0 %v3491
        %v3624 = vpop.f32.mrf.mxu0
        %v3625 = vadd.f32 %v3458, %v3624
        %v3626 = vpop.f32.mrf.mxu0
        %3627 = vmatprep.mubr.f32.mxu0 0.0
        %3628 = vmatmul.mubr.f32.gmra.mxu0 %v3494
        %v3629 = vpop.f32.mrf.mxu0
        %v3630 = vadd.f32 %v3458, %v3629
        %v3631 = vpop.f32.mrf.mxu0
        %3632 = vmatprep.mubr.f32.mxu0 0.0
        %3633 = vmatmul.mubr.f32.gmra.mxu0 %v3497
        %v3634 = vpop.f32.mrf.mxu0
        %v3635 = vadd.f32 %v3458, %v3634
        %v3636 = vpop.f32.mrf.mxu0
        %3637 = vmatprep.mubr.f32.mxu0 0.0
        %3638 = vmatmul.mubr.f32.gmra.mxu0 %v3500
        %v3639 = vpop.f32.mrf.mxu0
        %v3640 = vadd.f32 %v3458, %v3639
        %v3641 = vpop.f32.mrf.mxu0
        %3642 = vmatprep.mubr.f32.mxu0 0.0
        %3643 = vmatmul.mubr.f32.gmra.mxu0 %v3503
        %v3644 = vpop.f32.mrf.mxu0
        %v3645 = vadd.f32 %v3458, %v3644
        %v3646 = vpop.f32.mrf.mxu0
        %3647 = vmatprep.mubr.f32.mxu0 0.0
        %3648 = vmatmul.mubr.f32.gmra.mxu0 %v3506
        %v3649 = vpop.f32.mrf.mxu0
        %v3650 = vadd.f32 %v3458, %v3649
        %v3651 = vpop.f32.mrf.mxu0
        %3652 = vdwg.mxu0
        %3653 = vst [vmem:[%s343] sm:$0xff] %v3575
        %3654 = vst [vmem:[%s343 + $0x8] sm:$0xff] %v3580
        %3655 = vst [vmem:[%s343 + $0x10] sm:$0xff] %v3585
        %3656 = vst [vmem:[%s343 + $0x18] sm:$0xff] %v3590
        %3657 = vst [vmem:[%s343 + $0x20] sm:$0xff] %v3595
        %3658 = vst [vmem:[%s343 + $0x28] sm:$0xff] %v3600
        %3659 = vst [vmem:[%s343 + $0x30] sm:$0xff] %v3605
        %3660 = vst [vmem:[%s343 + $0x38] sm:$0xff] %v3610
        %3661 = vst [vmem:[%s343 + $0x40] sm:$0xff] %v3615
        %3662 = vst [vmem:[%s343 + $0x48] sm:$0xff] %v3620
        %3663 = vst [vmem:[%s343 + $0x50] sm:$0xff] %v3625
        %3664 = vst [vmem:[%s343 + $0x58] sm:$0xff] %v3630
        %3665 = vst [vmem:[%s343 + $0x60] sm:$0xff] %v3635
        %3666 = vst [vmem:[%s343 + $0x68] sm:$0xff] %v3640
        %3667 = vst [vmem:[%s343 + $0x70] sm:$0xff] %v3645
        %3668 = vst [vmem:[%s343 + $0x78] sm:$0xff] %v3650
        %3669 = vst.msk [vmem:[%s368] sm:$0xff] %vm613, %v3181
        %3670 = vst.msk [vmem:[%s368 + $0x8] sm:$0xff] %vm613, %v3182
        %3671 = vst.msk [vmem:[%s368 + $0x10] sm:$0xff] %vm613, %v3183
        %3672 = vst.msk [vmem:[%s368 + $0x18] sm:$0xff] %vm613, %v3184
        %3673 = vst.msk [vmem:[%s368 + $0x20] sm:$0xff] %vm613, %v3185
        %3674 = vst.msk [vmem:[%s368 + $0x28] sm:$0xff] %vm613, %v3186
        %3675 = vst.msk [vmem:[%s368 + $0x30] sm:$0xff] %vm613, %v3187
        %3676 = vst.msk [vmem:[%s368 + $0x38] sm:$0xff] %vm613, %v3188
        %3677 = vst.msk [vmem:[%s368 + $0x40] sm:$0xff] %vm613, %v3189
        %3678 = vst.msk [vmem:[%s368 + $0x48] sm:$0xff] %vm613, %v3190
        %3679 = vst.msk [vmem:[%s368 + $0x50] sm:$0xff] %vm613, %v3191
        %3680 = vst.msk [vmem:[%s368 + $0x58] sm:$0xff] %vm613, %v3192
        %3681 = vst.msk [vmem:[%s368 + $0x60] sm:$0xff] %vm613, %v3193
        %3682 = vst.msk [vmem:[%s368 + $0x68] sm:$0xff] %vm613, %v3194
        %3683 = vst.msk [vmem:[%s368 + $0x70] sm:$0xff] %vm613, %v3195
        %3684 = vst.msk [vmem:[%s368 + $0x78] sm:$0xff] %vm613, %v3196
        %s3685 = sand.u32 %s210, 1
        %s3686 = scalar_lea.sflag [#allocation3], %s3685
        %s3687 = sand.u32 %s210, 1
        %s3688 = smul.addr %s3687, 128
        %s3689 = scalar_lea.vmem [#allocation2], %s3688
        %s3690 = smul.u32 16, %s24
        %p3691 = scmp.lt.s32.totalorder %s3690, 31
        %s3692 = scalar_select %p3691, %s3690, 31
        %s3693 = smul.addr %s3692, 8
        %s3694 = scalar_lea.vmem %s9, %s3693
        // Predicated region
        $region53: #{tpu_custom_call.1} parent=51 // pred_check
          %p3695 = pneg %p220
        $region54: #{tpu_custom_call.1} parent=51 // pred_check_branch
          %3697 = sbr.rel (%p3695) target = $region56
        $region55: #{tpu_custom_call.1} parent=51 // pred_region
          %s3698 = smul.u32 16, %s24
          %s3700 = ssub.s32 2048, 2048
          %3701 = vsyncadd %s3686, %s3700
          %s3702 = smul.addr %s3698, 128
          %s3703 = scalar_lea.hbm %s8, %s3702
          %s3704 = sshll.u32 %s3689, 4
          %s3705 = int_to_ptr.vmem [resolvable:$true] %s3704
          %3710 = dma.vmem_to_hbm [thread:$0]  %s3705, 2048, %s3703, %s3686, 128, 128, 8
        $region56: #{tpu_custom_call.1} parent=51 // pred_fallthru
          _
        // Predicated region
        $region57: #{tpu_custom_call.1} parent=51 // pred_check
          %p3711 = pneg %p246
        $region58: #{tpu_custom_call.1} parent=51 // pred_check_branch
          %3713 = sbr.rel (%p3711) target = $region60
        $region59: #{tpu_custom_call.1} parent=51 // pred_region
          %s3714 = smul.u32 16, %s24
        $region60: #{tpu_custom_call.1} parent=51 // pred_fallthru
          _
      $region52: #{tpu_custom_call.1} parent=5 // pred_fallthru
        _
      %p3715 = scmp.le.s32.totalorder 2, %s19
      // Predicated region
      $region61: #{tpu_custom_call.1} parent=5 // pred_check
        %p3716 = pneg %p3715
      $region62: #{tpu_custom_call.1} parent=5 // pred_check_branch
        %3718 = sbr.rel (%p3716) target = $region64
      $region63: #{tpu_custom_call.1} parent=5 // pred_region
        %s3719 = ssub.s32 %s19, 2
        // Predicated region
        $region65: #{tpu_custom_call.1} parent=63 // pred_check
          %p3720 = pneg %p226
        $region66: #{tpu_custom_call.1} parent=63 // pred_check_branch
          %3722 = sbr.rel (%p3720) target = $region68
        $region67: #{tpu_custom_call.1} parent=63 // pred_region
          %s3723 = sand.u32 %s211, 1
          %s3724 = scalar_lea.sflag [#allocation3], %s3723
          %s3725 = sand.u32 %s211, 1
          %s3726 = smul.addr %s3725, 128
          %s3727 = scalar_lea.vmem [#allocation2], %s3726
          %3728 = dma.done %s3724, 2048
        $region68: #{tpu_custom_call.1} parent=63 // pred_fallthru
          _
        // Predicated region
        $region69: #{tpu_custom_call.1} parent=63 // pred_check
          %p3729 = pneg %p252
        $region70: #{tpu_custom_call.1} parent=63 // pred_check_branch
          %3731 = sbr.rel (%p3729) target = $region72
        $region71: #{tpu_custom_call.1} parent=63 // pred_region
          %s3732 = smul.u32 16, %s25
          %p3733 = scmp.lt.s32.totalorder %s3732, 31
          %s3734 = scalar_select %p3733, %s3732, 31
          %s3735 = smul.addr %s3734, 8
          %s3736 = scalar_lea.vmem %s9, %s3735
        $region72: #{tpu_custom_call.1} parent=63 // pred_fallthru
          _
      $region64: #{tpu_custom_call.1} parent=5 // pred_fallthru
        _
    $region6: #{tpu_custom_call.1} parent=1 // loop_footer
      %s23 = sadd.s32 1, %s19
    $region7: #{tpu_custom_call.1} parent=1 // loop_footer_branch
      %18 = sbr.rel target = $region3
    $region8: #{tpu_custom_call.1} parent=1 // loop_exit
      _
    %3737 = vsyncpa [#allocation3], 1
    %s3738 = scalar_lea.sflag [#allocation3], 1
    %3739 = vsyncpa %s3738, 1

</llo_original>
